<compile_context>
chip_gen: v7x
topology: tpu7x:2x2x1
jax: 0.10.0
libtpu: 0.0.40
codegen_flags: <defaults>
</compile_context>

<pallas_src>
import functools
import math

import jax
import jax.numpy as jnp
from jax import lax
from jax.experimental import pallas as pl
from jax.experimental.pallas import tpu as pltpu

_MASK_VALUE = -1e30  # finite "-inf": exp underflows to 0, never NaN.


def _mha_heads(q, k, v, *, num_heads, head_dim, mask, compute_dtype):
    """Multi-head attention core.

    q: (T, Lq, D) already scaled by 1/sqrt(head_dim); k, v: (T, Lk, D), f32.
    Returns lane-concatenated head outputs, shape (T*Lq, D), float32.
    """
    T, Lq, D = q.shape
    Lk = k.shape[1]
    qc = q.astype(compute_dtype)
    kc = k.astype(compute_dtype)
    vc = v.astype(compute_dtype)

    if mask:
        # Causal mask built once per block (shared by every head).
        row = lax.broadcasted_iota(jnp.int32, (Lq, Lk), 0)
        col = lax.broadcasted_iota(jnp.int32, (Lq, Lk), 1)
        keep = jnp.broadcast_to((col <= row)[None, :, :], (T, Lq, Lk))

    outs = []
    for h in range(num_heads):                       # static unroll over heads
        lo = h * head_dim
        qh = qc[:, :, lo:lo + head_dim]              # (T, Lq, hd)
        kh = kc[:, :, lo:lo + head_dim]              # (T, Lk, hd)
        vh = vc[:, :, lo:lo + head_dim]              # (T, Lk, hd)

        s = jnp.einsum('tqd,tkd->tqk', qh, kh,
                       preferred_element_type=jnp.float32)   # (T, Lq, Lk) f32
        if mask:
            s = jnp.where(keep, s, _MASK_VALUE)

        m = jnp.max(s, axis=-1, keepdims=True)
        e = jnp.exp(s - m)
        denom = jnp.sum(e, axis=-1, keepdims=True)
        p = e * pl.reciprocal(denom, approx=True)    # softmax stays f32; EUP recip

        oh = jnp.einsum('tqk,tkd->tqd', p.astype(compute_dtype), vh,
                        preferred_element_type=jnp.float32)  # (T, Lq, hd)
        outs.append(oh.reshape(T * Lq, head_dim))
    # Lane-concat heads -> (rows, D); caller does ONE K=D output projection.
    return jnp.concatenate(outs, axis=-1)


def _self_attn_kernel(x_ref, wqkv_ref, bqkv_ref, wo_ref, bo_ref, o_ref, *,
                      num_heads, head_dim, mask, compute_dtype):
    T, L, D = x_ref.shape
    rows = T * L
    x = x_ref[...].reshape(rows, D).astype(compute_dtype)

    # Fused Q/K/V projection: one (rows, D) @ (D, 3D) matmul.
    qkv = jnp.dot(x, wqkv_ref[...],
                  preferred_element_type=jnp.float32) + bqkv_ref[...]

    scale = 1.0 / math.sqrt(head_dim)
    q = (qkv[:, :D] * scale).reshape(T, L, D)
    k = qkv[:, D:2 * D].reshape(T, L, D)
    v = qkv[:, 2 * D:].reshape(T, L, D)

    attn = _mha_heads(q, k, v, num_heads=num_heads, head_dim=head_dim,
                      mask=mask, compute_dtype=compute_dtype)     # (rows, D) f32

    out = jnp.dot(attn.astype(compute_dtype), wo_ref[...],
                  preferred_element_type=jnp.float32) + bo_ref[...]
    o_ref[...] = out.reshape(T, L, D).astype(o_ref.dtype)


def _cross_attn_kernel(q_ref, k_ref, v_ref,
                       wq_ref, bq_ref, wk_ref, bk_ref, wv_ref, bv_ref,
                       wo_ref, bo_ref, o_ref, *,
                       num_heads, head_dim, mask, compute_dtype):
    T, Lq, D = q_ref.shape
    Lk = k_ref.shape[1]
    scale = 1.0 / math.sqrt(head_dim)

    q_in = q_ref[...].reshape(T * Lq, D).astype(compute_dtype)
    k_in = k_ref[...].reshape(T * Lk, D).astype(compute_dtype)
    v_in = v_ref[...].reshape(T * Lk, D).astype(compute_dtype)

    q = ((jnp.dot(q_in, wq_ref[...], preferred_element_type=jnp.float32)
          + bq_ref[...]) * scale).reshape(T, Lq, D)
    k = (jnp.dot(k_in, wk_ref[...], preferred_element_type=jnp.float32)
         + bk_ref[...]).reshape(T, Lk, D)
    v = (jnp.dot(v_in, wv_ref[...], preferred_element_type=jnp.float32)
         + bv_ref[...]).reshape(T, Lk, D)

    attn = _mha_heads(q, k, v, num_heads=num_heads, head_dim=head_dim,
                      mask=mask, compute_dtype=compute_dtype)

    out = jnp.dot(attn.astype(compute_dtype), wo_ref[...],
                  preferred_element_type=jnp.float32) + bo_ref[...]
    o_ref[...] = out.reshape(T, Lq, D).astype(o_ref.dtype)


def _vmem_bytes_per_tile(Lq, Lk, D, fused):
    """Rough per-(b, s)-tile resident VMEM bytes (f32, double-buffered I/O)."""
    f32 = 4
    a_q = Lq * D * f32
    a_k = Lk * D * f32
    scores = Lq * Lk * f32
    if fused:
        # x block x2 + out block x2 + qkv (3x) + q/k/v views (3x)
        # + head outs + final out + ~3 live (Lq, Lk) score tensors
        return 4 * a_q + 3 * a_q + 3 * a_q + 2 * a_q + 3 * scores
    return (2 * (a_q + 2 * a_k) + 2 * a_q        # in/out blocks, double-buffered
            + (a_q + 2 * a_k) + 2 * a_q + 3 * scores)


def _choose_tile(N, Lq, Lk, D, *, fused, target_rows, vmem_budget_bytes):
    """Pick T = number of (batch, step) tiles processed per grid step.

    Targets ~target_rows projection rows/step (amortizes per-step overhead),
    stays under a conservative VMEM budget (sized with v7x's smaller VMEM in
    mind), keeps >= 2 grid steps so the parallel grid axis can use both v7x
    TensorCores, and prefers divisors of N so no wrapper-side padding is done.
    """
    if N <= 1:
        return max(N, 1)
    t_rows = max(1, pl.cdiv(target_rows, Lq))
    t_vmem = max(1, vmem_budget_bytes // _vmem_bytes_per_tile(Lq, Lk, D, fused))
    cap = max(1, min(t_rows, t_vmem, N // 2))
    best_div = 1
    for t in range(cap, 0, -1):
        if N % t == 0:
            best_div = t
            break
    if 2 * best_div >= cap:      # divisor close enough to cap: no padding
        return best_div
    return cap                   # rare: pad N up to a multiple of cap instead


def attention_layer(query, key, value, params, *, num_heads, mask=False,
                    compute_dtype=jnp.float32, target_rows=1024,
                    vmem_budget_bytes=8 * 1024 * 1024, fuse_qkv=None):
    """Pallas implementation of STAEformer AttentionLayer.forward.

    query: (B, S, Lq, D); key/value: (B, S, Lk, D). Returns (B, S, Lq, D).
    compute_dtype: MXU operand dtype. Keep float32 (default, required on v5e);
    jnp.bfloat16 is worthwhile on v6e/v7x only at model_dim >= 128.  Softmax
    and accumulation always stay in float32.
    """
    B, S, Lq, D = query.shape
    Lk = key.shape[-2]
    assert value.shape[-2] == Lk, "K length must equal V length"
    assert D % num_heads == 0
    head_dim = D // num_heads
    N = B * S
    out_dtype = query.dtype

    wq, bq, wk, bk, wv, bv, wo, bo = params

    if fuse_qkv is None:
        # Object identity: under jit with separately-traced but identical
        # operands pass fuse_qkv=True explicitly to stay on the fused path.
        fuse_qkv = (query is key) and (key is value)

    T = _choose_tile(N, Lq, Lk, D, fused=fuse_qkv, target_rows=target_rows,
                     vmem_budget_bytes=vmem_budget_bytes)
    Npad = pl.cdiv(N, T) * T
    grid = (Npad // T,)

    # Raise the scoped-VMEM limit only when the working set needs it; capped at
    # 32 MiB which is safe on v5e/v6e (128 MiB) and v7x (64 MiB physical).
    est_bytes = _vmem_bytes_per_tile(Lq, Lk, D, fuse_qkv) * T + 8 * D * D * 4
    vmem_limit = None
    if est_bytes > 12 * 1024 * 1024:
        vmem_limit = min(int(est_bytes * 3 // 2), 32 * 1024 * 1024)
    compiler_params = pltpu.CompilerParams(
        dimension_semantics=("parallel",), vmem_limit_bytes=vmem_limit)

    def prep(x, L):
        x = x.reshape(N, L, D)
        if Npad != N:   # only when no reasonable divisor of N exists
            x = jnp.pad(x, ((0, Npad - N), (0, 0), (0, 0)))
        return x

    wo_c = wo.astype(compute_dtype)
    bo2 = bo.reshape(1, D).astype(jnp.float32)

    if fuse_qkv:
        x = prep(query, Lq)
        wqkv = jnp.concatenate([wq, wk, wv], axis=1).astype(compute_dtype)
        bqkv = jnp.concatenate([bq, bk, bv]).reshape(1, 3 * D).astype(jnp.float32)

        kernel = functools.partial(_self_attn_kernel, num_heads=num_heads,
                                   head_dim=head_dim, mask=mask,
                                   compute_dtype=compute_dtype)
        out = pl.pallas_call(
            kernel,
            out_shape=jax.ShapeDtypeStruct((Npad, Lq, D), out_dtype),
            grid_spec=pltpu.PrefetchScalarGridSpec(
                num_scalar_prefetch=0,
                grid=grid,
                in_specs=[
                    pl.BlockSpec((T, Lq, D), lambda i: (i, 0, 0)),   # x
                    pl.BlockSpec((D, 3 * D), lambda i: (0, 0)),      # W_qkv
                    pl.BlockSpec((1, 3 * D), lambda i: (0, 0)),      # b_qkv
                    pl.BlockSpec((D, D), lambda i: (0, 0)),          # W_o
                    pl.BlockSpec((1, D), lambda i: (0, 0)),          # b_o
                ],
                out_specs=pl.BlockSpec((T, Lq, D), lambda i: (i, 0, 0)),
            ),
            compiler_params=compiler_params,
        )(x, wqkv, bqkv, wo_c, bo2)
    else:
        q_in = prep(query, Lq)
        k_in = prep(key, Lk)
        v_in = prep(value, Lk)
        wq_c, wk_c, wv_c = (w.astype(compute_dtype) for w in (wq, wk, wv))
        bq2, bk2, bv2 = (b.reshape(1, D).astype(jnp.float32)
                         for b in (bq, bk, bv))

        w_spec = pl.BlockSpec((D, D), lambda i: (0, 0))
        b_spec = pl.BlockSpec((1, D), lambda i: (0, 0))
        kernel = functools.partial(_cross_attn_kernel, num_heads=num_heads,
                                   head_dim=head_dim, mask=mask,
                                   compute_dtype=compute_dtype)
        out = pl.pallas_call(
            kernel,
            out_shape=jax.ShapeDtypeStruct((Npad, Lq, D), out_dtype),
            grid_spec=pltpu.PrefetchScalarGridSpec(
                num_scalar_prefetch=0,
                grid=grid,
                in_specs=[
                    pl.BlockSpec((T, Lq, D), lambda i: (i, 0, 0)),   # query
                    pl.BlockSpec((T, Lk, D), lambda i: (i, 0, 0)),   # key
                    pl.BlockSpec((T, Lk, D), lambda i: (i, 0, 0)),   # value
                    w_spec, b_spec,     # FC_Q
                    w_spec, b_spec,     # FC_K
                    w_spec, b_spec,     # FC_V
                    w_spec, b_spec,     # out_proj
                ],
                out_specs=pl.BlockSpec((T, Lq, D), lambda i: (i, 0, 0)),
            ),
            compiler_params=compiler_params,
        )(q_in, k_in, v_in, wq_c, bq2, wk_c, bk2, wv_c, bv2, wo_c, bo2)

    return out[:N].reshape(B, S, Lq, D)


def attention_layer_ref(query, key, value, params, *, num_heads, mask=False):
    """Pure-JAX reference mirroring the PyTorch code exactly."""
    wq, bq, wk, bk, wv, bv, wo, bo = params
    D = query.shape[-1]
    head_dim = D // num_heads

    q = query @ wq + bq
    k = key @ wk + bk
    v = value @ wv + bv

    q = jnp.concatenate(jnp.split(q, num_heads, axis=-1), axis=0)
    k = jnp.concatenate(jnp.split(k, num_heads, axis=-1), axis=0)
    v = jnp.concatenate(jnp.split(v, num_heads, axis=-1), axis=0)

    score = (q @ jnp.swapaxes(k, -1, -2)) / math.sqrt(head_dim)
    if mask:
        L_t, L_s = score.shape[-2], score.shape[-1]
        tri = jnp.tril(jnp.ones((L_t, L_s), dtype=bool))
        score = jnp.where(tri, score, -jnp.inf)
    attn = jax.nn.softmax(score, axis=-1)
    out = attn @ v
    out = jnp.concatenate(jnp.split(out, num_heads, axis=0), axis=-1)
    return out @ wo + bo


if __name__ == "__main__":
    # (batch, in_steps, num_nodes, model_dim)
    B, S, L, D = 2, 3, 16, 32
    NUM_HEADS = 4

    key0 = jax.random.PRNGKey(0)
    ks = jax.random.split(key0, 14)

    x = jax.random.normal(ks[0], (B, S, L, D), dtype=jnp.float32)
    q_alt = jax.random.normal(ks[1], (B, S, L, D), dtype=jnp.float32)
    k_alt = jax.random.normal(ks[2], (B, S, L, D), dtype=jnp.float32)
    v_alt = jax.random.normal(ks[11], (B, S, L, D), dtype=jnp.float32)

    scale = 1.0 / math.sqrt(D)
    wq = jax.random.uniform(ks[3], (D, D), minval=-scale, maxval=scale)
    bq = jax.random.uniform(ks[4], (D,), minval=-scale, maxval=scale)
    wk = jax.random.uniform(ks[5], (D, D), minval=-scale, maxval=scale)
    bk = jax.random.uniform(ks[6], (D,), minval=-scale, maxval=scale)
    wv = jax.random.uniform(ks[7], (D, D), minval=-scale, maxval=scale)
    bv = jax.random.uniform(ks[8], (D,), minval=-scale, maxval=scale)
    wo = jax.random.uniform(ks[9], (D, D), minval=-scale, maxval=scale)
    bo = jax.random.uniform(ks[10], (D,), minval=-scale, maxval=scale)
    params = (wq, bq, wk, bk, wv, bv, wo, bo)

    # 1) Fused self-attention path (STAEformer usage), f32 (default, v5e-safe).
    out = attention_layer(x, x, x, params, num_heads=NUM_HEADS, mask=False)
    out = jax.block_until_ready(out)
    ref = attention_layer_ref(x, x, x, params, num_heads=NUM_HEADS, mask=False)
    assert out.shape == (B, S, L, D)
    err = float(jnp.max(jnp.abs(out - ref)))
    assert err < 3e-2, f"self-attn f32 mismatch: max abs err {err}"

    # 2) Fused self-attention with causal mask, opt-in bf16 MXU operands
    #    (only recommended on v6e/v7x at larger model_dim; exercised for
    #    coverage of the option).
    out_bf = attention_layer(x, x, x, params, num_heads=NUM_HEADS, mask=True,
                             compute_dtype=jnp.bfloat16)
    out_bf = jax.block_until_ready(out_bf)
    ref_m = attention_layer_ref(x, x, x, params, num_heads=NUM_HEADS, mask=True)
    err_bf = float(jnp.max(jnp.abs(out_bf.astype(jnp.float32) - ref_m)))
    assert err_bf < 2e-1, f"self-attn bf16 mismatch: max abs err {err_bf}"

    # 3) General (cross-attention) path with distinct q/k/v, f32.
    out_c = attention_layer(q_alt, k_alt, v_alt, params,
                            num_heads=NUM_HEADS, mask=False)
    out_c = jax.block_until_ready(out_c)
    ref_c = attention_layer_ref(q_alt, k_alt, v_alt, params,
                                num_heads=NUM_HEADS, mask=False)
    err_c = float(jnp.max(jnp.abs(out_c - ref_c)))
    assert err_c < 3e-2, f"cross-attn f32 mismatch: max abs err {err_c}"

    print("KERNEL_OK")
</pallas_src>

<mosaic_0001>
module attributes {stable_mosaic.version = 11 : i64} {
  func.func @_self_attn_kernel(%arg0: i32, %arg1: memref<3x16x32xf32, #tpu.memory_space<vmem>>, %arg2: memref<32x96xf32, #tpu.memory_space<vmem>>, %arg3: memref<1x96xf32, #tpu.memory_space<vmem>>, %arg4: memref<32x32xf32, #tpu.memory_space<vmem>>, %arg5: memref<1x32xf32, #tpu.memory_space<vmem>>, %arg6: memref<3x16x32xf32, #tpu.memory_space<vmem>>) attributes {dimension_semantics = [#tpu.dimension_semantics<parallel>], iteration_bounds = array<i64: 2>, scalar_prefetch = 0 : i64, scratch_operands = 0 : i64, tpu.core_type = #tpu.core_type<tc>, window_params = [{transform_indices = @transform_0, window_bounds = array<i64: 3, 16, 32>}, {pipeline_mode = #tpu.pipeline_mode<synchronous>, transform_indices = @transform_1, window_bounds = array<i64: 32, 96>}, {pipeline_mode = #tpu.pipeline_mode<synchronous>, transform_indices = @transform_2, window_bounds = array<i64: 1, 96>}, {pipeline_mode = #tpu.pipeline_mode<synchronous>, transform_indices = @transform_3, window_bounds = array<i64: 32, 32>}, {pipeline_mode = #tpu.pipeline_mode<synchronous>, transform_indices = @transform_4, window_bounds = array<i64: 1, 32>}, {transform_indices = @transform_5, window_bounds = array<i64: 3, 16, 32>}]} {
    %c0 = arith.constant 0 : index
    %c0_0 = arith.constant 0 : index
    %c0_1 = arith.constant 0 : index
    %0 = vector.load %arg1[%c0, %c0_0, %c0_1] : memref<3x16x32xf32, #tpu.memory_space<vmem>>, vector<3x16x32xf32>
    %1 = vector.shape_cast %0 : vector<3x16x32xf32> to vector<48x32xf32>
    %c0_2 = arith.constant 0 : index
    %c0_3 = arith.constant 0 : index
    %2 = vector.load %arg2[%c0_2, %c0_3] : memref<32x96xf32, #tpu.memory_space<vmem>>, vector<32x96xf32>
    %cst = arith.constant dense<0.000000e+00> : vector<48x96xf32>
    %3 = tpu.matmul %1, %2, %cst {dimension_numbers = #tpu.dot_dimension_numbers<[1], [0], [0], [1], [0, 0, 1, 1], [], []>} : vector<48x32xf32>, vector<32x96xf32>, vector<48x96xf32> -> vector<48x96xf32>
    %c0_4 = arith.constant 0 : index
    %c0_5 = arith.constant 0 : index
    %4 = vector.load %arg3[%c0_4, %c0_5] : memref<1x96xf32, #tpu.memory_space<vmem>>, vector<1x96xf32>
    %5 = vector.broadcast %4 : vector<1x96xf32> to vector<48x96xf32>
    %6 = arith.addf %3, %5 : vector<48x96xf32>
    %7 = vector.extract_strided_slice %6 {offsets = [0, 0], sizes = [48, 32], strides = [1, 1]} : vector<48x96xf32> to vector<48x32xf32>
    %cst_6 = arith.constant 0.353553385 : f32
    %8 = vector.broadcast %cst_6 : f32 to vector<48x32xf32>
    %9 = arith.mulf %7, %8 : vector<48x32xf32>
    %10 = vector.shape_cast %9 : vector<48x32xf32> to vector<3x16x32xf32>
    %11 = vector.extract_strided_slice %6 {offsets = [0, 32], sizes = [48, 32], strides = [1, 1]} : vector<48x96xf32> to vector<48x32xf32>
    %12 = vector.shape_cast %11 : vector<48x32xf32> to vector<3x16x32xf32>
    %13 = vector.extract_strided_slice %6 {offsets = [0, 64], sizes = [48, 32], strides = [1, 1]} : vector<48x96xf32> to vector<48x32xf32>
    %14 = vector.shape_cast %13 : vector<48x32xf32> to vector<3x16x32xf32>
    %15 = vector.extract_strided_slice %10 {offsets = [0, 0, 0], sizes = [3, 16, 8], strides = [1, 1, 1]} : vector<3x16x32xf32> to vector<3x16x8xf32>
    %16 = vector.extract_strided_slice %12 {offsets = [0, 0, 0], sizes = [3, 16, 8], strides = [1, 1, 1]} : vector<3x16x32xf32> to vector<3x16x8xf32>
    %17 = vector.extract_strided_slice %14 {offsets = [0, 0, 0], sizes = [3, 16, 8], strides = [1, 1, 1]} : vector<3x16x32xf32> to vector<3x16x8xf32>
    "tpu.trace_start"() <{level = 10 : i32, message = "tqd,tkd->tqk"}> : () -> ()
    %cst_7 = arith.constant dense<0.000000e+00> : vector<3x16x16xf32>
    %18 = tpu.matmul %15, %16, %cst_7 {dimension_numbers = #tpu.dot_dimension_numbers<[2], [2], [1], [1], [0, 0, 0, 1, 1, 1], [0], [0]>} : vector<3x16x8xf32>, vector<3x16x8xf32>, vector<3x16x16xf32> -> vector<3x16x16xf32>
    "tpu.trace_stop"() : () -> ()
    %cst_8 = arith.constant dense<0xFF800000> : vector<3x16xf32>
    %19 = vector.multi_reduction <maximumf>, %18, %cst_8 [2] : vector<3x16x16xf32> to vector<3x16xf32>
    %20 = vector.shape_cast %19 : vector<3x16xf32> to vector<3x16x1xf32>
    %21 = vector.broadcast %20 : vector<3x16x1xf32> to vector<3x16x16xf32>
    %22 = arith.subf %18, %21 : vector<3x16x16xf32>
    %23 = math.exp %22 : vector<3x16x16xf32>
    %cst_9 = arith.constant dense<0.000000e+00> : vector<3x16xf32>
    %24 = vector.multi_reduction <add>, %23, %cst_9 [2] : vector<3x16x16xf32> to vector<3x16xf32>
    %25 = vector.shape_cast %24 : vector<3x16xf32> to vector<3x16x1xf32>
    %26 = tpu.reciprocal %25 {approx = true} : vector<3x16x1xf32> -> vector<3x16x1xf32>
    %27 = vector.broadcast %26 : vector<3x16x1xf32> to vector<3x16x16xf32>
    %28 = arith.mulf %23, %27 : vector<3x16x16xf32>
    "tpu.trace_start"() <{level = 10 : i32, message = "tqk,tkd->tqd"}> : () -> ()
    %cst_10 = arith.constant dense<0.000000e+00> : vector<3x16x8xf32>
    %29 = tpu.matmul %28, %17, %cst_10 {dimension_numbers = #tpu.dot_dimension_numbers<[2], [1], [1], [2], [0, 0, 0, 1, 1, 2], [0], [0]>} : vector<3x16x16xf32>, vector<3x16x8xf32>, vector<3x16x8xf32> -> vector<3x16x8xf32>
    "tpu.trace_stop"() : () -> ()
    %30 = vector.shape_cast %29 : vector<3x16x8xf32> to vector<48x8xf32>
    %31 = vector.extract_strided_slice %10 {offsets = [0, 0, 8], sizes = [3, 16, 8], strides = [1, 1, 1]} : vector<3x16x32xf32> to vector<3x16x8xf32>
    %32 = vector.extract_strided_slice %12 {offsets = [0, 0, 8], sizes = [3, 16, 8], strides = [1, 1, 1]} : vector<3x16x32xf32> to vector<3x16x8xf32>
    %33 = vector.extract_strided_slice %14 {offsets = [0, 0, 8], sizes = [3, 16, 8], strides = [1, 1, 1]} : vector<3x16x32xf32> to vector<3x16x8xf32>
    "tpu.trace_start"() <{level = 10 : i32, message = "tqd,tkd->tqk"}> : () -> ()
    %cst_11 = arith.constant dense<0.000000e+00> : vector<3x16x16xf32>
    %34 = tpu.matmul %31, %32, %cst_11 {dimension_numbers = #tpu.dot_dimension_numbers<[2], [2], [1], [1], [0, 0, 0, 1, 1, 1], [0], [0]>} : vector<3x16x8xf32>, vector<3x16x8xf32>, vector<3x16x16xf32> -> vector<3x16x16xf32>
    "tpu.trace_stop"() : () -> ()
    %cst_12 = arith.constant dense<0xFF800000> : vector<3x16xf32>
    %35 = vector.multi_reduction <maximumf>, %34, %cst_12 [2] : vector<3x16x16xf32> to vector<3x16xf32>
    %36 = vector.shape_cast %35 : vector<3x16xf32> to vector<3x16x1xf32>
    %37 = vector.broadcast %36 : vector<3x16x1xf32> to vector<3x16x16xf32>
    %38 = arith.subf %34, %37 : vector<3x16x16xf32>
    %39 = math.exp %38 : vector<3x16x16xf32>
    %cst_13 = arith.constant dense<0.000000e+00> : vector<3x16xf32>
    %40 = vector.multi_reduction <add>, %39, %cst_13 [2] : vector<3x16x16xf32> to vector<3x16xf32>
    %41 = vector.shape_cast %40 : vector<3x16xf32> to vector<3x16x1xf32>
    %42 = tpu.reciprocal %41 {approx = true} : vector<3x16x1xf32> -> vector<3x16x1xf32>
    %43 = vector.broadcast %42 : vector<3x16x1xf32> to vector<3x16x16xf32>
    %44 = arith.mulf %39, %43 : vector<3x16x16xf32>
    "tpu.trace_start"() <{level = 10 : i32, message = "tqk,tkd->tqd"}> : () -> ()
    %cst_14 = arith.constant dense<0.000000e+00> : vector<3x16x8xf32>
    %45 = tpu.matmul %44, %33, %cst_14 {dimension_numbers = #tpu.dot_dimension_numbers<[2], [1], [1], [2], [0, 0, 0, 1, 1, 2], [0], [0]>} : vector<3x16x16xf32>, vector<3x16x8xf32>, vector<3x16x8xf32> -> vector<3x16x8xf32>
    "tpu.trace_stop"() : () -> ()
    %46 = vector.shape_cast %45 : vector<3x16x8xf32> to vector<48x8xf32>
    %47 = vector.extract_strided_slice %10 {offsets = [0, 0, 16], sizes = [3, 16, 8], strides = [1, 1, 1]} : vector<3x16x32xf32> to vector<3x16x8xf32>
    %48 = vector.extract_strided_slice %12 {offsets = [0, 0, 16], sizes = [3, 16, 8], strides = [1, 1, 1]} : vector<3x16x32xf32> to vector<3x16x8xf32>
    %49 = vector.extract_strided_slice %14 {offsets = [0, 0, 16], sizes = [3, 16, 8], strides = [1, 1, 1]} : vector<3x16x32xf32> to vector<3x16x8xf32>
    "tpu.trace_start"() <{level = 10 : i32, message = "tqd,tkd->tqk"}> : () -> ()
    %cst_15 = arith.constant dense<0.000000e+00> : vector<3x16x16xf32>
    %50 = tpu.matmul %47, %48, %cst_15 {dimension_numbers = #tpu.dot_dimension_numbers<[2], [2], [1], [1], [0, 0, 0, 1, 1, 1], [0], [0]>} : vector<3x16x8xf32>, vector<3x16x8xf32>, vector<3x16x16xf32> -> vector<3x16x16xf32>
    "tpu.trace_stop"() : () -> ()
    %cst_16 = arith.constant dense<0xFF800000> : vector<3x16xf32>
    %51 = vector.multi_reduction <maximumf>, %50, %cst_16 [2] : vector<3x16x16xf32> to vector<3x16xf32>
    %52 = vector.shape_cast %51 : vector<3x16xf32> to vector<3x16x1xf32>
    %53 = vector.broadcast %52 : vector<3x16x1xf32> to vector<3x16x16xf32>
    %54 = arith.subf %50, %53 : vector<3x16x16xf32>
    %55 = math.exp %54 : vector<3x16x16xf32>
    %cst_17 = arith.constant dense<0.000000e+00> : vector<3x16xf32>
    %56 = vector.multi_reduction <add>, %55, %cst_17 [2] : vector<3x16x16xf32> to vector<3x16xf32>
    %57 = vector.shape_cast %56 : vector<3x16xf32> to vector<3x16x1xf32>
    %58 = tpu.reciprocal %57 {approx = true} : vector<3x16x1xf32> -> vector<3x16x1xf32>
    %59 = vector.broadcast %58 : vector<3x16x1xf32> to vector<3x16x16xf32>
    %60 = arith.mulf %55, %59 : vector<3x16x16xf32>
    "tpu.trace_start"() <{level = 10 : i32, message = "tqk,tkd->tqd"}> : () -> ()
    %cst_18 = arith.constant dense<0.000000e+00> : vector<3x16x8xf32>
    %61 = tpu.matmul %60, %49, %cst_18 {dimension_numbers = #tpu.dot_dimension_numbers<[2], [1], [1], [2], [0, 0, 0, 1, 1, 2], [0], [0]>} : vector<3x16x16xf32>, vector<3x16x8xf32>, vector<3x16x8xf32> -> vector<3x16x8xf32>
    "tpu.trace_stop"() : () -> ()
    %62 = vector.shape_cast %61 : vector<3x16x8xf32> to vector<48x8xf32>
    %63 = vector.extract_strided_slice %10 {offsets = [0, 0, 24], sizes = [3, 16, 8], strides = [1, 1, 1]} : vector<3x16x32xf32> to vector<3x16x8xf32>
    %64 = vector.extract_strided_slice %12 {offsets = [0, 0, 24], sizes = [3, 16, 8], strides = [1, 1, 1]} : vector<3x16x32xf32> to vector<3x16x8xf32>
    %65 = vector.extract_strided_slice %14 {offsets = [0, 0, 24], sizes = [3, 16, 8], strides = [1, 1, 1]} : vector<3x16x32xf32> to vector<3x16x8xf32>
    "tpu.trace_start"() <{level = 10 : i32, message = "tqd,tkd->tqk"}> : () -> ()
    %cst_19 = arith.constant dense<0.000000e+00> : vector<3x16x16xf32>
    %66 = tpu.matmul %63, %64, %cst_19 {dimension_numbers = #tpu.dot_dimension_numbers<[2], [2], [1], [1], [0, 0, 0, 1, 1, 1], [0], [0]>} : vector<3x16x8xf32>, vector<3x16x8xf32>, vector<3x16x16xf32> -> vector<3x16x16xf32>
    "tpu.trace_stop"() : () -> ()
    %cst_20 = arith.constant dense<0xFF800000> : vector<3x16xf32>
    %67 = vector.multi_reduction <maximumf>, %66, %cst_20 [2] : vector<3x16x16xf32> to vector<3x16xf32>
    %68 = vector.shape_cast %67 : vector<3x16xf32> to vector<3x16x1xf32>
    %69 = vector.broadcast %68 : vector<3x16x1xf32> to vector<3x16x16xf32>
    %70 = arith.subf %66, %69 : vector<3x16x16xf32>
    %71 = math.exp %70 : vector<3x16x16xf32>
    %cst_21 = arith.constant dense<0.000000e+00> : vector<3x16xf32>
    %72 = vector.multi_reduction <add>, %71, %cst_21 [2] : vector<3x16x16xf32> to vector<3x16xf32>
    %73 = vector.shape_cast %72 : vector<3x16xf32> to vector<3x16x1xf32>
    %74 = tpu.reciprocal %73 {approx = true} : vector<3x16x1xf32> -> vector<3x16x1xf32>
    %75 = vector.broadcast %74 : vector<3x16x1xf32> to vector<3x16x16xf32>
    %76 = arith.mulf %71, %75 : vector<3x16x16xf32>
    "tpu.trace_start"() <{level = 10 : i32, message = "tqk,tkd->tqd"}> : () -> ()
    %cst_22 = arith.constant dense<0.000000e+00> : vector<3x16x8xf32>
    %77 = tpu.matmul %76, %65, %cst_22 {dimension_numbers = #tpu.dot_dimension_numbers<[2], [1], [1], [2], [0, 0, 0, 1, 1, 2], [0], [0]>} : vector<3x16x16xf32>, vector<3x16x8xf32>, vector<3x16x8xf32> -> vector<3x16x8xf32>
    "tpu.trace_stop"() : () -> ()
    %78 = vector.shape_cast %77 : vector<3x16x8xf32> to vector<48x8xf32>
    %79 = tpu.concatenate %30, %46, %62, %78 in 1 : vector<48x8xf32>, vector<48x8xf32>, vector<48x8xf32>, vector<48x8xf32> -> vector<48x32xf32>
    %c0_23 = arith.constant 0 : index
    %c0_24 = arith.constant 0 : index
    %80 = vector.load %arg4[%c0_23, %c0_24] : memref<32x32xf32, #tpu.memory_space<vmem>>, vector<32x32xf32>
    %cst_25 = arith.constant dense<0.000000e+00> : vector<48x32xf32>
    %81 = tpu.matmul %79, %80, %cst_25 {dimension_numbers = #tpu.dot_dimension_numbers<[1], [0], [0], [1], [0, 0, 1, 1], [], []>} : vector<48x32xf32>, vector<32x32xf32>, vector<48x32xf32> -> vector<48x32xf32>
    %c0_26 = arith.constant 0 : index
    %c0_27 = arith.constant 0 : index
    %82 = vector.load %arg5[%c0_26, %c0_27] : memref<1x32xf32, #tpu.memory_space<vmem>>, vector<1x32xf32>
    %83 = vector.broadcast %82 : vector<1x32xf32> to vector<48x32xf32>
    %84 = arith.addf %81, %83 : vector<48x32xf32>
    %85 = vector.shape_cast %84 : vector<48x32xf32> to vector<3x16x32xf32>
    %c0_28 = arith.constant 0 : index
    %c0_29 = arith.constant 0 : index
    %c0_30 = arith.constant 0 : index
    %86 = vector.load %arg6[%c0_28, %c0_29, %c0_30] : memref<3x16x32xf32, #tpu.memory_space<vmem>>, vector<3x16x32xf32>
    tpu.vector_store %arg6[%c0_28, %c0_29, %c0_30], %85 {strides = array<i32>} : memref<3x16x32xf32, #tpu.memory_space<vmem>>, vector<3x16x32xf32>,
    return
  }
  func.func @transform_0(%arg0: i32) -> (i32, i32, i32) {
    %c0_i32 = arith.constant 0 : i32
    %c0_i32_0 = arith.constant 0 : i32
    %c0_i32_1 = arith.constant 0 : i32
    return %arg0, %c0_i32, %c0_i32_0 : i32, i32, i32
  }
  func.func @transform_1(%arg0: i32) -> (i32, i32) {
    %c0_i32 = arith.constant 0 : i32
    %c0_i32_0 = arith.constant 0 : i32
    %c0_i32_1 = arith.constant 0 : i32
    return %c0_i32, %c0_i32_0 : i32, i32
  }
  func.func @transform_2(%arg0: i32) -> (i32, i32) {
    %c0_i32 = arith.constant 0 : i32
    %c0_i32_0 = arith.constant 0 : i32
    %c0_i32_1 = arith.constant 0 : i32
    return %c0_i32, %c0_i32_0 : i32, i32
  }
  func.func @transform_3(%arg0: i32) -> (i32, i32) {
    %c0_i32 = arith.constant 0 : i32
    %c0_i32_0 = arith.constant 0 : i32
    %c0_i32_1 = arith.constant 0 : i32
    return %c0_i32, %c0_i32_0 : i32, i32
  }
  func.func @transform_4(%arg0: i32) -> (i32, i32) {
    %c0_i32 = arith.constant 0 : i32
    %c0_i32_0 = arith.constant 0 : i32
    %c0_i32_1 = arith.constant 0 : i32
    return %c0_i32, %c0_i32_0 : i32, i32
  }
  func.func @transform_5(%arg0: i32) -> (i32, i32, i32) {
    %c0_i32 = arith.constant 0 : i32
    %c0_i32_0 = arith.constant 0 : i32
    %c0_i32_1 = arith.constant 0 : i32
    return %arg0, %c0_i32, %c0_i32_0 : i32, i32, i32
  }
}

</mosaic_0001>

<llo_original>
// kernel: tpu_custom_call.1
$region0: #{tpu_custom_call.1}
  #allocation0 [shape = 'u32[]', space=smem, size = 0x4, offset = 0x4, fixed_abs, tag = 'smem constant byte address 0x4 - core index']
  #allocation1 [shape = 'u32[144,128]{1,0:T(1,128)}', space=vmem, size = 0x12000, scoped, tag = 'internal scratch']
  %s0 = inlined_call_operand.hbm [shape: f32[6,16,32], index: 0, kind: input, shape index: {}]
  %s1 = inlined_call_operand.hbm [shape: f32[32,96], index: 1, kind: input, shape index: {}]
  %s2 = inlined_call_operand.vmem [shape: f32[1,96], index: 2, kind: input, shape index: {}]
  %s3 = inlined_call_operand.hbm [shape: f32[32,32], index: 3, kind: input, shape index: {}]
  %s4 = inlined_call_operand.vmem [shape: f32[1,32], index: 4, kind: input, shape index: {}]
  %s5 = inlined_call_operand.hbm [shape: f32[6,16,32], index: 5, kind: output, shape index: {}]
  %s6 = sld [smem:[#allocation0]]
  $region65: #{tpu_custom_call.1} parent=0
    _
  %s8 = ssub.s32 1, %s6
  %s9 = scalar_select 0, %s8, %s6
  $region1: #{tpu_custom_call.1} parent=0
    #allocation2 [shape = 'u8[49152]{0}', space=vmem, size = 0xc000, scoped, tag = 'input window, operand 0']
    #allocation3 [shape = 's32[2]{0}', space=sflag, size = 0x8, scoped, tag = 'scoped memory for tpu_custom_call.1']
    #allocation4 [shape = 's32[2]{0}', space=sflag, size = 0x8, scoped, tag = 'scoped memory for tpu_custom_call.1']
    #allocation5 [shape = 'u8[16384]{0}', space=vmem, size = 0x4000, scoped, tag = 'input window, operand 1, single buffered']
    #allocation6 [shape = 's32[1]{0}', space=sflag, size = 0x4, scoped, tag = 'scoped memory for tpu_custom_call.1']
    #allocation7 [shape = 'u8[16384]{0}', space=vmem, size = 0x4000, scoped, tag = 'input window, operand 3, single buffered']
    #allocation8 [shape = 'u8[49152]{0}', space=vmem, size = 0xc000, scoped, tag = 'output window, operand 0']
    %10 = vsyncpa [#allocation3], 0
    %s11 = scalar_lea.sflag [#allocation3], 1
    %12 = vsyncpa %s11, 0
    %13 = vsyncpa [#allocation6], 0
    %14 = vsyncpa [#allocation4], 0
    %s15 = scalar_lea.sflag [#allocation4], 1
    %16 = vsyncpa %s15, 0
    loop: start=0, step=1, limit=4
    $region2: #{tpu_custom_call.1} parent=1 // loop_pre_header
      _
    $region3: #{tpu_custom_call.1} parent=1 // loop_header
      %s18 = sphi 0, %s22
      %p19 = scmp.ge.s32.totalorder %s18, 4
      %s28 = sphi 0, %s30
      %s31 = sphi 0, %s28
      %s32 = sphi 0, %s31
      %s48 = sphi 0, %s32
      %s52 = sphi 0, %s52
      %s54 = sphi 0, %s52
      %s55 = sphi 0, %s54
      %s69 = sphi 0, %s55
      %s73 = sphi 0, %s73
      %s75 = sphi 0, %s73
      %s76 = sphi 0, %s75
      %s90 = sphi 0, %s76
      %s94 = sphi 0, %s94
      %s96 = sphi 0, %s94
      %s97 = sphi 0, %s96
      %s111 = sphi 0, %s97
      %s115 = sphi 0, %s115
      %s117 = sphi 0, %s115
      %s118 = sphi 0, %s117
      %s132 = sphi 0, %s118
      %s138 = sphi 0, %s140
      %s141 = sphi 0, %s138
      %s142 = sphi 0, %s141
      %s158 = sphi 0, %s142
    $region4: #{tpu_custom_call.1} parent=1 // loop_header_branch
      %21 = sbr.rel (%p19) target = $region8
    $region5: #{tpu_custom_call.1} parent=1 // loop_body
      %s23 = ssub.s32 %s18, 1
      %s24 = ssub.s32 %s18, 2
      %s25 = sadd.s32 %s18, 1
      %s26 = ssub.s32 %s18, %s25
      %p27 = scmp.eq.s32.totalorder %s26, 0
      %s29 = sadd.s32 %s28, 1
      %s30 = scalar_select %p27, %s28, %s29
      %p33 = pneg %p27
      %p34 = scmp.eq.s32.totalorder %s18, 1
      %p35 = por %p33, %p34
      %p36 = scmp.ne.s32.totalorder %s28, %s31
      %p37 = scmp.eq.s32.totalorder %s18, 0
      %p38 = por %p36, %p37
      %p39 = scmp.ne.s32.totalorder %s28, %s31
      %p40 = scmp.eq.s32.totalorder %s23, 1
      %p41 = por %p39, %p40
      %p42 = scmp.ne.s32.totalorder %s31, %s32
      %p43 = scmp.eq.s32.totalorder %s23, 0
      %p44 = por %p42, %p43
      %p45 = scmp.ne.s32.totalorder %s31, %s32
      %p46 = scmp.eq.s32.totalorder %s24, 1
      %p47 = por %p45, %p46
      %p49 = scmp.ne.s32.totalorder %s32, %s48
      %p50 = scmp.eq.s32.totalorder %s24, 0
      %p51 = por %p49, %p50
      %s53 = sadd.s32 %s52, 1
      %p56 = scmp.eq.s32.totalorder %s18, 1
      %p57 = scmp.ne.s32.totalorder %s52, %s54
      %p58 = scmp.eq.s32.totalorder %s18, 0
      %p59 = por %p57, %p58
      %p60 = scmp.ne.s32.totalorder %s52, %s54
      %p61 = scmp.eq.s32.totalorder %s23, 1
      %p62 = por %p60, %p61
      %p63 = scmp.ne.s32.totalorder %s54, %s55
      %p64 = scmp.eq.s32.totalorder %s23, 0
      %p65 = por %p63, %p64
      %p66 = scmp.ne.s32.totalorder %s54, %s55
      %p67 = scmp.eq.s32.totalorder %s24, 1
      %p68 = por %p66, %p67
      %p70 = scmp.ne.s32.totalorder %s55, %s69
      %p71 = scmp.eq.s32.totalorder %s24, 0
      %p72 = por %p70, %p71
      %s74 = sadd.s32 %s73, 1
      %p77 = scmp.eq.s32.totalorder %s18, 1
      %p78 = scmp.ne.s32.totalorder %s73, %s75
      %p79 = scmp.eq.s32.totalorder %s18, 0
      %p80 = por %p78, %p79
      %p81 = scmp.ne.s32.totalorder %s73, %s75
      %p82 = scmp.eq.s32.totalorder %s23, 1
      %p83 = por %p81, %p82
      %p84 = scmp.ne.s32.totalorder %s75, %s76
      %p85 = scmp.eq.s32.totalorder %s23, 0
      %p86 = por %p84, %p85
      %p87 = scmp.ne.s32.totalorder %s75, %s76
      %p88 = scmp.eq.s32.totalorder %s24, 1
      %p89 = por %p87, %p88
      %p91 = scmp.ne.s32.totalorder %s76, %s90
      %p92 = scmp.eq.s32.totalorder %s24, 0
      %p93 = por %p91, %p92
      %s95 = sadd.s32 %s94, 1
      %p98 = scmp.eq.s32.totalorder %s18, 1
      %p99 = scmp.ne.s32.totalorder %s94, %s96
      %p100 = scmp.eq.s32.totalorder %s18, 0
      %p101 = por %p99, %p100
      %p102 = scmp.ne.s32.totalorder %s94, %s96
      %p103 = scmp.eq.s32.totalorder %s23, 1
      %p104 = por %p102, %p103
      %p105 = scmp.ne.s32.totalorder %s96, %s97
      %p106 = scmp.eq.s32.totalorder %s23, 0
      %p107 = por %p105, %p106
      %p108 = scmp.ne.s32.totalorder %s96, %s97
      %p109 = scmp.eq.s32.totalorder %s24, 1
      %p110 = por %p108, %p109
      %p112 = scmp.ne.s32.totalorder %s97, %s111
      %p113 = scmp.eq.s32.totalorder %s24, 0
      %p114 = por %p112, %p113
      %s116 = sadd.s32 %s115, 1
      %p119 = scmp.eq.s32.totalorder %s18, 1
      %p120 = scmp.ne.s32.totalorder %s115, %s117
      %p121 = scmp.eq.s32.totalorder %s18, 0
      %p122 = por %p120, %p121
      %p123 = scmp.ne.s32.totalorder %s115, %s117
      %p124 = scmp.eq.s32.totalorder %s23, 1
      %p125 = por %p123, %p124
      %p126 = scmp.ne.s32.totalorder %s117, %s118
      %p127 = scmp.eq.s32.totalorder %s23, 0
      %p128 = por %p126, %p127
      %p129 = scmp.ne.s32.totalorder %s117, %s118
      %p130 = scmp.eq.s32.totalorder %s24, 1
      %p131 = por %p129, %p130
      %p133 = scmp.ne.s32.totalorder %s118, %s132
      %p134 = scmp.eq.s32.totalorder %s24, 0
      %p135 = por %p133, %p134
      %s136 = ssub.s32 %s18, %s25
      %p137 = scmp.eq.s32.totalorder %s136, 0
      %s139 = sadd.s32 %s138, 1
      %s140 = scalar_select %p137, %s138, %s139
      %p143 = pneg %p137
      %p144 = scmp.eq.s32.totalorder %s18, 1
      %p145 = por %p143, %p144
      %p146 = scmp.ne.s32.totalorder %s138, %s141
      %p147 = scmp.eq.s32.totalorder %s18, 0
      %p148 = por %p146, %p147
      %p149 = scmp.ne.s32.totalorder %s138, %s141
      %p150 = scmp.eq.s32.totalorder %s23, 1
      %p151 = por %p149, %p150
      %p152 = scmp.ne.s32.totalorder %s141, %s142
      %p153 = scmp.eq.s32.totalorder %s23, 0
      %p154 = por %p152, %p153
      %p155 = scmp.ne.s32.totalorder %s141, %s142
      %p156 = scmp.eq.s32.totalorder %s24, 1
      %p157 = por %p155, %p156
      %p159 = scmp.ne.s32.totalorder %s142, %s158
      %p160 = scmp.eq.s32.totalorder %s24, 0
      %p161 = por %p159, %p160
      %p162 = scmp.le.s32.totalorder 1, %s18
      %p163 = scmp.lt.s32.totalorder %s18, 3
      %p164 = pnand %p162, %p163
      %p165 = pneg %p164
      // Predicated region
      $region9: #{tpu_custom_call.1} parent=5 // pred_check
        _
      $region10: #{tpu_custom_call.1} parent=5 // pred_check_branch
        %167 = sbr.rel (%p164) target = $region12
      $region11: #{tpu_custom_call.1} parent=5 // pred_region
        %s168 = ssub.s32 %s18, 1
        // Predicated region
        $region13: #{tpu_custom_call.1} parent=11 // pred_check
          %p169 = pneg %p65
        $region14: #{tpu_custom_call.1} parent=11 // pred_check_branch
          %171 = sbr.rel (%p169) target = $region16
        $region15: #{tpu_custom_call.1} parent=11 // pred_region
          %s173 = ssub.s32 512, 512
          %174 = vsyncadd [#allocation6], %s173
          %s175 = sshll.u32 [#allocation5], 4
          %s176 = int_to_ptr.vmem [resolvable:$true] %s175
          %181 = dma.hbm_to_vmem [thread:$0]  %s1, 512, %s176, [#allocation6], 128, 128, 8
        $region16: #{tpu_custom_call.1} parent=11 // pred_fallthru
          _
        // Predicated region
        $region17: #{tpu_custom_call.1} parent=11 // pred_check
          %p182 = pneg %p86
        $region18: #{tpu_custom_call.1} parent=11 // pred_check_branch
          %184 = sbr.rel (%p182) target = $region20
        $region19: #{tpu_custom_call.1} parent=11 // pred_region
          _
        $region20: #{tpu_custom_call.1} parent=11 // pred_fallthru
          _
        // Predicated region
        $region21: #{tpu_custom_call.1} parent=11 // pred_check
          %p185 = pneg %p107
        $region22: #{tpu_custom_call.1} parent=11 // pred_check_branch
          %187 = sbr.rel (%p185) target = $region24
        $region23: #{tpu_custom_call.1} parent=11 // pred_region
          %s189 = ssub.s32 512, 512
          %190 = vsyncadd [#allocation6], %s189
          %s191 = sshll.u32 [#allocation7], 4
          %s192 = int_to_ptr.vmem [resolvable:$true] %s191
          %197 = dma.hbm_to_vmem [thread:$0]  %s3, 512, %s192, [#allocation6], 128, 128, 8
        $region24: #{tpu_custom_call.1} parent=11 // pred_fallthru
          _
        // Predicated region
        $region25: #{tpu_custom_call.1} parent=11 // pred_check
          %p198 = pneg %p128
        $region26: #{tpu_custom_call.1} parent=11 // pred_check_branch
          %200 = sbr.rel (%p198) target = $region28
        $region27: #{tpu_custom_call.1} parent=11 // pred_region
          _
        $region28: #{tpu_custom_call.1} parent=11 // pred_fallthru
          _
      $region12: #{tpu_custom_call.1} parent=5 // pred_fallthru
        _
      %p201 = scmp.lt.s32.totalorder %s18, 2
      // Predicated region
      $region29: #{tpu_custom_call.1} parent=5 // pred_check
        %p202 = pneg %p201
      $region30: #{tpu_custom_call.1} parent=5 // pred_check_branch
        %204 = sbr.rel (%p202) target = $region32
      $region31: #{tpu_custom_call.1} parent=5 // pred_region
        // Predicated region
        $region33: #{tpu_custom_call.1} parent=31 // pred_check
          %p205 = pneg %p38
        $region34: #{tpu_custom_call.1} parent=31 // pred_check_branch
          %207 = sbr.rel (%p205) target = $region36
        $region35: #{tpu_custom_call.1} parent=31 // pred_region
          %s208 = sand.u32 %s28, 1
          %s209 = scalar_lea.sflag [#allocation3], %s208
          %s210 = sand.u32 %s28, 1
          %s211 = smul.addr %s210, 48
          %s212 = scalar_lea.vmem [#allocation2], %s211
          %s213 = smul.u32 3, %s18
          %s215 = ssub.s32 768, 768
          %216 = vsyncadd %s209, %s215
          %s217 = smul.addr %s213, 2
          %s218 = smul.addr %s217, 128
          %s219 = scalar_lea.hbm %s0, %s218
          %s220 = sshll.u32 %s212, 4
          %s221 = int_to_ptr.vmem [resolvable:$true] %s220
          %226 = dma.hbm_to_vmem [thread:$0]  %s219, 768, %s221, %s209, 128, 128, 8
        $region36: #{tpu_custom_call.1} parent=31 // pred_fallthru
          _
      $region32: #{tpu_custom_call.1} parent=5 // pred_fallthru
        _
      %p227 = scmp.le.s32.totalorder 1, %s18
      %p228 = scmp.lt.s32.totalorder %s18, 3
      %p229 = pnand %p227, %p228
      %p230 = pneg %p229
      // Predicated region
      $region37: #{tpu_custom_call.1} parent=5 // pred_check
        _
      $region38: #{tpu_custom_call.1} parent=5 // pred_check_branch
        %232 = sbr.rel (%p229) target = $region40
      $region39: #{tpu_custom_call.1} parent=5 // pred_region
        %s233 = ssub.s32 %s18, 1
        %s234 = sand.u32 %s31, 1
        %s235 = scalar_lea.sflag [#allocation3], %s234
        %s236 = sand.u32 %s31, 1
        %s237 = smul.addr %s236, 48
        %s238 = scalar_lea.vmem [#allocation2], %s237
        // Predicated region
        $region41: #{tpu_custom_call.1} parent=39 // pred_check
          %p239 = pneg %p44
        $region42: #{tpu_custom_call.1} parent=39 // pred_check_branch
          %241 = sbr.rel (%p239) target = $region44
        $region43: #{tpu_custom_call.1} parent=39 // pred_region
          %242 = dma.done %s235, 768
        $region44: #{tpu_custom_call.1} parent=39 // pred_fallthru
          _
        // Predicated region
        $region45: #{tpu_custom_call.1} parent=39 // pred_check
          %p243 = pneg %p65
        $region46: #{tpu_custom_call.1} parent=39 // pred_check_branch
          %245 = sbr.rel (%p243) target = $region48
        $region47: #{tpu_custom_call.1} parent=39 // pred_region
          %246 = dma.done [#allocation6], 512
        $region48: #{tpu_custom_call.1} parent=39 // pred_fallthru
          _
        // Predicated region
        $region49: #{tpu_custom_call.1} parent=39 // pred_check
          %p247 = pneg %p107
        $region50: #{tpu_custom_call.1} parent=39 // pred_check_branch
          %249 = sbr.rel (%p247) target = $region52
        $region51: #{tpu_custom_call.1} parent=39 // pred_region
          %250 = dma.done [#allocation6], 512
        $region52: #{tpu_custom_call.1} parent=39 // pred_fallthru
          _
        %s251 = sand.u32 %s31, 1
        %s252 = scalar_lea.sflag [#allocation3], %s251
        %s253 = sand.u32 %s31, 1
        %s254 = smul.addr %s253, 48
        %s255 = scalar_lea.vmem [#allocation2], %s254
        %p256 = pneg %p44
        %p257 = pneg %p41
        %p258 = pneg %p65
        %p259 = pneg %p62
        %p260 = pneg %p86
        %p261 = pneg %p83
        %p262 = pneg %p107
        %p263 = pneg %p104
        %p264 = pneg %p128
        %p265 = pneg %p125
        %p266 = pneg %p154
        %p267 = pneg %p151
        %s268 = sand.u32 %s141, 1
        %s269 = scalar_lea.sflag [#allocation4], %s268
        %s270 = sand.u32 %s141, 1
        %s271 = smul.addr %s270, 48
        %s272 = scalar_lea.vmem [#allocation8], %s271
        %s273 = smul.u32 3, %s23
        %s274 = smul.u32 3, %s23
        %v275 = vld [vmem:[%s238] sm:$0xff]
        %v276 = vld [vmem:[%s238 + $0x8] sm:$0xff]
        %v277 = vld [vmem:[%s238 + $0x10] sm:$0xff]
        %v278 = vld [vmem:[%s238 + $0x18] sm:$0xff]
        %v279 = vld [vmem:[%s238 + $0x20] sm:$0xff]
        %v280 = vld [vmem:[%s238 + $0x28] sm:$0xff]
        %v281 = vld [vmem:[#allocation5] sm:$0xff]
        %v282 = vld [vmem:[#allocation5 + $0x8] sm:$0xff]
        %v283 = vld [vmem:[#allocation5 + $0x10] sm:$0xff]
        %v284 = vld [vmem:[#allocation5 + $0x18] sm:$0xff]
        %v285 = vld [vmem:[%s2] sm:$0x1]
        %v287 = vlaneseq
        %v288 = vshrl.u32 %v287, 7
        %v289 = vsub.s32 0, %v288
        %v290 = vrot.slane %v285, %v289
        %vm292 = vcmask 261120
        %v294 = vsel %vm292, %v275, 0
        %v297 = vsel %vm292, %v276, 0
        %v300 = vsel %vm292, %v277, 0
        %v303 = vsel %vm292, %v278, 0
        %v306 = vsel %vm292, %v279, 0
        %v309 = vsel %vm292, %v280, 0
        %311 = vmatprep.subr.mxu0 0.0
        %312 = vmatpush1.msra.mxu0 %v281
        %313 = vmatprep.subr.mxu0 0.0
        %314 = vmatpush1.msra.mxu0 %v282
        %315 = vmatprep.subr.mxu0 0.0
        %316 = vmatpush1.msra.mxu0 %v283
        %317 = vmatprep.subr.mxu0 0.0
        %318 = vmatpush1.msra.mxu0 %v284
        %319 = vmatprep.subr.mxu0 0.0
        %320 = vmatpush1.msra.mxu0 0.0
        %321 = vmatprep.subr.mxu0 0.0
        %322 = vmatpush1.msra.mxu0 0.0
        %323 = vmatprep.subr.mxu0 0.0
        %324 = vmatpush1.msra.mxu0 0.0
        %325 = vmatprep.subr.mxu0 0.0
        %326 = vmatpush1.msra.mxu0 0.0
        %327 = vmatprep.subr.mxu0 0.0
        %328 = vmatpush1.msra.mxu0 0.0
        %329 = vmatprep.subr.mxu0 0.0
        %330 = vmatpush1.msra.mxu0 0.0
        %331 = vmatprep.subr.mxu0 0.0
        %332 = vmatpush1.msra.mxu0 0.0
        %333 = vmatprep.subr.mxu0 0.0
        %334 = vmatpush1.msra.mxu0 0.0
        %335 = vmatprep.subr.mxu0 0.0
        %336 = vmatpush1.msra.mxu0 0.0
        %337 = vmatprep.subr.mxu0 0.0
        %338 = vmatpush1.msra.mxu0 0.0
        %339 = vmatprep.subr.mxu0 0.0
        %340 = vmatpush1.msra.mxu0 0.0
        %341 = vmatprep.subr.mxu0 0.0
        %342 = vmatpush1.msra.mxu0 0.0
        %343 = vmatprep.subr.mxu0 0.0
        %344 = vmatpush1.msra.mxu0 0.0
        %345 = vmatprep.subr.mxu0 0.0
        %346 = vmatpush1.msra.mxu0 0.0
        %347 = vmatprep.subr.mxu0 0.0
        %348 = vmatpush1.msra.mxu0 0.0
        %349 = vmatprep.subr.mxu0 0.0
        %350 = vmatpush1.msra.mxu0 0.0
        %351 = vmatprep.subr.mxu0 0.0
        %352 = vmatpush1.msra.mxu0 0.0
        %353 = vmatprep.subr.mxu0 0.0
        %354 = vmatpush1.msra.mxu0 0.0
        %355 = vmatprep.subr.mxu0 0.0
        %356 = vmatpush1.msra.mxu0 0.0
        %357 = vmatprep.subr.mxu0 0.0
        %358 = vmatpush1.msra.mxu0 0.0
        %359 = vmatprep.subr.mxu0 0.0
        %360 = vmatpush1.msra.mxu0 0.0
        %361 = vmatprep.subr.mxu0 0.0
        %362 = vmatpush1.msra.mxu0 0.0
        %363 = vmatprep.subr.mxu0 0.0
        %364 = vmatpush1.msra.mxu0 0.0
        %365 = vmatprep.subr.mxu0 0.0
        %366 = vmatpush1.msra.mxu0 0.0
        %367 = vmatprep.subr.mxu0 0.0
        %368 = vmatpush1.msra.mxu0 0.0
        %369 = vmatprep.subr.mxu0 0.0
        %370 = vmatpush1.msra.mxu0 0.0
        %371 = vmatprep.subr.mxu0 0.0
        %372 = vmatpush1.msra.mxu0 0.0
        %373 = vmatprep.subr.mxu0 0.0
        %374 = vmatpush1.msra.mxu0 0.0
        %375 = vmatprep.mubr.f32.mxu0 0.0
        %376 = vmatmul.mubr.f32.gmra.mrb[0].mxu0 %v294
        %v377 = vpop.f32.mrb[0].mxu0
        %v378 = vadd.f32 %v290, %v377
        %v379 = vpop.f32.mrb[0].mxu0
        %380 = vmatprep.mubr.f32.mxu0 0.0
        %381 = vmatmul.mubr.f32.gmra.mrb[0].mxu0 %v297
        %v382 = vpop.f32.mrb[0].mxu0
        %v383 = vadd.f32 %v290, %v382
        %v384 = vpop.f32.mrb[0].mxu0
        %385 = vmatprep.mubr.f32.mxu0 0.0
        %386 = vmatmul.mubr.f32.gmra.mrb[0].mxu0 %v300
        %v387 = vpop.f32.mrb[0].mxu0
        %v388 = vadd.f32 %v290, %v387
        %v389 = vpop.f32.mrb[0].mxu0
        %390 = vmatprep.mubr.f32.mxu0 0.0
        %391 = vmatmul.mubr.f32.gmra.mrb[0].mxu0 %v303
        %v392 = vpop.f32.mrb[0].mxu0
        %v393 = vadd.f32 %v290, %v392
        %v394 = vpop.f32.mrb[0].mxu0
        %395 = vmatprep.mubr.f32.mxu0 0.0
        %396 = vmatmul.mubr.f32.gmra.mrb[0].mxu0 %v306
        %v397 = vpop.f32.mrb[0].mxu0
        %v398 = vadd.f32 %v290, %v397
        %v399 = vpop.f32.mrb[0].mxu0
        %400 = vmatprep.mubr.f32.mxu0 0.0
        %401 = vmatmul.mubr.f32.gmra.mrb[0].mxu0 %v309
        %v402 = vpop.f32.mrb[0].mxu0
        %v403 = vadd.f32 %v290, %v402
        %v404 = vpop.f32.mrb[0].mxu0
        %405 = vdwg.mxu0
        %v406 = vmul.f32 %v378, 0.35355338
        %v407 = vmul.f32 %v383, 0.35355338
        %v408 = vmul.f32 %v388, 0.35355338
        %v409 = vmul.f32 %v393, 0.35355338
        %v410 = vmul.f32 %v398, 0.35355338
        %v411 = vmul.f32 %v403, 0.35355338
        %414 = vrot.lane.b32.xlu0 %v378, 96
        %v415 = vpop.permute.xlu0 %414
        %416 = vrot.lane.b32.xlu0 %v383, 96
        %v417 = vpop.permute.xlu0 %416
        %vm418 = vcmask 64512
        %v420 = vsel %vm418, %v406, 0
        %v423 = vsel %vm418, %v407, 0
        %v425 = vsel %vm418, %v415, 0
        %v427 = vsel %vm418, %v417, 0
        %429 = vmatprep.subr.mxu0 0.0
        %430 = vmatpush1.xpose.msra.mxu0 %v425
        %431 = vmatprep.subr.mxu0 0.0
        %432 = vmatpush1.xpose.msra.mxu0 %v427
        %433 = vmatprep.subr.mxu0 0.0
        %434 = vmatpush1.xpose.msra.mxu0 0.0
        %435 = vmatprep.subr.mxu0 0.0
        %436 = vmatpush1.xpose.msra.mxu0 0.0
        %437 = vmatprep.subr.mxu0 0.0
        %438 = vmatpush1.xpose.msra.mxu0 0.0
        %439 = vmatprep.subr.mxu0 0.0
        %440 = vmatpush1.xpose.msra.mxu0 0.0
        %441 = vmatprep.subr.mxu0 0.0
        %442 = vmatpush1.xpose.msra.mxu0 0.0
        %443 = vmatprep.subr.mxu0 0.0
        %444 = vmatpush1.xpose.msra.mxu0 0.0
        %445 = vmatprep.subr.mxu0 0.0
        %446 = vmatpush1.xpose.msra.mxu0 0.0
        %447 = vmatprep.subr.mxu0 0.0
        %448 = vmatpush1.xpose.msra.mxu0 0.0
        %449 = vmatprep.subr.mxu0 0.0
        %450 = vmatpush1.xpose.msra.mxu0 0.0
        %451 = vmatprep.subr.mxu0 0.0
        %452 = vmatpush1.xpose.msra.mxu0 0.0
        %453 = vmatprep.subr.mxu0 0.0
        %454 = vmatpush1.xpose.msra.mxu0 0.0
        %455 = vmatprep.subr.mxu0 0.0
        %456 = vmatpush1.xpose.msra.mxu0 0.0
        %457 = vmatprep.subr.mxu0 0.0
        %458 = vmatpush1.xpose.msra.mxu0 0.0
        %459 = vmatprep.subr.mxu0 0.0
        %460 = vmatpush1.xpose.msra.mxu0 0.0
        %461 = vmatprep.subr.mxu0 0.0
        %462 = vmatpush1.xpose.msra.mxu0 0.0
        %463 = vmatprep.subr.mxu0 0.0
        %464 = vmatpush1.xpose.msra.mxu0 0.0
        %465 = vmatprep.subr.mxu0 0.0
        %466 = vmatpush1.xpose.msra.mxu0 0.0
        %467 = vmatprep.subr.mxu0 0.0
        %468 = vmatpush1.xpose.msra.mxu0 0.0
        %469 = vmatprep.subr.mxu0 0.0
        %470 = vmatpush1.xpose.msra.mxu0 0.0
        %471 = vmatprep.subr.mxu0 0.0
        %472 = vmatpush1.xpose.msra.mxu0 0.0
        %473 = vmatprep.subr.mxu0 0.0
        %474 = vmatpush1.xpose.msra.mxu0 0.0
        %475 = vmatprep.subr.mxu0 0.0
        %476 = vmatpush1.xpose.msra.mxu0 0.0
        %477 = vmatprep.subr.mxu0 0.0
        %478 = vmatpush1.xpose.msra.mxu0 0.0
        %479 = vmatprep.subr.mxu0 0.0
        %480 = vmatpush1.xpose.msra.mxu0 0.0
        %481 = vmatprep.subr.mxu0 0.0
        %482 = vmatpush1.xpose.msra.mxu0 0.0
        %483 = vmatprep.subr.mxu0 0.0
        %484 = vmatpush1.xpose.msra.mxu0 0.0
        %485 = vmatprep.subr.mxu0 0.0
        %486 = vmatpush1.xpose.msra.mxu0 0.0
        %487 = vmatprep.subr.mxu0 0.0
        %488 = vmatpush1.xpose.msra.mxu0 0.0
        %489 = vmatprep.subr.mxu0 0.0
        %490 = vmatpush1.xpose.msra.mxu0 0.0
        %491 = vmatprep.subr.mxu0 0.0
        %492 = vmatpush1.xpose.msra.mxu0 0.0
        %493 = vmatprep.mubr.f32.mxu0 0.0
        %494 = vmatmul.mubr.f32.gmra.mrb[0].mxu0 %v420
        %v495 = vpop.f32.mrb[0].mxu0
        %v496 = vadd.f32 0.0, %v495
        %v497 = vpop.f32.mrb[0].mxu0
        %498 = vmatprep.mubr.f32.mxu0 0.0
        %499 = vmatmul.mubr.f32.gmra.mrb[0].mxu0 %v423
        %v500 = vpop.f32.mrb[0].mxu0
        %v501 = vadd.f32 0.0, %v500
        %v502 = vpop.f32.mrb[0].mxu0
        %503 = vdwg.mxu0
        %506 = vrot.lane.b32.xlu0 %v388, 96
        %v507 = vpop.permute.xlu0 %506
        %508 = vrot.lane.b32.xlu0 %v393, 96
        %v509 = vpop.permute.xlu0 %508
        %v511 = vsel %vm418, %v408, 0
        %v514 = vsel %vm418, %v409, 0
        %v516 = vsel %vm418, %v507, 0
        %v518 = vsel %vm418, %v509, 0
        %520 = vmatprep.subr.mxu0 0.0
        %521 = vmatpush1.xpose.msra.mxu0 %v516
        %522 = vmatprep.subr.mxu0 0.0
        %523 = vmatpush1.xpose.msra.mxu0 %v518
        %524 = vmatprep.subr.mxu0 0.0
        %525 = vmatpush1.xpose.msra.mxu0 0.0
        %526 = vmatprep.subr.mxu0 0.0
        %527 = vmatpush1.xpose.msra.mxu0 0.0
        %528 = vmatprep.subr.mxu0 0.0
        %529 = vmatpush1.xpose.msra.mxu0 0.0
        %530 = vmatprep.subr.mxu0 0.0
        %531 = vmatpush1.xpose.msra.mxu0 0.0
        %532 = vmatprep.subr.mxu0 0.0
        %533 = vmatpush1.xpose.msra.mxu0 0.0
        %534 = vmatprep.subr.mxu0 0.0
        %535 = vmatpush1.xpose.msra.mxu0 0.0
        %536 = vmatprep.subr.mxu0 0.0
        %537 = vmatpush1.xpose.msra.mxu0 0.0
        %538 = vmatprep.subr.mxu0 0.0
        %539 = vmatpush1.xpose.msra.mxu0 0.0
        %540 = vmatprep.subr.mxu0 0.0
        %541 = vmatpush1.xpose.msra.mxu0 0.0
        %542 = vmatprep.subr.mxu0 0.0
        %543 = vmatpush1.xpose.msra.mxu0 0.0
        %544 = vmatprep.subr.mxu0 0.0
        %545 = vmatpush1.xpose.msra.mxu0 0.0
        %546 = vmatprep.subr.mxu0 0.0
        %547 = vmatpush1.xpose.msra.mxu0 0.0
        %548 = vmatprep.subr.mxu0 0.0
        %549 = vmatpush1.xpose.msra.mxu0 0.0
        %550 = vmatprep.subr.mxu0 0.0
        %551 = vmatpush1.xpose.msra.mxu0 0.0
        %552 = vmatprep.subr.mxu0 0.0
        %553 = vmatpush1.xpose.msra.mxu0 0.0
        %554 = vmatprep.subr.mxu0 0.0
        %555 = vmatpush1.xpose.msra.mxu0 0.0
        %556 = vmatprep.subr.mxu0 0.0
        %557 = vmatpush1.xpose.msra.mxu0 0.0
        %558 = vmatprep.subr.mxu0 0.0
        %559 = vmatpush1.xpose.msra.mxu0 0.0
        %560 = vmatprep.subr.mxu0 0.0
        %561 = vmatpush1.xpose.msra.mxu0 0.0
        %562 = vmatprep.subr.mxu0 0.0
        %563 = vmatpush1.xpose.msra.mxu0 0.0
        %564 = vmatprep.subr.mxu0 0.0
        %565 = vmatpush1.xpose.msra.mxu0 0.0
        %566 = vmatprep.subr.mxu0 0.0
        %567 = vmatpush1.xpose.msra.mxu0 0.0
        %568 = vmatprep.subr.mxu0 0.0
        %569 = vmatpush1.xpose.msra.mxu0 0.0
        %570 = vmatprep.subr.mxu0 0.0
        %571 = vmatpush1.xpose.msra.mxu0 0.0
        %572 = vmatprep.subr.mxu0 0.0
        %573 = vmatpush1.xpose.msra.mxu0 0.0
        %574 = vmatprep.subr.mxu0 0.0
        %575 = vmatpush1.xpose.msra.mxu0 0.0
        %576 = vmatprep.subr.mxu0 0.0
        %577 = vmatpush1.xpose.msra.mxu0 0.0
        %578 = vmatprep.subr.mxu0 0.0
        %579 = vmatpush1.xpose.msra.mxu0 0.0
        %580 = vmatprep.subr.mxu0 0.0
        %581 = vmatpush1.xpose.msra.mxu0 0.0
        %582 = vmatprep.subr.mxu0 0.0
        %583 = vmatpush1.xpose.msra.mxu0 0.0
        %584 = vmatprep.mubr.f32.mxu0 0.0
        %585 = vmatmul.mubr.f32.gmra.mrb[0].mxu0 %v511
        %v586 = vpop.f32.mrb[0].mxu0
        %v587 = vadd.f32 0.0, %v586
        %v588 = vpop.f32.mrb[0].mxu0
        %589 = vmatprep.mubr.f32.mxu0 0.0
        %590 = vmatmul.mubr.f32.gmra.mrb[0].mxu0 %v514
        %v591 = vpop.f32.mrb[0].mxu0
        %v592 = vadd.f32 0.0, %v591
        %v593 = vpop.f32.mrb[0].mxu0
        %594 = vdwg.mxu0
        %597 = vrot.lane.b32.xlu0 %v398, 96
        %v598 = vpop.permute.xlu0 %597
        %599 = vrot.lane.b32.xlu0 %v403, 96
        %v600 = vpop.permute.xlu0 %599
        %v602 = vsel %vm418, %v410, 0
        %v605 = vsel %vm418, %v411, 0
        %v607 = vsel %vm418, %v598, 0
        %v609 = vsel %vm418, %v600, 0
        %611 = vmatprep.subr.mxu0 0.0
        %612 = vmatpush1.xpose.msra.mxu0 %v607
        %613 = vmatprep.subr.mxu0 0.0
        %614 = vmatpush1.xpose.msra.mxu0 %v609
        %615 = vmatprep.subr.mxu0 0.0
        %616 = vmatpush1.xpose.msra.mxu0 0.0
        %617 = vmatprep.subr.mxu0 0.0
        %618 = vmatpush1.xpose.msra.mxu0 0.0
        %619 = vmatprep.subr.mxu0 0.0
        %620 = vmatpush1.xpose.msra.mxu0 0.0
        %621 = vmatprep.subr.mxu0 0.0
        %622 = vmatpush1.xpose.msra.mxu0 0.0
        %623 = vmatprep.subr.mxu0 0.0
        %624 = vmatpush1.xpose.msra.mxu0 0.0
        %625 = vmatprep.subr.mxu0 0.0
        %626 = vmatpush1.xpose.msra.mxu0 0.0
        %627 = vmatprep.subr.mxu0 0.0
        %628 = vmatpush1.xpose.msra.mxu0 0.0
        %629 = vmatprep.subr.mxu0 0.0
        %630 = vmatpush1.xpose.msra.mxu0 0.0
        %631 = vmatprep.subr.mxu0 0.0
        %632 = vmatpush1.xpose.msra.mxu0 0.0
        %633 = vmatprep.subr.mxu0 0.0
        %634 = vmatpush1.xpose.msra.mxu0 0.0
        %635 = vmatprep.subr.mxu0 0.0
        %636 = vmatpush1.xpose.msra.mxu0 0.0
        %637 = vmatprep.subr.mxu0 0.0
        %638 = vmatpush1.xpose.msra.mxu0 0.0
        %639 = vmatprep.subr.mxu0 0.0
        %640 = vmatpush1.xpose.msra.mxu0 0.0
        %641 = vmatprep.subr.mxu0 0.0
        %642 = vmatpush1.xpose.msra.mxu0 0.0
        %643 = vmatprep.subr.mxu0 0.0
        %644 = vmatpush1.xpose.msra.mxu0 0.0
        %645 = vmatprep.subr.mxu0 0.0
        %646 = vmatpush1.xpose.msra.mxu0 0.0
        %647 = vmatprep.subr.mxu0 0.0
        %648 = vmatpush1.xpose.msra.mxu0 0.0
        %649 = vmatprep.subr.mxu0 0.0
        %650 = vmatpush1.xpose.msra.mxu0 0.0
        %651 = vmatprep.subr.mxu0 0.0
        %652 = vmatpush1.xpose.msra.mxu0 0.0
        %653 = vmatprep.subr.mxu0 0.0
        %654 = vmatpush1.xpose.msra.mxu0 0.0
        %655 = vmatprep.subr.mxu0 0.0
        %656 = vmatpush1.xpose.msra.mxu0 0.0
        %657 = vmatprep.subr.mxu0 0.0
        %658 = vmatpush1.xpose.msra.mxu0 0.0
        %659 = vmatprep.subr.mxu0 0.0
        %660 = vmatpush1.xpose.msra.mxu0 0.0
        %661 = vmatprep.subr.mxu0 0.0
        %662 = vmatpush1.xpose.msra.mxu0 0.0
        %663 = vmatprep.subr.mxu0 0.0
        %664 = vmatpush1.xpose.msra.mxu0 0.0
        %665 = vmatprep.subr.mxu0 0.0
        %666 = vmatpush1.xpose.msra.mxu0 0.0
        %667 = vmatprep.subr.mxu0 0.0
        %668 = vmatpush1.xpose.msra.mxu0 0.0
        %669 = vmatprep.subr.mxu0 0.0
        %670 = vmatpush1.xpose.msra.mxu0 0.0
        %671 = vmatprep.subr.mxu0 0.0
        %672 = vmatpush1.xpose.msra.mxu0 0.0
        %673 = vmatprep.subr.mxu0 0.0
        %674 = vmatpush1.xpose.msra.mxu0 0.0
        %675 = vmatprep.mubr.f32.mxu0 0.0
        %676 = vmatmul.mubr.f32.gmra.mrb[0].mxu0 %v602
        %v677 = vpop.f32.mrb[0].mxu0
        %v678 = vadd.f32 0.0, %v677
        %v679 = vpop.f32.mrb[0].mxu0
        %680 = vmatprep.mubr.f32.mxu0 0.0
        %681 = vmatmul.mubr.f32.gmra.mrb[0].mxu0 %v605
        %v682 = vpop.f32.mrb[0].mxu0
        %v683 = vadd.f32 0.0, %v682
        %v684 = vpop.f32.mrb[0].mxu0
        %685 = vdwg.mxu0
        %vm686 = vcmask 130048
        %v687 = vsel %vm686, %v496, -inf
        %688 = vmax.xlane.f32.xlu0 %v687
        %v689 = vpop.xlane.xlu0 %688
        %v690 = vsel %vm686, %v501, -inf
        %691 = vmax.xlane.f32.xlu0 %v690
        %v692 = vpop.xlane.xlu0 %691
        %v693 = vsel %vm686, %v587, -inf
        %694 = vmax.xlane.f32.xlu0 %v693
        %v695 = vpop.xlane.xlu0 %694
        %v696 = vsel %vm686, %v592, -inf
        %697 = vmax.xlane.f32.xlu0 %v696
        %v698 = vpop.xlane.xlu0 %697
        %v699 = vsel %vm686, %v678, -inf
        %700 = vmax.xlane.f32.xlu0 %v699
        %v701 = vpop.xlane.xlu0 %700
        %v702 = vsel %vm686, %v683, -inf
        %703 = vmax.xlane.f32.xlu0 %v702
        %v704 = vpop.xlane.xlu0 %703
        %v705 = vsub.f32 %v496, %v689
        %v706 = vsub.f32 %v501, %v692
        %v707 = vsub.f32 %v587, %v695
        %v708 = vsub.f32 %v592, %v698
        %v709 = vsub.f32 %v678, %v701
        %v710 = vsub.f32 %v683, %v704
        %v711 = vmul.f32 %v705, 1.442695
        %v712 = vpow.pop %v711
        %v713 = vmul.f32 %v706, 1.442695
        %v714 = vpow.pop %v713
        %v715 = vmul.f32 %v707, 1.442695
        %v716 = vpow.pop %v715
        %v717 = vmul.f32 %v708, 1.442695
        %v718 = vpow.pop %v717
        %v719 = vmul.f32 %v709, 1.442695
        %v720 = vpow.pop %v719
        %v721 = vmul.f32 %v710, 1.442695
        %v722 = vpow.pop %v721
        %v723 = vsel %vm686, %v712, 0.0
        %724 = vadd.xlane.f32.xlu0 %v723
        %v725 = vpop.xlane.xlu0 %724
        %v726 = vsel %vm686, %v714, 0.0
        %727 = vadd.xlane.f32.xlu0 %v726
        %v728 = vpop.xlane.xlu0 %727
        %v729 = vsel %vm686, %v716, 0.0
        %730 = vadd.xlane.f32.xlu0 %v729
        %v731 = vpop.xlane.xlu0 %730
        %v732 = vsel %vm686, %v718, 0.0
        %733 = vadd.xlane.f32.xlu0 %v732
        %v734 = vpop.xlane.xlu0 %733
        %v735 = vsel %vm686, %v720, 0.0
        %736 = vadd.xlane.f32.xlu0 %v735
        %v737 = vpop.xlane.xlu0 %736
        %v738 = vsel %vm686, %v722, 0.0
        %739 = vadd.xlane.f32.xlu0 %v738
        %v740 = vpop.xlane.xlu0 %739
        %v741 = vrcp.pop %v725
        %v742 = vrcp.pop %v728
        %v743 = vrcp.pop %v731
        %v744 = vrcp.pop %v734
        %v745 = vrcp.pop %v737
        %v746 = vrcp.pop %v740
        %v747 = vmul.f32 %v712, %v741
        %v748 = vmul.f32 %v714, %v742
        %v749 = vmul.f32 %v716, %v743
        %v750 = vmul.f32 %v718, %v744
        %v751 = vmul.f32 %v720, %v745
        %v752 = vmul.f32 %v722, %v746
        %753 = vrot.lane.b32.xlu0 %v378, 64
        %v754 = vpop.permute.xlu0 %753
        %755 = vrot.lane.b32.xlu0 %v383, 64
        %v756 = vpop.permute.xlu0 %755
        %v760 = vsel %vm686, %v747, 0
        %v763 = vsel %vm686, %v748, 0
        %765 = vmatprep.subr.mxu0 0.0
        %766 = vmatpush1.msra.mxu0 %v754
        %767 = vmatprep.subr.mxu0 0.0
        %768 = vmatpush1.msra.mxu0 %v756
        %769 = vmatprep.subr.mxu0 0.0
        %770 = vmatpush1.msra.mxu0 0.0
        %771 = vmatprep.subr.mxu0 0.0
        %772 = vmatpush1.msra.mxu0 0.0
        %773 = vmatprep.subr.mxu0 0.0
        %774 = vmatpush1.msra.mxu0 0.0
        %775 = vmatprep.subr.mxu0 0.0
        %776 = vmatpush1.msra.mxu0 0.0
        %777 = vmatprep.subr.mxu0 0.0
        %778 = vmatpush1.msra.mxu0 0.0
        %779 = vmatprep.subr.mxu0 0.0
        %780 = vmatpush1.msra.mxu0 0.0
        %781 = vmatprep.subr.mxu0 0.0
        %782 = vmatpush1.msra.mxu0 0.0
        %783 = vmatprep.subr.mxu0 0.0
        %784 = vmatpush1.msra.mxu0 0.0
        %785 = vmatprep.subr.mxu0 0.0
        %786 = vmatpush1.msra.mxu0 0.0
        %787 = vmatprep.subr.mxu0 0.0
        %788 = vmatpush1.msra.mxu0 0.0
        %789 = vmatprep.subr.mxu0 0.0
        %790 = vmatpush1.msra.mxu0 0.0
        %791 = vmatprep.subr.mxu0 0.0
        %792 = vmatpush1.msra.mxu0 0.0
        %793 = vmatprep.subr.mxu0 0.0
        %794 = vmatpush1.msra.mxu0 0.0
        %795 = vmatprep.subr.mxu0 0.0
        %796 = vmatpush1.msra.mxu0 0.0
        %797 = vmatprep.subr.mxu0 0.0
        %798 = vmatpush1.msra.mxu0 0.0
        %799 = vmatprep.subr.mxu0 0.0
        %800 = vmatpush1.msra.mxu0 0.0
        %801 = vmatprep.subr.mxu0 0.0
        %802 = vmatpush1.msra.mxu0 0.0
        %803 = vmatprep.subr.mxu0 0.0
        %804 = vmatpush1.msra.mxu0 0.0
        %805 = vmatprep.subr.mxu0 0.0
        %806 = vmatpush1.msra.mxu0 0.0
        %807 = vmatprep.subr.mxu0 0.0
        %808 = vmatpush1.msra.mxu0 0.0
        %809 = vmatprep.subr.mxu0 0.0
        %810 = vmatpush1.msra.mxu0 0.0
        %811 = vmatprep.subr.mxu0 0.0
        %812 = vmatpush1.msra.mxu0 0.0
        %813 = vmatprep.subr.mxu0 0.0
        %814 = vmatpush1.msra.mxu0 0.0
        %815 = vmatprep.subr.mxu0 0.0
        %816 = vmatpush1.msra.mxu0 0.0
        %817 = vmatprep.subr.mxu0 0.0
        %818 = vmatpush1.msra.mxu0 0.0
        %819 = vmatprep.subr.mxu0 0.0
        %820 = vmatpush1.msra.mxu0 0.0
        %821 = vmatprep.subr.mxu0 0.0
        %822 = vmatpush1.msra.mxu0 0.0
        %823 = vmatprep.subr.mxu0 0.0
        %824 = vmatpush1.msra.mxu0 0.0
        %825 = vmatprep.subr.mxu0 0.0
        %826 = vmatpush1.msra.mxu0 0.0
        %827 = vmatprep.subr.mxu0 0.0
        %828 = vmatpush1.msra.mxu0 0.0
        %829 = vmatprep.mubr.f32.mxu0 0.0
        %830 = vmatmul.mubr.f32.gmra.mrb[0].mxu0 %v760
        %v831 = vpop.f32.mrb[0].mxu0
        %v832 = vadd.f32 0.0, %v831
        %v833 = vpop.f32.mrb[0].mxu0
        %834 = vmatprep.mubr.f32.mxu0 0.0
        %835 = vmatmul.mubr.f32.gmra.mrb[0].mxu0 %v763
        %v836 = vpop.f32.mrb[0].mxu0
        %v837 = vadd.f32 0.0, %v836
        %v838 = vpop.f32.mrb[0].mxu0
        %839 = vdwg.mxu0
        %840 = vrot.lane.b32.xlu0 %v388, 64
        %v841 = vpop.permute.xlu0 %840
        %842 = vrot.lane.b32.xlu0 %v393, 64
        %v843 = vpop.permute.xlu0 %842
        %v847 = vsel %vm686, %v749, 0
        %v850 = vsel %vm686, %v750, 0
        %852 = vmatprep.subr.mxu0 0.0
        %853 = vmatpush1.msra.mxu0 %v841
        %854 = vmatprep.subr.mxu0 0.0
        %855 = vmatpush1.msra.mxu0 %v843
        %856 = vmatprep.subr.mxu0 0.0
        %857 = vmatpush1.msra.mxu0 0.0
        %858 = vmatprep.subr.mxu0 0.0
        %859 = vmatpush1.msra.mxu0 0.0
        %860 = vmatprep.subr.mxu0 0.0
        %861 = vmatpush1.msra.mxu0 0.0
        %862 = vmatprep.subr.mxu0 0.0
        %863 = vmatpush1.msra.mxu0 0.0
        %864 = vmatprep.subr.mxu0 0.0
        %865 = vmatpush1.msra.mxu0 0.0
        %866 = vmatprep.subr.mxu0 0.0
        %867 = vmatpush1.msra.mxu0 0.0
        %868 = vmatprep.subr.mxu0 0.0
        %869 = vmatpush1.msra.mxu0 0.0
        %870 = vmatprep.subr.mxu0 0.0
        %871 = vmatpush1.msra.mxu0 0.0
        %872 = vmatprep.subr.mxu0 0.0
        %873 = vmatpush1.msra.mxu0 0.0
        %874 = vmatprep.subr.mxu0 0.0
        %875 = vmatpush1.msra.mxu0 0.0
        %876 = vmatprep.subr.mxu0 0.0
        %877 = vmatpush1.msra.mxu0 0.0
        %878 = vmatprep.subr.mxu0 0.0
        %879 = vmatpush1.msra.mxu0 0.0
        %880 = vmatprep.subr.mxu0 0.0
        %881 = vmatpush1.msra.mxu0 0.0
        %882 = vmatprep.subr.mxu0 0.0
        %883 = vmatpush1.msra.mxu0 0.0
        %884 = vmatprep.subr.mxu0 0.0
        %885 = vmatpush1.msra.mxu0 0.0
        %886 = vmatprep.subr.mxu0 0.0
        %887 = vmatpush1.msra.mxu0 0.0
        %888 = vmatprep.subr.mxu0 0.0
        %889 = vmatpush1.msra.mxu0 0.0
        %890 = vmatprep.subr.mxu0 0.0
        %891 = vmatpush1.msra.mxu0 0.0
        %892 = vmatprep.subr.mxu0 0.0
        %893 = vmatpush1.msra.mxu0 0.0
        %894 = vmatprep.subr.mxu0 0.0
        %895 = vmatpush1.msra.mxu0 0.0
        %896 = vmatprep.subr.mxu0 0.0
        %897 = vmatpush1.msra.mxu0 0.0
        %898 = vmatprep.subr.mxu0 0.0
        %899 = vmatpush1.msra.mxu0 0.0
        %900 = vmatprep.subr.mxu0 0.0
        %901 = vmatpush1.msra.mxu0 0.0
        %902 = vmatprep.subr.mxu0 0.0
        %903 = vmatpush1.msra.mxu0 0.0
        %904 = vmatprep.subr.mxu0 0.0
        %905 = vmatpush1.msra.mxu0 0.0
        %906 = vmatprep.subr.mxu0 0.0
        %907 = vmatpush1.msra.mxu0 0.0
        %908 = vmatprep.subr.mxu0 0.0
        %909 = vmatpush1.msra.mxu0 0.0
        %910 = vmatprep.subr.mxu0 0.0
        %911 = vmatpush1.msra.mxu0 0.0
        %912 = vmatprep.subr.mxu0 0.0
        %913 = vmatpush1.msra.mxu0 0.0
        %914 = vmatprep.subr.mxu0 0.0
        %915 = vmatpush1.msra.mxu0 0.0
        %916 = vmatprep.mubr.f32.mxu0 0.0
        %917 = vmatmul.mubr.f32.gmra.mrb[0].mxu0 %v847
        %v918 = vpop.f32.mrb[0].mxu0
        %v919 = vadd.f32 0.0, %v918
        %v920 = vpop.f32.mrb[0].mxu0
        %921 = vmatprep.mubr.f32.mxu0 0.0
        %922 = vmatmul.mubr.f32.gmra.mrb[0].mxu0 %v850
        %v923 = vpop.f32.mrb[0].mxu0
        %v924 = vadd.f32 0.0, %v923
        %v925 = vpop.f32.mrb[0].mxu0
        %926 = vdwg.mxu0
        %927 = vrot.lane.b32.xlu0 %v398, 64
        %v928 = vpop.permute.xlu0 %927
        %929 = vrot.lane.b32.xlu0 %v403, 64
        %v930 = vpop.permute.xlu0 %929
        %v934 = vsel %vm686, %v751, 0
        %v937 = vsel %vm686, %v752, 0
        %939 = vmatprep.subr.mxu0 0.0
        %940 = vmatpush1.msra.mxu0 %v928
        %941 = vmatprep.subr.mxu0 0.0
        %942 = vmatpush1.msra.mxu0 %v930
        %943 = vmatprep.subr.mxu0 0.0
        %944 = vmatpush1.msra.mxu0 0.0
        %945 = vmatprep.subr.mxu0 0.0
        %946 = vmatpush1.msra.mxu0 0.0
        %947 = vmatprep.subr.mxu0 0.0
        %948 = vmatpush1.msra.mxu0 0.0
        %949 = vmatprep.subr.mxu0 0.0
        %950 = vmatpush1.msra.mxu0 0.0
        %951 = vmatprep.subr.mxu0 0.0
        %952 = vmatpush1.msra.mxu0 0.0
        %953 = vmatprep.subr.mxu0 0.0
        %954 = vmatpush1.msra.mxu0 0.0
        %955 = vmatprep.subr.mxu0 0.0
        %956 = vmatpush1.msra.mxu0 0.0
        %957 = vmatprep.subr.mxu0 0.0
        %958 = vmatpush1.msra.mxu0 0.0
        %959 = vmatprep.subr.mxu0 0.0
        %960 = vmatpush1.msra.mxu0 0.0
        %961 = vmatprep.subr.mxu0 0.0
        %962 = vmatpush1.msra.mxu0 0.0
        %963 = vmatprep.subr.mxu0 0.0
        %964 = vmatpush1.msra.mxu0 0.0
        %965 = vmatprep.subr.mxu0 0.0
        %966 = vmatpush1.msra.mxu0 0.0
        %967 = vmatprep.subr.mxu0 0.0
        %968 = vmatpush1.msra.mxu0 0.0
        %969 = vmatprep.subr.mxu0 0.0
        %970 = vmatpush1.msra.mxu0 0.0
        %971 = vmatprep.subr.mxu0 0.0
        %972 = vmatpush1.msra.mxu0 0.0
        %973 = vmatprep.subr.mxu0 0.0
        %974 = vmatpush1.msra.mxu0 0.0
        %975 = vmatprep.subr.mxu0 0.0
        %976 = vmatpush1.msra.mxu0 0.0
        %977 = vmatprep.subr.mxu0 0.0
        %978 = vmatpush1.msra.mxu0 0.0
        %979 = vmatprep.subr.mxu0 0.0
        %980 = vmatpush1.msra.mxu0 0.0
        %981 = vmatprep.subr.mxu0 0.0
        %982 = vmatpush1.msra.mxu0 0.0
        %983 = vmatprep.subr.mxu0 0.0
        %984 = vmatpush1.msra.mxu0 0.0
        %985 = vmatprep.subr.mxu0 0.0
        %986 = vmatpush1.msra.mxu0 0.0
        %987 = vmatprep.subr.mxu0 0.0
        %988 = vmatpush1.msra.mxu0 0.0
        %989 = vmatprep.subr.mxu0 0.0
        %990 = vmatpush1.msra.mxu0 0.0
        %991 = vmatprep.subr.mxu0 0.0
        %992 = vmatpush1.msra.mxu0 0.0
        %993 = vmatprep.subr.mxu0 0.0
        %994 = vmatpush1.msra.mxu0 0.0
        %995 = vmatprep.subr.mxu0 0.0
        %996 = vmatpush1.msra.mxu0 0.0
        %997 = vmatprep.subr.mxu0 0.0
        %998 = vmatpush1.msra.mxu0 0.0
        %999 = vmatprep.subr.mxu0 0.0
        %1000 = vmatpush1.msra.mxu0 0.0
        %1001 = vmatprep.subr.mxu0 0.0
        %1002 = vmatpush1.msra.mxu0 0.0
        %1003 = vmatprep.mubr.f32.mxu0 0.0
        %1004 = vmatmul.mubr.f32.gmra.mrb[0].mxu0 %v934
        %v1005 = vpop.f32.mrb[0].mxu0
        %v1006 = vadd.f32 0.0, %v1005
        %v1007 = vpop.f32.mrb[0].mxu0
        %1008 = vmatprep.mubr.f32.mxu0 0.0
        %1009 = vmatmul.mubr.f32.gmra.mrb[0].mxu0 %v937
        %v1010 = vpop.f32.mrb[0].mxu0
        %v1011 = vadd.f32 0.0, %v1010
        %v1012 = vpop.f32.mrb[0].mxu0
        %1013 = vdwg.mxu0
        %1014 = vrot.lane.b32.xlu0 %v406, 120
        %v1015 = vpop.permute.xlu0 %1014
        %1016 = vrot.lane.b32.xlu0 %v407, 120
        %v1017 = vpop.permute.xlu0 %1016
        %1018 = vrot.lane.b32.xlu0 %v378, 88
        %v1019 = vpop.permute.xlu0 %1018
        %1020 = vrot.lane.b32.xlu0 %v383, 88
        %v1021 = vpop.permute.xlu0 %1020
        %v1022 = vsel %vm418, %v1015, 0
        %v1024 = vsel %vm418, %v1017, 0
        %v1026 = vsel %vm418, %v1019, 0
        %v1028 = vsel %vm418, %v1021, 0
        %1030 = vmatprep.subr.mxu0 0.0
        %1031 = vmatpush1.xpose.msra.mxu0 %v1026
        %1032 = vmatprep.subr.mxu0 0.0
        %1033 = vmatpush1.xpose.msra.mxu0 %v1028
        %1034 = vmatprep.subr.mxu0 0.0
        %1035 = vmatpush1.xpose.msra.mxu0 0.0
        %1036 = vmatprep.subr.mxu0 0.0
        %1037 = vmatpush1.xpose.msra.mxu0 0.0
        %1038 = vmatprep.subr.mxu0 0.0
        %1039 = vmatpush1.xpose.msra.mxu0 0.0
        %1040 = vmatprep.subr.mxu0 0.0
        %1041 = vmatpush1.xpose.msra.mxu0 0.0
        %1042 = vmatprep.subr.mxu0 0.0
        %1043 = vmatpush1.xpose.msra.mxu0 0.0
        %1044 = vmatprep.subr.mxu0 0.0
        %1045 = vmatpush1.xpose.msra.mxu0 0.0
        %1046 = vmatprep.subr.mxu0 0.0
        %1047 = vmatpush1.xpose.msra.mxu0 0.0
        %1048 = vmatprep.subr.mxu0 0.0
        %1049 = vmatpush1.xpose.msra.mxu0 0.0
        %1050 = vmatprep.subr.mxu0 0.0
        %1051 = vmatpush1.xpose.msra.mxu0 0.0
        %1052 = vmatprep.subr.mxu0 0.0
        %1053 = vmatpush1.xpose.msra.mxu0 0.0
        %1054 = vmatprep.subr.mxu0 0.0
        %1055 = vmatpush1.xpose.msra.mxu0 0.0
        %1056 = vmatprep.subr.mxu0 0.0
        %1057 = vmatpush1.xpose.msra.mxu0 0.0
        %1058 = vmatprep.subr.mxu0 0.0
        %1059 = vmatpush1.xpose.msra.mxu0 0.0
        %1060 = vmatprep.subr.mxu0 0.0
        %1061 = vmatpush1.xpose.msra.mxu0 0.0
        %1062 = vmatprep.subr.mxu0 0.0
        %1063 = vmatpush1.xpose.msra.mxu0 0.0
        %1064 = vmatprep.subr.mxu0 0.0
        %1065 = vmatpush1.xpose.msra.mxu0 0.0
        %1066 = vmatprep.subr.mxu0 0.0
        %1067 = vmatpush1.xpose.msra.mxu0 0.0
        %1068 = vmatprep.subr.mxu0 0.0
        %1069 = vmatpush1.xpose.msra.mxu0 0.0
        %1070 = vmatprep.subr.mxu0 0.0
        %1071 = vmatpush1.xpose.msra.mxu0 0.0
        %1072 = vmatprep.subr.mxu0 0.0
        %1073 = vmatpush1.xpose.msra.mxu0 0.0
        %1074 = vmatprep.subr.mxu0 0.0
        %1075 = vmatpush1.xpose.msra.mxu0 0.0
        %1076 = vmatprep.subr.mxu0 0.0
        %1077 = vmatpush1.xpose.msra.mxu0 0.0
        %1078 = vmatprep.subr.mxu0 0.0
        %1079 = vmatpush1.xpose.msra.mxu0 0.0
        %1080 = vmatprep.subr.mxu0 0.0
        %1081 = vmatpush1.xpose.msra.mxu0 0.0
        %1082 = vmatprep.subr.mxu0 0.0
        %1083 = vmatpush1.xpose.msra.mxu0 0.0
        %1084 = vmatprep.subr.mxu0 0.0
        %1085 = vmatpush1.xpose.msra.mxu0 0.0
        %1086 = vmatprep.subr.mxu0 0.0
        %1087 = vmatpush1.xpose.msra.mxu0 0.0
        %1088 = vmatprep.subr.mxu0 0.0
        %1089 = vmatpush1.xpose.msra.mxu0 0.0
        %1090 = vmatprep.subr.mxu0 0.0
        %1091 = vmatpush1.xpose.msra.mxu0 0.0
        %1092 = vmatprep.subr.mxu0 0.0
        %1093 = vmatpush1.xpose.msra.mxu0 0.0
        %1094 = vmatprep.mubr.f32.mxu0 0.0
        %1095 = vmatmul.mubr.f32.gmra.mrb[0].mxu0 %v1022
        %v1096 = vpop.f32.mrb[0].mxu0
        %v1097 = vadd.f32 0.0, %v1096
        %v1098 = vpop.f32.mrb[0].mxu0
        %1099 = vmatprep.mubr.f32.mxu0 0.0
        %1100 = vmatmul.mubr.f32.gmra.mrb[0].mxu0 %v1024
        %v1101 = vpop.f32.mrb[0].mxu0
        %v1102 = vadd.f32 0.0, %v1101
        %v1103 = vpop.f32.mrb[0].mxu0
        %1104 = vdwg.mxu0
        %1105 = vrot.lane.b32.xlu0 %v408, 120
        %v1106 = vpop.permute.xlu0 %1105
        %1107 = vrot.lane.b32.xlu0 %v409, 120
        %v1108 = vpop.permute.xlu0 %1107
        %1109 = vrot.lane.b32.xlu0 %v388, 88
        %v1110 = vpop.permute.xlu0 %1109
        %1111 = vrot.lane.b32.xlu0 %v393, 88
        %v1112 = vpop.permute.xlu0 %1111
        %v1113 = vsel %vm418, %v1106, 0
        %v1115 = vsel %vm418, %v1108, 0
        %v1117 = vsel %vm418, %v1110, 0
        %v1119 = vsel %vm418, %v1112, 0
        %1121 = vmatprep.subr.mxu0 0.0
        %1122 = vmatpush1.xpose.msra.mxu0 %v1117
        %1123 = vmatprep.subr.mxu0 0.0
        %1124 = vmatpush1.xpose.msra.mxu0 %v1119
        %1125 = vmatprep.subr.mxu0 0.0
        %1126 = vmatpush1.xpose.msra.mxu0 0.0
        %1127 = vmatprep.subr.mxu0 0.0
        %1128 = vmatpush1.xpose.msra.mxu0 0.0
        %1129 = vmatprep.subr.mxu0 0.0
        %1130 = vmatpush1.xpose.msra.mxu0 0.0
        %1131 = vmatprep.subr.mxu0 0.0
        %1132 = vmatpush1.xpose.msra.mxu0 0.0
        %1133 = vmatprep.subr.mxu0 0.0
        %1134 = vmatpush1.xpose.msra.mxu0 0.0
        %1135 = vmatprep.subr.mxu0 0.0
        %1136 = vmatpush1.xpose.msra.mxu0 0.0
        %1137 = vmatprep.subr.mxu0 0.0
        %1138 = vmatpush1.xpose.msra.mxu0 0.0
        %1139 = vmatprep.subr.mxu0 0.0
        %1140 = vmatpush1.xpose.msra.mxu0 0.0
        %1141 = vmatprep.subr.mxu0 0.0
        %1142 = vmatpush1.xpose.msra.mxu0 0.0
        %1143 = vmatprep.subr.mxu0 0.0
        %1144 = vmatpush1.xpose.msra.mxu0 0.0
        %1145 = vmatprep.subr.mxu0 0.0
        %1146 = vmatpush1.xpose.msra.mxu0 0.0
        %1147 = vmatprep.subr.mxu0 0.0
        %1148 = vmatpush1.xpose.msra.mxu0 0.0
        %1149 = vmatprep.subr.mxu0 0.0
        %1150 = vmatpush1.xpose.msra.mxu0 0.0
        %1151 = vmatprep.subr.mxu0 0.0
        %1152 = vmatpush1.xpose.msra.mxu0 0.0
        %1153 = vmatprep.subr.mxu0 0.0
        %1154 = vmatpush1.xpose.msra.mxu0 0.0
        %1155 = vmatprep.subr.mxu0 0.0
        %1156 = vmatpush1.xpose.msra.mxu0 0.0
        %1157 = vmatprep.subr.mxu0 0.0
        %1158 = vmatpush1.xpose.msra.mxu0 0.0
        %1159 = vmatprep.subr.mxu0 0.0
        %1160 = vmatpush1.xpose.msra.mxu0 0.0
        %1161 = vmatprep.subr.mxu0 0.0
        %1162 = vmatpush1.xpose.msra.mxu0 0.0
        %1163 = vmatprep.subr.mxu0 0.0
        %1164 = vmatpush1.xpose.msra.mxu0 0.0
        %1165 = vmatprep.subr.mxu0 0.0
        %1166 = vmatpush1.xpose.msra.mxu0 0.0
        %1167 = vmatprep.subr.mxu0 0.0
        %1168 = vmatpush1.xpose.msra.mxu0 0.0
        %1169 = vmatprep.subr.mxu0 0.0
        %1170 = vmatpush1.xpose.msra.mxu0 0.0
        %1171 = vmatprep.subr.mxu0 0.0
        %1172 = vmatpush1.xpose.msra.mxu0 0.0
        %1173 = vmatprep.subr.mxu0 0.0
        %1174 = vmatpush1.xpose.msra.mxu0 0.0
        %1175 = vmatprep.subr.mxu0 0.0
        %1176 = vmatpush1.xpose.msra.mxu0 0.0
        %1177 = vmatprep.subr.mxu0 0.0
        %1178 = vmatpush1.xpose.msra.mxu0 0.0
        %1179 = vmatprep.subr.mxu0 0.0
        %1180 = vmatpush1.xpose.msra.mxu0 0.0
        %1181 = vmatprep.subr.mxu0 0.0
        %1182 = vmatpush1.xpose.msra.mxu0 0.0
        %1183 = vmatprep.subr.mxu0 0.0
        %1184 = vmatpush1.xpose.msra.mxu0 0.0
        %1185 = vmatprep.mubr.f32.mxu0 0.0
        %1186 = vmatmul.mubr.f32.gmra.mrb[0].mxu0 %v1113
        %v1187 = vpop.f32.mrb[0].mxu0
        %v1188 = vadd.f32 0.0, %v1187
        %v1189 = vpop.f32.mrb[0].mxu0
        %1190 = vmatprep.mubr.f32.mxu0 0.0
        %1191 = vmatmul.mubr.f32.gmra.mrb[0].mxu0 %v1115
        %v1192 = vpop.f32.mrb[0].mxu0
        %v1193 = vadd.f32 0.0, %v1192
        %v1194 = vpop.f32.mrb[0].mxu0
        %1195 = vdwg.mxu0
        %1196 = vrot.lane.b32.xlu0 %v410, 120
        %v1197 = vpop.permute.xlu0 %1196
        %1198 = vrot.lane.b32.xlu0 %v411, 120
        %v1199 = vpop.permute.xlu0 %1198
        %1200 = vrot.lane.b32.xlu0 %v398, 88
        %v1201 = vpop.permute.xlu0 %1200
        %1202 = vrot.lane.b32.xlu0 %v403, 88
        %v1203 = vpop.permute.xlu0 %1202
        %v1204 = vsel %vm418, %v1197, 0
        %v1206 = vsel %vm418, %v1199, 0
        %v1208 = vsel %vm418, %v1201, 0
        %v1210 = vsel %vm418, %v1203, 0
        %1212 = vmatprep.subr.mxu0 0.0
        %1213 = vmatpush1.xpose.msra.mxu0 %v1208
        %1214 = vmatprep.subr.mxu0 0.0
        %1215 = vmatpush1.xpose.msra.mxu0 %v1210
        %1216 = vmatprep.subr.mxu0 0.0
        %1217 = vmatpush1.xpose.msra.mxu0 0.0
        %1218 = vmatprep.subr.mxu0 0.0
        %1219 = vmatpush1.xpose.msra.mxu0 0.0
        %1220 = vmatprep.subr.mxu0 0.0
        %1221 = vmatpush1.xpose.msra.mxu0 0.0
        %1222 = vmatprep.subr.mxu0 0.0
        %1223 = vmatpush1.xpose.msra.mxu0 0.0
        %1224 = vmatprep.subr.mxu0 0.0
        %1225 = vmatpush1.xpose.msra.mxu0 0.0
        %1226 = vmatprep.subr.mxu0 0.0
        %1227 = vmatpush1.xpose.msra.mxu0 0.0
        %1228 = vmatprep.subr.mxu0 0.0
        %1229 = vmatpush1.xpose.msra.mxu0 0.0
        %1230 = vmatprep.subr.mxu0 0.0
        %1231 = vmatpush1.xpose.msra.mxu0 0.0
        %1232 = vmatprep.subr.mxu0 0.0
        %1233 = vmatpush1.xpose.msra.mxu0 0.0
        %1234 = vmatprep.subr.mxu0 0.0
        %1235 = vmatpush1.xpose.msra.mxu0 0.0
        %1236 = vmatprep.subr.mxu0 0.0
        %1237 = vmatpush1.xpose.msra.mxu0 0.0
        %1238 = vmatprep.subr.mxu0 0.0
        %1239 = vmatpush1.xpose.msra.mxu0 0.0
        %1240 = vmatprep.subr.mxu0 0.0
        %1241 = vmatpush1.xpose.msra.mxu0 0.0
        %1242 = vmatprep.subr.mxu0 0.0
        %1243 = vmatpush1.xpose.msra.mxu0 0.0
        %1244 = vmatprep.subr.mxu0 0.0
        %1245 = vmatpush1.xpose.msra.mxu0 0.0
        %1246 = vmatprep.subr.mxu0 0.0
        %1247 = vmatpush1.xpose.msra.mxu0 0.0
        %1248 = vmatprep.subr.mxu0 0.0
        %1249 = vmatpush1.xpose.msra.mxu0 0.0
        %1250 = vmatprep.subr.mxu0 0.0
        %1251 = vmatpush1.xpose.msra.mxu0 0.0
        %1252 = vmatprep.subr.mxu0 0.0
        %1253 = vmatpush1.xpose.msra.mxu0 0.0
        %1254 = vmatprep.subr.mxu0 0.0
        %1255 = vmatpush1.xpose.msra.mxu0 0.0
        %1256 = vmatprep.subr.mxu0 0.0
        %1257 = vmatpush1.xpose.msra.mxu0 0.0
        %1258 = vmatprep.subr.mxu0 0.0
        %1259 = vmatpush1.xpose.msra.mxu0 0.0
        %1260 = vmatprep.subr.mxu0 0.0
        %1261 = vmatpush1.xpose.msra.mxu0 0.0
        %1262 = vmatprep.subr.mxu0 0.0
        %1263 = vmatpush1.xpose.msra.mxu0 0.0
        %1264 = vmatprep.subr.mxu0 0.0
        %1265 = vmatpush1.xpose.msra.mxu0 0.0
        %1266 = vmatprep.subr.mxu0 0.0
        %1267 = vmatpush1.xpose.msra.mxu0 0.0
        %1268 = vmatprep.subr.mxu0 0.0
        %1269 = vmatpush1.xpose.msra.mxu0 0.0
        %1270 = vmatprep.subr.mxu0 0.0
        %1271 = vmatpush1.xpose.msra.mxu0 0.0
        %1272 = vmatprep.subr.mxu0 0.0
        %1273 = vmatpush1.xpose.msra.mxu0 0.0
        %1274 = vmatprep.subr.mxu0 0.0
        %1275 = vmatpush1.xpose.msra.mxu0 0.0
        %1276 = vmatprep.mubr.f32.mxu0 0.0
        %1277 = vmatmul.mubr.f32.gmra.mrb[0].mxu0 %v1204
        %v1278 = vpop.f32.mrb[0].mxu0
        %v1279 = vadd.f32 0.0, %v1278
        %v1280 = vpop.f32.mrb[0].mxu0
        %1281 = vmatprep.mubr.f32.mxu0 0.0
        %1282 = vmatmul.mubr.f32.gmra.mrb[0].mxu0 %v1206
        %v1283 = vpop.f32.mrb[0].mxu0
        %v1284 = vadd.f32 0.0, %v1283
        %v1285 = vpop.f32.mrb[0].mxu0
        %1286 = vdwg.mxu0
        %v1287 = vsel %vm686, %v1097, -inf
        %1288 = vmax.xlane.f32.xlu0 %v1287
        %v1289 = vpop.xlane.xlu0 %1288
        %v1290 = vsel %vm686, %v1102, -inf
        %1291 = vmax.xlane.f32.xlu0 %v1290
        %v1292 = vpop.xlane.xlu0 %1291
        %v1293 = vsel %vm686, %v1188, -inf
        %1294 = vmax.xlane.f32.xlu0 %v1293
        %v1295 = vpop.xlane.xlu0 %1294
        %v1296 = vsel %vm686, %v1193, -inf
        %1297 = vmax.xlane.f32.xlu0 %v1296
        %v1298 = vpop.xlane.xlu0 %1297
        %v1299 = vsel %vm686, %v1279, -inf
        %1300 = vmax.xlane.f32.xlu0 %v1299
        %v1301 = vpop.xlane.xlu0 %1300
        %v1302 = vsel %vm686, %v1284, -inf
        %1303 = vmax.xlane.f32.xlu0 %v1302
        %v1304 = vpop.xlane.xlu0 %1303
        %v1305 = vsub.f32 %v1097, %v1289
        %v1306 = vsub.f32 %v1102, %v1292
        %v1307 = vsub.f32 %v1188, %v1295
        %v1308 = vsub.f32 %v1193, %v1298
        %v1309 = vsub.f32 %v1279, %v1301
        %v1310 = vsub.f32 %v1284, %v1304
        %v1311 = vmul.f32 %v1305, 1.442695
        %v1312 = vpow.pop %v1311
        %v1313 = vmul.f32 %v1306, 1.442695
        %v1314 = vpow.pop %v1313
        %v1315 = vmul.f32 %v1307, 1.442695
        %v1316 = vpow.pop %v1315
        %v1317 = vmul.f32 %v1308, 1.442695
        %v1318 = vpow.pop %v1317
        %v1319 = vmul.f32 %v1309, 1.442695
        %v1320 = vpow.pop %v1319
        %v1321 = vmul.f32 %v1310, 1.442695
        %v1322 = vpow.pop %v1321
        %v1323 = vsel %vm686, %v1312, 0.0
        %1324 = vadd.xlane.f32.xlu0 %v1323
        %v1325 = vpop.xlane.xlu0 %1324
        %v1326 = vsel %vm686, %v1314, 0.0
        %1327 = vadd.xlane.f32.xlu0 %v1326
        %v1328 = vpop.xlane.xlu0 %1327
        %v1329 = vsel %vm686, %v1316, 0.0
        %1330 = vadd.xlane.f32.xlu0 %v1329
        %v1331 = vpop.xlane.xlu0 %1330
        %v1332 = vsel %vm686, %v1318, 0.0
        %1333 = vadd.xlane.f32.xlu0 %v1332
        %v1334 = vpop.xlane.xlu0 %1333
        %v1335 = vsel %vm686, %v1320, 0.0
        %1336 = vadd.xlane.f32.xlu0 %v1335
        %v1337 = vpop.xlane.xlu0 %1336
        %v1338 = vsel %vm686, %v1322, 0.0
        %1339 = vadd.xlane.f32.xlu0 %v1338
        %v1340 = vpop.xlane.xlu0 %1339
        %v1341 = vrcp.pop %v1325
        %v1342 = vrcp.pop %v1328
        %v1343 = vrcp.pop %v1331
        %v1344 = vrcp.pop %v1334
        %v1345 = vrcp.pop %v1337
        %v1346 = vrcp.pop %v1340
        %v1347 = vmul.f32 %v1312, %v1341
        %v1348 = vmul.f32 %v1314, %v1342
        %v1349 = vmul.f32 %v1316, %v1343
        %v1350 = vmul.f32 %v1318, %v1344
        %v1351 = vmul.f32 %v1320, %v1345
        %v1352 = vmul.f32 %v1322, %v1346
        %1353 = vrot.lane.b32.xlu0 %v378, 56
        %v1354 = vpop.permute.xlu0 %1353
        %1355 = vrot.lane.b32.xlu0 %v383, 56
        %v1356 = vpop.permute.xlu0 %1355
        %v1360 = vsel %vm686, %v1347, 0
        %v1363 = vsel %vm686, %v1348, 0
        %1365 = vmatprep.subr.mxu0 0.0
        %1366 = vmatpush1.msra.mxu0 %v1354
        %1367 = vmatprep.subr.mxu0 0.0
        %1368 = vmatpush1.msra.mxu0 %v1356
        %1369 = vmatprep.subr.mxu0 0.0
        %1370 = vmatpush1.msra.mxu0 0.0
        %1371 = vmatprep.subr.mxu0 0.0
        %1372 = vmatpush1.msra.mxu0 0.0
        %1373 = vmatprep.subr.mxu0 0.0
        %1374 = vmatpush1.msra.mxu0 0.0
        %1375 = vmatprep.subr.mxu0 0.0
        %1376 = vmatpush1.msra.mxu0 0.0
        %1377 = vmatprep.subr.mxu0 0.0
        %1378 = vmatpush1.msra.mxu0 0.0
        %1379 = vmatprep.subr.mxu0 0.0
        %1380 = vmatpush1.msra.mxu0 0.0
        %1381 = vmatprep.subr.mxu0 0.0
        %1382 = vmatpush1.msra.mxu0 0.0
        %1383 = vmatprep.subr.mxu0 0.0
        %1384 = vmatpush1.msra.mxu0 0.0
        %1385 = vmatprep.subr.mxu0 0.0
        %1386 = vmatpush1.msra.mxu0 0.0
        %1387 = vmatprep.subr.mxu0 0.0
        %1388 = vmatpush1.msra.mxu0 0.0
        %1389 = vmatprep.subr.mxu0 0.0
        %1390 = vmatpush1.msra.mxu0 0.0
        %1391 = vmatprep.subr.mxu0 0.0
        %1392 = vmatpush1.msra.mxu0 0.0
        %1393 = vmatprep.subr.mxu0 0.0
        %1394 = vmatpush1.msra.mxu0 0.0
        %1395 = vmatprep.subr.mxu0 0.0
        %1396 = vmatpush1.msra.mxu0 0.0
        %1397 = vmatprep.subr.mxu0 0.0
        %1398 = vmatpush1.msra.mxu0 0.0
        %1399 = vmatprep.subr.mxu0 0.0
        %1400 = vmatpush1.msra.mxu0 0.0
        %1401 = vmatprep.subr.mxu0 0.0
        %1402 = vmatpush1.msra.mxu0 0.0
        %1403 = vmatprep.subr.mxu0 0.0
        %1404 = vmatpush1.msra.mxu0 0.0
        %1405 = vmatprep.subr.mxu0 0.0
        %1406 = vmatpush1.msra.mxu0 0.0
        %1407 = vmatprep.subr.mxu0 0.0
        %1408 = vmatpush1.msra.mxu0 0.0
        %1409 = vmatprep.subr.mxu0 0.0
        %1410 = vmatpush1.msra.mxu0 0.0
        %1411 = vmatprep.subr.mxu0 0.0
        %1412 = vmatpush1.msra.mxu0 0.0
        %1413 = vmatprep.subr.mxu0 0.0
        %1414 = vmatpush1.msra.mxu0 0.0
        %1415 = vmatprep.subr.mxu0 0.0
        %1416 = vmatpush1.msra.mxu0 0.0
        %1417 = vmatprep.subr.mxu0 0.0
        %1418 = vmatpush1.msra.mxu0 0.0
        %1419 = vmatprep.subr.mxu0 0.0
        %1420 = vmatpush1.msra.mxu0 0.0
        %1421 = vmatprep.subr.mxu0 0.0
        %1422 = vmatpush1.msra.mxu0 0.0
        %1423 = vmatprep.subr.mxu0 0.0
        %1424 = vmatpush1.msra.mxu0 0.0
        %1425 = vmatprep.subr.mxu0 0.0
        %1426 = vmatpush1.msra.mxu0 0.0
        %1427 = vmatprep.subr.mxu0 0.0
        %1428 = vmatpush1.msra.mxu0 0.0
        %1429 = vmatprep.mubr.f32.mxu0 0.0
        %1430 = vmatmul.mubr.f32.gmra.mrb[0].mxu0 %v1360
        %v1431 = vpop.f32.mrb[0].mxu0
        %v1432 = vadd.f32 0.0, %v1431
        %v1433 = vpop.f32.mrb[0].mxu0
        %1434 = vmatprep.mubr.f32.mxu0 0.0
        %1435 = vmatmul.mubr.f32.gmra.mrb[0].mxu0 %v1363
        %v1436 = vpop.f32.mrb[0].mxu0
        %v1437 = vadd.f32 0.0, %v1436
        %v1438 = vpop.f32.mrb[0].mxu0
        %1439 = vdwg.mxu0
        %1440 = vrot.lane.b32.xlu0 %v388, 56
        %v1441 = vpop.permute.xlu0 %1440
        %1442 = vrot.lane.b32.xlu0 %v393, 56
        %v1443 = vpop.permute.xlu0 %1442
        %v1447 = vsel %vm686, %v1349, 0
        %v1450 = vsel %vm686, %v1350, 0
        %1452 = vmatprep.subr.mxu0 0.0
        %1453 = vmatpush1.msra.mxu0 %v1441
        %1454 = vmatprep.subr.mxu0 0.0
        %1455 = vmatpush1.msra.mxu0 %v1443
        %1456 = vmatprep.subr.mxu0 0.0
        %1457 = vmatpush1.msra.mxu0 0.0
        %1458 = vmatprep.subr.mxu0 0.0
        %1459 = vmatpush1.msra.mxu0 0.0
        %1460 = vmatprep.subr.mxu0 0.0
        %1461 = vmatpush1.msra.mxu0 0.0
        %1462 = vmatprep.subr.mxu0 0.0
        %1463 = vmatpush1.msra.mxu0 0.0
        %1464 = vmatprep.subr.mxu0 0.0
        %1465 = vmatpush1.msra.mxu0 0.0
        %1466 = vmatprep.subr.mxu0 0.0
        %1467 = vmatpush1.msra.mxu0 0.0
        %1468 = vmatprep.subr.mxu0 0.0
        %1469 = vmatpush1.msra.mxu0 0.0
        %1470 = vmatprep.subr.mxu0 0.0
        %1471 = vmatpush1.msra.mxu0 0.0
        %1472 = vmatprep.subr.mxu0 0.0
        %1473 = vmatpush1.msra.mxu0 0.0
        %1474 = vmatprep.subr.mxu0 0.0
        %1475 = vmatpush1.msra.mxu0 0.0
        %1476 = vmatprep.subr.mxu0 0.0
        %1477 = vmatpush1.msra.mxu0 0.0
        %1478 = vmatprep.subr.mxu0 0.0
        %1479 = vmatpush1.msra.mxu0 0.0
        %1480 = vmatprep.subr.mxu0 0.0
        %1481 = vmatpush1.msra.mxu0 0.0
        %1482 = vmatprep.subr.mxu0 0.0
        %1483 = vmatpush1.msra.mxu0 0.0
        %1484 = vmatprep.subr.mxu0 0.0
        %1485 = vmatpush1.msra.mxu0 0.0
        %1486 = vmatprep.subr.mxu0 0.0
        %1487 = vmatpush1.msra.mxu0 0.0
        %1488 = vmatprep.subr.mxu0 0.0
        %1489 = vmatpush1.msra.mxu0 0.0
        %1490 = vmatprep.subr.mxu0 0.0
        %1491 = vmatpush1.msra.mxu0 0.0
        %1492 = vmatprep.subr.mxu0 0.0
        %1493 = vmatpush1.msra.mxu0 0.0
        %1494 = vmatprep.subr.mxu0 0.0
        %1495 = vmatpush1.msra.mxu0 0.0
        %1496 = vmatprep.subr.mxu0 0.0
        %1497 = vmatpush1.msra.mxu0 0.0
        %1498 = vmatprep.subr.mxu0 0.0
        %1499 = vmatpush1.msra.mxu0 0.0
        %1500 = vmatprep.subr.mxu0 0.0
        %1501 = vmatpush1.msra.mxu0 0.0
        %1502 = vmatprep.subr.mxu0 0.0
        %1503 = vmatpush1.msra.mxu0 0.0
        %1504 = vmatprep.subr.mxu0 0.0
        %1505 = vmatpush1.msra.mxu0 0.0
        %1506 = vmatprep.subr.mxu0 0.0
        %1507 = vmatpush1.msra.mxu0 0.0
        %1508 = vmatprep.subr.mxu0 0.0
        %1509 = vmatpush1.msra.mxu0 0.0
        %1510 = vmatprep.subr.mxu0 0.0
        %1511 = vmatpush1.msra.mxu0 0.0
        %1512 = vmatprep.subr.mxu0 0.0
        %1513 = vmatpush1.msra.mxu0 0.0
        %1514 = vmatprep.subr.mxu0 0.0
        %1515 = vmatpush1.msra.mxu0 0.0
        %1516 = vmatprep.mubr.f32.mxu0 0.0
        %1517 = vmatmul.mubr.f32.gmra.mrb[0].mxu0 %v1447
        %v1518 = vpop.f32.mrb[0].mxu0
        %v1519 = vadd.f32 0.0, %v1518
        %v1520 = vpop.f32.mrb[0].mxu0
        %1521 = vmatprep.mubr.f32.mxu0 0.0
        %1522 = vmatmul.mubr.f32.gmra.mrb[0].mxu0 %v1450
        %v1523 = vpop.f32.mrb[0].mxu0
        %v1524 = vadd.f32 0.0, %v1523
        %v1525 = vpop.f32.mrb[0].mxu0
        %1526 = vdwg.mxu0
        %1527 = vrot.lane.b32.xlu0 %v398, 56
        %v1528 = vpop.permute.xlu0 %1527
        %1529 = vrot.lane.b32.xlu0 %v403, 56
        %v1530 = vpop.permute.xlu0 %1529
        %v1534 = vsel %vm686, %v1351, 0
        %v1537 = vsel %vm686, %v1352, 0
        %1539 = vmatprep.subr.mxu0 0.0
        %1540 = vmatpush1.msra.mxu0 %v1528
        %1541 = vmatprep.subr.mxu0 0.0
        %1542 = vmatpush1.msra.mxu0 %v1530
        %1543 = vmatprep.subr.mxu0 0.0
        %1544 = vmatpush1.msra.mxu0 0.0
        %1545 = vmatprep.subr.mxu0 0.0
        %1546 = vmatpush1.msra.mxu0 0.0
        %1547 = vmatprep.subr.mxu0 0.0
        %1548 = vmatpush1.msra.mxu0 0.0
        %1549 = vmatprep.subr.mxu0 0.0
        %1550 = vmatpush1.msra.mxu0 0.0
        %1551 = vmatprep.subr.mxu0 0.0
        %1552 = vmatpush1.msra.mxu0 0.0
        %1553 = vmatprep.subr.mxu0 0.0
        %1554 = vmatpush1.msra.mxu0 0.0
        %1555 = vmatprep.subr.mxu0 0.0
        %1556 = vmatpush1.msra.mxu0 0.0
        %1557 = vmatprep.subr.mxu0 0.0
        %1558 = vmatpush1.msra.mxu0 0.0
        %1559 = vmatprep.subr.mxu0 0.0
        %1560 = vmatpush1.msra.mxu0 0.0
        %1561 = vmatprep.subr.mxu0 0.0
        %1562 = vmatpush1.msra.mxu0 0.0
        %1563 = vmatprep.subr.mxu0 0.0
        %1564 = vmatpush1.msra.mxu0 0.0
        %1565 = vmatprep.subr.mxu0 0.0
        %1566 = vmatpush1.msra.mxu0 0.0
        %1567 = vmatprep.subr.mxu0 0.0
        %1568 = vmatpush1.msra.mxu0 0.0
        %1569 = vmatprep.subr.mxu0 0.0
        %1570 = vmatpush1.msra.mxu0 0.0
        %1571 = vmatprep.subr.mxu0 0.0
        %1572 = vmatpush1.msra.mxu0 0.0
        %1573 = vmatprep.subr.mxu0 0.0
        %1574 = vmatpush1.msra.mxu0 0.0
        %1575 = vmatprep.subr.mxu0 0.0
        %1576 = vmatpush1.msra.mxu0 0.0
        %1577 = vmatprep.subr.mxu0 0.0
        %1578 = vmatpush1.msra.mxu0 0.0
        %1579 = vmatprep.subr.mxu0 0.0
        %1580 = vmatpush1.msra.mxu0 0.0
        %1581 = vmatprep.subr.mxu0 0.0
        %1582 = vmatpush1.msra.mxu0 0.0
        %1583 = vmatprep.subr.mxu0 0.0
        %1584 = vmatpush1.msra.mxu0 0.0
        %1585 = vmatprep.subr.mxu0 0.0
        %1586 = vmatpush1.msra.mxu0 0.0
        %1587 = vmatprep.subr.mxu0 0.0
        %1588 = vmatpush1.msra.mxu0 0.0
        %1589 = vmatprep.subr.mxu0 0.0
        %1590 = vmatpush1.msra.mxu0 0.0
        %1591 = vmatprep.subr.mxu0 0.0
        %1592 = vmatpush1.msra.mxu0 0.0
        %1593 = vmatprep.subr.mxu0 0.0
        %1594 = vmatpush1.msra.mxu0 0.0
        %1595 = vmatprep.subr.mxu0 0.0
        %1596 = vmatpush1.msra.mxu0 0.0
        %1597 = vmatprep.subr.mxu0 0.0
        %1598 = vmatpush1.msra.mxu0 0.0
        %1599 = vmatprep.subr.mxu0 0.0
        %1600 = vmatpush1.msra.mxu0 0.0
        %1601 = vmatprep.subr.mxu0 0.0
        %1602 = vmatpush1.msra.mxu0 0.0
        %1603 = vmatprep.mubr.f32.mxu0 0.0
        %1604 = vmatmul.mubr.f32.gmra.mrb[0].mxu0 %v1534
        %v1605 = vpop.f32.mrb[0].mxu0
        %v1606 = vadd.f32 0.0, %v1605
        %v1607 = vpop.f32.mrb[0].mxu0
        %1608 = vmatprep.mubr.f32.mxu0 0.0
        %1609 = vmatmul.mubr.f32.gmra.mrb[0].mxu0 %v1537
        %v1610 = vpop.f32.mrb[0].mxu0
        %v1611 = vadd.f32 0.0, %v1610
        %v1612 = vpop.f32.mrb[0].mxu0
        %1613 = vdwg.mxu0
        %1614 = vrot.lane.b32.xlu0 %v406, 112
        %v1615 = vpop.permute.xlu0 %1614
        %1616 = vrot.lane.b32.xlu0 %v407, 112
        %v1617 = vpop.permute.xlu0 %1616
        %1618 = vrot.lane.b32.xlu0 %v378, 80
        %v1619 = vpop.permute.xlu0 %1618
        %1620 = vrot.lane.b32.xlu0 %v383, 80
        %v1621 = vpop.permute.xlu0 %1620
        %v1622 = vsel %vm418, %v1615, 0
        %v1624 = vsel %vm418, %v1617, 0
        %v1626 = vsel %vm418, %v1619, 0
        %v1628 = vsel %vm418, %v1621, 0
        %1630 = vmatprep.subr.mxu0 0.0
        %1631 = vmatpush1.xpose.msra.mxu0 %v1626
        %1632 = vmatprep.subr.mxu0 0.0
        %1633 = vmatpush1.xpose.msra.mxu0 %v1628
        %1634 = vmatprep.subr.mxu0 0.0
        %1635 = vmatpush1.xpose.msra.mxu0 0.0
        %1636 = vmatprep.subr.mxu0 0.0
        %1637 = vmatpush1.xpose.msra.mxu0 0.0
        %1638 = vmatprep.subr.mxu0 0.0
        %1639 = vmatpush1.xpose.msra.mxu0 0.0
        %1640 = vmatprep.subr.mxu0 0.0
        %1641 = vmatpush1.xpose.msra.mxu0 0.0
        %1642 = vmatprep.subr.mxu0 0.0
        %1643 = vmatpush1.xpose.msra.mxu0 0.0
        %1644 = vmatprep.subr.mxu0 0.0
        %1645 = vmatpush1.xpose.msra.mxu0 0.0
        %1646 = vmatprep.subr.mxu0 0.0
        %1647 = vmatpush1.xpose.msra.mxu0 0.0
        %1648 = vmatprep.subr.mxu0 0.0
        %1649 = vmatpush1.xpose.msra.mxu0 0.0
        %1650 = vmatprep.subr.mxu0 0.0
        %1651 = vmatpush1.xpose.msra.mxu0 0.0
        %1652 = vmatprep.subr.mxu0 0.0
        %1653 = vmatpush1.xpose.msra.mxu0 0.0
        %1654 = vmatprep.subr.mxu0 0.0
        %1655 = vmatpush1.xpose.msra.mxu0 0.0
        %1656 = vmatprep.subr.mxu0 0.0
        %1657 = vmatpush1.xpose.msra.mxu0 0.0
        %1658 = vmatprep.subr.mxu0 0.0
        %1659 = vmatpush1.xpose.msra.mxu0 0.0
        %1660 = vmatprep.subr.mxu0 0.0
        %1661 = vmatpush1.xpose.msra.mxu0 0.0
        %1662 = vmatprep.subr.mxu0 0.0
        %1663 = vmatpush1.xpose.msra.mxu0 0.0
        %1664 = vmatprep.subr.mxu0 0.0
        %1665 = vmatpush1.xpose.msra.mxu0 0.0
        %1666 = vmatprep.subr.mxu0 0.0
        %1667 = vmatpush1.xpose.msra.mxu0 0.0
        %1668 = vmatprep.subr.mxu0 0.0
        %1669 = vmatpush1.xpose.msra.mxu0 0.0
        %1670 = vmatprep.subr.mxu0 0.0
        %1671 = vmatpush1.xpose.msra.mxu0 0.0
        %1672 = vmatprep.subr.mxu0 0.0
        %1673 = vmatpush1.xpose.msra.mxu0 0.0
        %1674 = vmatprep.subr.mxu0 0.0
        %1675 = vmatpush1.xpose.msra.mxu0 0.0
        %1676 = vmatprep.subr.mxu0 0.0
        %1677 = vmatpush1.xpose.msra.mxu0 0.0
        %1678 = vmatprep.subr.mxu0 0.0
        %1679 = vmatpush1.xpose.msra.mxu0 0.0
        %1680 = vmatprep.subr.mxu0 0.0
        %1681 = vmatpush1.xpose.msra.mxu0 0.0
        %1682 = vmatprep.subr.mxu0 0.0
        %1683 = vmatpush1.xpose.msra.mxu0 0.0
        %1684 = vmatprep.subr.mxu0 0.0
        %1685 = vmatpush1.xpose.msra.mxu0 0.0
        %1686 = vmatprep.subr.mxu0 0.0
        %1687 = vmatpush1.xpose.msra.mxu0 0.0
        %1688 = vmatprep.subr.mxu0 0.0
        %1689 = vmatpush1.xpose.msra.mxu0 0.0
        %1690 = vmatprep.subr.mxu0 0.0
        %1691 = vmatpush1.xpose.msra.mxu0 0.0
        %1692 = vmatprep.subr.mxu0 0.0
        %1693 = vmatpush1.xpose.msra.mxu0 0.0
        %1694 = vmatprep.mubr.f32.mxu0 0.0
        %1695 = vmatmul.mubr.f32.gmra.mrb[0].mxu0 %v1622
        %v1696 = vpop.f32.mrb[0].mxu0
        %v1697 = vadd.f32 0.0, %v1696
        %v1698 = vpop.f32.mrb[0].mxu0
        %1699 = vmatprep.mubr.f32.mxu0 0.0
        %1700 = vmatmul.mubr.f32.gmra.mrb[0].mxu0 %v1624
        %v1701 = vpop.f32.mrb[0].mxu0
        %v1702 = vadd.f32 0.0, %v1701
        %v1703 = vpop.f32.mrb[0].mxu0
        %1704 = vdwg.mxu0
        %1705 = vrot.lane.b32.xlu0 %v408, 112
        %v1706 = vpop.permute.xlu0 %1705
        %1707 = vrot.lane.b32.xlu0 %v409, 112
        %v1708 = vpop.permute.xlu0 %1707
        %1709 = vrot.lane.b32.xlu0 %v388, 80
        %v1710 = vpop.permute.xlu0 %1709
        %1711 = vrot.lane.b32.xlu0 %v393, 80
        %v1712 = vpop.permute.xlu0 %1711
        %v1713 = vsel %vm418, %v1706, 0
        %v1715 = vsel %vm418, %v1708, 0
        %v1717 = vsel %vm418, %v1710, 0
        %v1719 = vsel %vm418, %v1712, 0
        %1721 = vmatprep.subr.mxu0 0.0
        %1722 = vmatpush1.xpose.msra.mxu0 %v1717
        %1723 = vmatprep.subr.mxu0 0.0
        %1724 = vmatpush1.xpose.msra.mxu0 %v1719
        %1725 = vmatprep.subr.mxu0 0.0
        %1726 = vmatpush1.xpose.msra.mxu0 0.0
        %1727 = vmatprep.subr.mxu0 0.0
        %1728 = vmatpush1.xpose.msra.mxu0 0.0
        %1729 = vmatprep.subr.mxu0 0.0
        %1730 = vmatpush1.xpose.msra.mxu0 0.0
        %1731 = vmatprep.subr.mxu0 0.0
        %1732 = vmatpush1.xpose.msra.mxu0 0.0
        %1733 = vmatprep.subr.mxu0 0.0
        %1734 = vmatpush1.xpose.msra.mxu0 0.0
        %1735 = vmatprep.subr.mxu0 0.0
        %1736 = vmatpush1.xpose.msra.mxu0 0.0
        %1737 = vmatprep.subr.mxu0 0.0
        %1738 = vmatpush1.xpose.msra.mxu0 0.0
        %1739 = vmatprep.subr.mxu0 0.0
        %1740 = vmatpush1.xpose.msra.mxu0 0.0
        %1741 = vmatprep.subr.mxu0 0.0
        %1742 = vmatpush1.xpose.msra.mxu0 0.0
        %1743 = vmatprep.subr.mxu0 0.0
        %1744 = vmatpush1.xpose.msra.mxu0 0.0
        %1745 = vmatprep.subr.mxu0 0.0
        %1746 = vmatpush1.xpose.msra.mxu0 0.0
        %1747 = vmatprep.subr.mxu0 0.0
        %1748 = vmatpush1.xpose.msra.mxu0 0.0
        %1749 = vmatprep.subr.mxu0 0.0
        %1750 = vmatpush1.xpose.msra.mxu0 0.0
        %1751 = vmatprep.subr.mxu0 0.0
        %1752 = vmatpush1.xpose.msra.mxu0 0.0
        %1753 = vmatprep.subr.mxu0 0.0
        %1754 = vmatpush1.xpose.msra.mxu0 0.0
        %1755 = vmatprep.subr.mxu0 0.0
        %1756 = vmatpush1.xpose.msra.mxu0 0.0
        %1757 = vmatprep.subr.mxu0 0.0
        %1758 = vmatpush1.xpose.msra.mxu0 0.0
        %1759 = vmatprep.subr.mxu0 0.0
        %1760 = vmatpush1.xpose.msra.mxu0 0.0
        %1761 = vmatprep.subr.mxu0 0.0
        %1762 = vmatpush1.xpose.msra.mxu0 0.0
        %1763 = vmatprep.subr.mxu0 0.0
        %1764 = vmatpush1.xpose.msra.mxu0 0.0
        %1765 = vmatprep.subr.mxu0 0.0
        %1766 = vmatpush1.xpose.msra.mxu0 0.0
        %1767 = vmatprep.subr.mxu0 0.0
        %1768 = vmatpush1.xpose.msra.mxu0 0.0
        %1769 = vmatprep.subr.mxu0 0.0
        %1770 = vmatpush1.xpose.msra.mxu0 0.0
        %1771 = vmatprep.subr.mxu0 0.0
        %1772 = vmatpush1.xpose.msra.mxu0 0.0
        %1773 = vmatprep.subr.mxu0 0.0
        %1774 = vmatpush1.xpose.msra.mxu0 0.0
        %1775 = vmatprep.subr.mxu0 0.0
        %1776 = vmatpush1.xpose.msra.mxu0 0.0
        %1777 = vmatprep.subr.mxu0 0.0
        %1778 = vmatpush1.xpose.msra.mxu0 0.0
        %1779 = vmatprep.subr.mxu0 0.0
        %1780 = vmatpush1.xpose.msra.mxu0 0.0
        %1781 = vmatprep.subr.mxu0 0.0
        %1782 = vmatpush1.xpose.msra.mxu0 0.0
        %1783 = vmatprep.subr.mxu0 0.0
        %1784 = vmatpush1.xpose.msra.mxu0 0.0
        %1785 = vmatprep.mubr.f32.mxu0 0.0
        %1786 = vmatmul.mubr.f32.gmra.mrb[0].mxu0 %v1713
        %v1787 = vpop.f32.mrb[0].mxu0
        %v1788 = vadd.f32 0.0, %v1787
        %v1789 = vpop.f32.mrb[0].mxu0
        %1790 = vmatprep.mubr.f32.mxu0 0.0
        %1791 = vmatmul.mubr.f32.gmra.mrb[0].mxu0 %v1715
        %v1792 = vpop.f32.mrb[0].mxu0
        %v1793 = vadd.f32 0.0, %v1792
        %v1794 = vpop.f32.mrb[0].mxu0
        %1795 = vdwg.mxu0
        %1796 = vrot.lane.b32.xlu0 %v410, 112
        %v1797 = vpop.permute.xlu0 %1796
        %1798 = vrot.lane.b32.xlu0 %v411, 112
        %v1799 = vpop.permute.xlu0 %1798
        %1800 = vrot.lane.b32.xlu0 %v398, 80
        %v1801 = vpop.permute.xlu0 %1800
        %1802 = vrot.lane.b32.xlu0 %v403, 80
        %v1803 = vpop.permute.xlu0 %1802
        %v1804 = vsel %vm418, %v1797, 0
        %v1806 = vsel %vm418, %v1799, 0
        %v1808 = vsel %vm418, %v1801, 0
        %v1810 = vsel %vm418, %v1803, 0
        %1812 = vmatprep.subr.mxu0 0.0
        %1813 = vmatpush1.xpose.msra.mxu0 %v1808
        %1814 = vmatprep.subr.mxu0 0.0
        %1815 = vmatpush1.xpose.msra.mxu0 %v1810
        %1816 = vmatprep.subr.mxu0 0.0
        %1817 = vmatpush1.xpose.msra.mxu0 0.0
        %1818 = vmatprep.subr.mxu0 0.0
        %1819 = vmatpush1.xpose.msra.mxu0 0.0
        %1820 = vmatprep.subr.mxu0 0.0
        %1821 = vmatpush1.xpose.msra.mxu0 0.0
        %1822 = vmatprep.subr.mxu0 0.0
        %1823 = vmatpush1.xpose.msra.mxu0 0.0
        %1824 = vmatprep.subr.mxu0 0.0
        %1825 = vmatpush1.xpose.msra.mxu0 0.0
        %1826 = vmatprep.subr.mxu0 0.0
        %1827 = vmatpush1.xpose.msra.mxu0 0.0
        %1828 = vmatprep.subr.mxu0 0.0
        %1829 = vmatpush1.xpose.msra.mxu0 0.0
        %1830 = vmatprep.subr.mxu0 0.0
        %1831 = vmatpush1.xpose.msra.mxu0 0.0
        %1832 = vmatprep.subr.mxu0 0.0
        %1833 = vmatpush1.xpose.msra.mxu0 0.0
        %1834 = vmatprep.subr.mxu0 0.0
        %1835 = vmatpush1.xpose.msra.mxu0 0.0
        %1836 = vmatprep.subr.mxu0 0.0
        %1837 = vmatpush1.xpose.msra.mxu0 0.0
        %1838 = vmatprep.subr.mxu0 0.0
        %1839 = vmatpush1.xpose.msra.mxu0 0.0
        %1840 = vmatprep.subr.mxu0 0.0
        %1841 = vmatpush1.xpose.msra.mxu0 0.0
        %1842 = vmatprep.subr.mxu0 0.0
        %1843 = vmatpush1.xpose.msra.mxu0 0.0
        %1844 = vmatprep.subr.mxu0 0.0
        %1845 = vmatpush1.xpose.msra.mxu0 0.0
        %1846 = vmatprep.subr.mxu0 0.0
        %1847 = vmatpush1.xpose.msra.mxu0 0.0
        %1848 = vmatprep.subr.mxu0 0.0
        %1849 = vmatpush1.xpose.msra.mxu0 0.0
        %1850 = vmatprep.subr.mxu0 0.0
        %1851 = vmatpush1.xpose.msra.mxu0 0.0
        %1852 = vmatprep.subr.mxu0 0.0
        %1853 = vmatpush1.xpose.msra.mxu0 0.0
        %1854 = vmatprep.subr.mxu0 0.0
        %1855 = vmatpush1.xpose.msra.mxu0 0.0
        %1856 = vmatprep.subr.mxu0 0.0
        %1857 = vmatpush1.xpose.msra.mxu0 0.0
        %1858 = vmatprep.subr.mxu0 0.0
        %1859 = vmatpush1.xpose.msra.mxu0 0.0
        %1860 = vmatprep.subr.mxu0 0.0
        %1861 = vmatpush1.xpose.msra.mxu0 0.0
        %1862 = vmatprep.subr.mxu0 0.0
        %1863 = vmatpush1.xpose.msra.mxu0 0.0
        %1864 = vmatprep.subr.mxu0 0.0
        %1865 = vmatpush1.xpose.msra.mxu0 0.0
        %1866 = vmatprep.subr.mxu0 0.0
        %1867 = vmatpush1.xpose.msra.mxu0 0.0
        %1868 = vmatprep.subr.mxu0 0.0
        %1869 = vmatpush1.xpose.msra.mxu0 0.0
        %1870 = vmatprep.subr.mxu0 0.0
        %1871 = vmatpush1.xpose.msra.mxu0 0.0
        %1872 = vmatprep.subr.mxu0 0.0
        %1873 = vmatpush1.xpose.msra.mxu0 0.0
        %1874 = vmatprep.subr.mxu0 0.0
        %1875 = vmatpush1.xpose.msra.mxu0 0.0
        %1876 = vmatprep.mubr.f32.mxu0 0.0
        %1877 = vmatmul.mubr.f32.gmra.mrb[0].mxu0 %v1804
        %v1878 = vpop.f32.mrb[0].mxu0
        %v1879 = vadd.f32 0.0, %v1878
        %v1880 = vpop.f32.mrb[0].mxu0
        %1881 = vmatprep.mubr.f32.mxu0 0.0
        %1882 = vmatmul.mubr.f32.gmra.mrb[0].mxu0 %v1806
        %v1883 = vpop.f32.mrb[0].mxu0
        %v1884 = vadd.f32 0.0, %v1883
        %v1885 = vpop.f32.mrb[0].mxu0
        %1886 = vdwg.mxu0
        %v1887 = vsel %vm686, %v1697, -inf
        %1888 = vmax.xlane.f32.xlu0 %v1887
        %v1889 = vpop.xlane.xlu0 %1888
        %v1890 = vsel %vm686, %v1702, -inf
        %1891 = vmax.xlane.f32.xlu0 %v1890
        %v1892 = vpop.xlane.xlu0 %1891
        %v1893 = vsel %vm686, %v1788, -inf
        %1894 = vmax.xlane.f32.xlu0 %v1893
        %v1895 = vpop.xlane.xlu0 %1894
        %v1896 = vsel %vm686, %v1793, -inf
        %1897 = vmax.xlane.f32.xlu0 %v1896
        %v1898 = vpop.xlane.xlu0 %1897
        %v1899 = vsel %vm686, %v1879, -inf
        %1900 = vmax.xlane.f32.xlu0 %v1899
        %v1901 = vpop.xlane.xlu0 %1900
        %v1902 = vsel %vm686, %v1884, -inf
        %1903 = vmax.xlane.f32.xlu0 %v1902
        %v1904 = vpop.xlane.xlu0 %1903
        %v1905 = vsub.f32 %v1697, %v1889
        %v1906 = vsub.f32 %v1702, %v1892
        %v1907 = vsub.f32 %v1788, %v1895
        %v1908 = vsub.f32 %v1793, %v1898
        %v1909 = vsub.f32 %v1879, %v1901
        %v1910 = vsub.f32 %v1884, %v1904
        %v1911 = vmul.f32 %v1905, 1.442695
        %v1912 = vpow.pop %v1911
        %v1913 = vmul.f32 %v1906, 1.442695
        %v1914 = vpow.pop %v1913
        %v1915 = vmul.f32 %v1907, 1.442695
        %v1916 = vpow.pop %v1915
        %v1917 = vmul.f32 %v1908, 1.442695
        %v1918 = vpow.pop %v1917
        %v1919 = vmul.f32 %v1909, 1.442695
        %v1920 = vpow.pop %v1919
        %v1921 = vmul.f32 %v1910, 1.442695
        %v1922 = vpow.pop %v1921
        %v1923 = vsel %vm686, %v1912, 0.0
        %1924 = vadd.xlane.f32.xlu0 %v1923
        %v1925 = vpop.xlane.xlu0 %1924
        %v1926 = vsel %vm686, %v1914, 0.0
        %1927 = vadd.xlane.f32.xlu0 %v1926
        %v1928 = vpop.xlane.xlu0 %1927
        %v1929 = vsel %vm686, %v1916, 0.0
        %1930 = vadd.xlane.f32.xlu0 %v1929
        %v1931 = vpop.xlane.xlu0 %1930
        %v1932 = vsel %vm686, %v1918, 0.0
        %1933 = vadd.xlane.f32.xlu0 %v1932
        %v1934 = vpop.xlane.xlu0 %1933
        %v1935 = vsel %vm686, %v1920, 0.0
        %1936 = vadd.xlane.f32.xlu0 %v1935
        %v1937 = vpop.xlane.xlu0 %1936
        %v1938 = vsel %vm686, %v1922, 0.0
        %1939 = vadd.xlane.f32.xlu0 %v1938
        %v1940 = vpop.xlane.xlu0 %1939
        %v1941 = vrcp.pop %v1925
        %v1942 = vrcp.pop %v1928
        %v1943 = vrcp.pop %v1931
        %v1944 = vrcp.pop %v1934
        %v1945 = vrcp.pop %v1937
        %v1946 = vrcp.pop %v1940
        %v1947 = vmul.f32 %v1912, %v1941
        %v1948 = vmul.f32 %v1914, %v1942
        %v1949 = vmul.f32 %v1916, %v1943
        %v1950 = vmul.f32 %v1918, %v1944
        %v1951 = vmul.f32 %v1920, %v1945
        %v1952 = vmul.f32 %v1922, %v1946
        %1953 = vrot.lane.b32.xlu0 %v378, 48
        %v1954 = vpop.permute.xlu0 %1953
        %1955 = vrot.lane.b32.xlu0 %v383, 48
        %v1956 = vpop.permute.xlu0 %1955
        %v1960 = vsel %vm686, %v1947, 0
        %v1963 = vsel %vm686, %v1948, 0
        %1965 = vmatprep.subr.mxu0 0.0
        %1966 = vmatpush1.msra.mxu0 %v1954
        %1967 = vmatprep.subr.mxu0 0.0
        %1968 = vmatpush1.msra.mxu0 %v1956
        %1969 = vmatprep.subr.mxu0 0.0
        %1970 = vmatpush1.msra.mxu0 0.0
        %1971 = vmatprep.subr.mxu0 0.0
        %1972 = vmatpush1.msra.mxu0 0.0
        %1973 = vmatprep.subr.mxu0 0.0
        %1974 = vmatpush1.msra.mxu0 0.0
        %1975 = vmatprep.subr.mxu0 0.0
        %1976 = vmatpush1.msra.mxu0 0.0
        %1977 = vmatprep.subr.mxu0 0.0
        %1978 = vmatpush1.msra.mxu0 0.0
        %1979 = vmatprep.subr.mxu0 0.0
        %1980 = vmatpush1.msra.mxu0 0.0
        %1981 = vmatprep.subr.mxu0 0.0
        %1982 = vmatpush1.msra.mxu0 0.0
        %1983 = vmatprep.subr.mxu0 0.0
        %1984 = vmatpush1.msra.mxu0 0.0
        %1985 = vmatprep.subr.mxu0 0.0
        %1986 = vmatpush1.msra.mxu0 0.0
        %1987 = vmatprep.subr.mxu0 0.0
        %1988 = vmatpush1.msra.mxu0 0.0
        %1989 = vmatprep.subr.mxu0 0.0
        %1990 = vmatpush1.msra.mxu0 0.0
        %1991 = vmatprep.subr.mxu0 0.0
        %1992 = vmatpush1.msra.mxu0 0.0
        %1993 = vmatprep.subr.mxu0 0.0
        %1994 = vmatpush1.msra.mxu0 0.0
        %1995 = vmatprep.subr.mxu0 0.0
        %1996 = vmatpush1.msra.mxu0 0.0
        %1997 = vmatprep.subr.mxu0 0.0
        %1998 = vmatpush1.msra.mxu0 0.0
        %1999 = vmatprep.subr.mxu0 0.0
        %2000 = vmatpush1.msra.mxu0 0.0
        %2001 = vmatprep.subr.mxu0 0.0
        %2002 = vmatpush1.msra.mxu0 0.0
        %2003 = vmatprep.subr.mxu0 0.0
        %2004 = vmatpush1.msra.mxu0 0.0
        %2005 = vmatprep.subr.mxu0 0.0
        %2006 = vmatpush1.msra.mxu0 0.0
        %2007 = vmatprep.subr.mxu0 0.0
        %2008 = vmatpush1.msra.mxu0 0.0
        %2009 = vmatprep.subr.mxu0 0.0
        %2010 = vmatpush1.msra.mxu0 0.0
        %2011 = vmatprep.subr.mxu0 0.0
        %2012 = vmatpush1.msra.mxu0 0.0
        %2013 = vmatprep.subr.mxu0 0.0
        %2014 = vmatpush1.msra.mxu0 0.0
        %2015 = vmatprep.subr.mxu0 0.0
        %2016 = vmatpush1.msra.mxu0 0.0
        %2017 = vmatprep.subr.mxu0 0.0
        %2018 = vmatpush1.msra.mxu0 0.0
        %2019 = vmatprep.subr.mxu0 0.0
        %2020 = vmatpush1.msra.mxu0 0.0
        %2021 = vmatprep.subr.mxu0 0.0
        %2022 = vmatpush1.msra.mxu0 0.0
        %2023 = vmatprep.subr.mxu0 0.0
        %2024 = vmatpush1.msra.mxu0 0.0
        %2025 = vmatprep.subr.mxu0 0.0
        %2026 = vmatpush1.msra.mxu0 0.0
        %2027 = vmatprep.subr.mxu0 0.0
        %2028 = vmatpush1.msra.mxu0 0.0
        %2029 = vmatprep.mubr.f32.mxu0 0.0
        %2030 = vmatmul.mubr.f32.gmra.mrb[0].mxu0 %v1960
        %v2031 = vpop.f32.mrb[0].mxu0
        %v2032 = vadd.f32 0.0, %v2031
        %v2033 = vpop.f32.mrb[0].mxu0
        %2034 = vmatprep.mubr.f32.mxu0 0.0
        %2035 = vmatmul.mubr.f32.gmra.mrb[0].mxu0 %v1963
        %v2036 = vpop.f32.mrb[0].mxu0
        %v2037 = vadd.f32 0.0, %v2036
        %v2038 = vpop.f32.mrb[0].mxu0
        %2039 = vdwg.mxu0
        %2040 = vrot.lane.b32.xlu0 %v388, 48
        %v2041 = vpop.permute.xlu0 %2040
        %2042 = vrot.lane.b32.xlu0 %v393, 48
        %v2043 = vpop.permute.xlu0 %2042
        %v2047 = vsel %vm686, %v1949, 0
        %v2050 = vsel %vm686, %v1950, 0
        %2052 = vmatprep.subr.mxu0 0.0
        %2053 = vmatpush1.msra.mxu0 %v2041
        %2054 = vmatprep.subr.mxu0 0.0
        %2055 = vmatpush1.msra.mxu0 %v2043
        %2056 = vmatprep.subr.mxu0 0.0
        %2057 = vmatpush1.msra.mxu0 0.0
        %2058 = vmatprep.subr.mxu0 0.0
        %2059 = vmatpush1.msra.mxu0 0.0
        %2060 = vmatprep.subr.mxu0 0.0
        %2061 = vmatpush1.msra.mxu0 0.0
        %2062 = vmatprep.subr.mxu0 0.0
        %2063 = vmatpush1.msra.mxu0 0.0
        %2064 = vmatprep.subr.mxu0 0.0
        %2065 = vmatpush1.msra.mxu0 0.0
        %2066 = vmatprep.subr.mxu0 0.0
        %2067 = vmatpush1.msra.mxu0 0.0
        %2068 = vmatprep.subr.mxu0 0.0
        %2069 = vmatpush1.msra.mxu0 0.0
        %2070 = vmatprep.subr.mxu0 0.0
        %2071 = vmatpush1.msra.mxu0 0.0
        %2072 = vmatprep.subr.mxu0 0.0
        %2073 = vmatpush1.msra.mxu0 0.0
        %2074 = vmatprep.subr.mxu0 0.0
        %2075 = vmatpush1.msra.mxu0 0.0
        %2076 = vmatprep.subr.mxu0 0.0
        %2077 = vmatpush1.msra.mxu0 0.0
        %2078 = vmatprep.subr.mxu0 0.0
        %2079 = vmatpush1.msra.mxu0 0.0
        %2080 = vmatprep.subr.mxu0 0.0
        %2081 = vmatpush1.msra.mxu0 0.0
        %2082 = vmatprep.subr.mxu0 0.0
        %2083 = vmatpush1.msra.mxu0 0.0
        %2084 = vmatprep.subr.mxu0 0.0
        %2085 = vmatpush1.msra.mxu0 0.0
        %2086 = vmatprep.subr.mxu0 0.0
        %2087 = vmatpush1.msra.mxu0 0.0
        %2088 = vmatprep.subr.mxu0 0.0
        %2089 = vmatpush1.msra.mxu0 0.0
        %2090 = vmatprep.subr.mxu0 0.0
        %2091 = vmatpush1.msra.mxu0 0.0
        %2092 = vmatprep.subr.mxu0 0.0
        %2093 = vmatpush1.msra.mxu0 0.0
        %2094 = vmatprep.subr.mxu0 0.0
        %2095 = vmatpush1.msra.mxu0 0.0
        %2096 = vmatprep.subr.mxu0 0.0
        %2097 = vmatpush1.msra.mxu0 0.0
        %2098 = vmatprep.subr.mxu0 0.0
        %2099 = vmatpush1.msra.mxu0 0.0
        %2100 = vmatprep.subr.mxu0 0.0
        %2101 = vmatpush1.msra.mxu0 0.0
        %2102 = vmatprep.subr.mxu0 0.0
        %2103 = vmatpush1.msra.mxu0 0.0
        %2104 = vmatprep.subr.mxu0 0.0
        %2105 = vmatpush1.msra.mxu0 0.0
        %2106 = vmatprep.subr.mxu0 0.0
        %2107 = vmatpush1.msra.mxu0 0.0
        %2108 = vmatprep.subr.mxu0 0.0
        %2109 = vmatpush1.msra.mxu0 0.0
        %2110 = vmatprep.subr.mxu0 0.0
        %2111 = vmatpush1.msra.mxu0 0.0
        %2112 = vmatprep.subr.mxu0 0.0
        %2113 = vmatpush1.msra.mxu0 0.0
        %2114 = vmatprep.subr.mxu0 0.0
        %2115 = vmatpush1.msra.mxu0 0.0
        %2116 = vmatprep.mubr.f32.mxu0 0.0
        %2117 = vmatmul.mubr.f32.gmra.mrb[0].mxu0 %v2047
        %v2118 = vpop.f32.mrb[0].mxu0
        %v2119 = vadd.f32 0.0, %v2118
        %v2120 = vpop.f32.mrb[0].mxu0
        %2121 = vmatprep.mubr.f32.mxu0 0.0
        %2122 = vmatmul.mubr.f32.gmra.mrb[0].mxu0 %v2050
        %v2123 = vpop.f32.mrb[0].mxu0
        %v2124 = vadd.f32 0.0, %v2123
        %v2125 = vpop.f32.mrb[0].mxu0
        %2126 = vdwg.mxu0
        %2127 = vrot.lane.b32.xlu0 %v398, 48
        %v2128 = vpop.permute.xlu0 %2127
        %2129 = vrot.lane.b32.xlu0 %v403, 48
        %v2130 = vpop.permute.xlu0 %2129
        %v2134 = vsel %vm686, %v1951, 0
        %v2137 = vsel %vm686, %v1952, 0
        %2139 = vmatprep.subr.mxu0 0.0
        %2140 = vmatpush1.msra.mxu0 %v2128
        %2141 = vmatprep.subr.mxu0 0.0
        %2142 = vmatpush1.msra.mxu0 %v2130
        %2143 = vmatprep.subr.mxu0 0.0
        %2144 = vmatpush1.msra.mxu0 0.0
        %2145 = vmatprep.subr.mxu0 0.0
        %2146 = vmatpush1.msra.mxu0 0.0
        %2147 = vmatprep.subr.mxu0 0.0
        %2148 = vmatpush1.msra.mxu0 0.0
        %2149 = vmatprep.subr.mxu0 0.0
        %2150 = vmatpush1.msra.mxu0 0.0
        %2151 = vmatprep.subr.mxu0 0.0
        %2152 = vmatpush1.msra.mxu0 0.0
        %2153 = vmatprep.subr.mxu0 0.0
        %2154 = vmatpush1.msra.mxu0 0.0
        %2155 = vmatprep.subr.mxu0 0.0
        %2156 = vmatpush1.msra.mxu0 0.0
        %2157 = vmatprep.subr.mxu0 0.0
        %2158 = vmatpush1.msra.mxu0 0.0
        %2159 = vmatprep.subr.mxu0 0.0
        %2160 = vmatpush1.msra.mxu0 0.0
        %2161 = vmatprep.subr.mxu0 0.0
        %2162 = vmatpush1.msra.mxu0 0.0
        %2163 = vmatprep.subr.mxu0 0.0
        %2164 = vmatpush1.msra.mxu0 0.0
        %2165 = vmatprep.subr.mxu0 0.0
        %2166 = vmatpush1.msra.mxu0 0.0
        %2167 = vmatprep.subr.mxu0 0.0
        %2168 = vmatpush1.msra.mxu0 0.0
        %2169 = vmatprep.subr.mxu0 0.0
        %2170 = vmatpush1.msra.mxu0 0.0
        %2171 = vmatprep.subr.mxu0 0.0
        %2172 = vmatpush1.msra.mxu0 0.0
        %2173 = vmatprep.subr.mxu0 0.0
        %2174 = vmatpush1.msra.mxu0 0.0
        %2175 = vmatprep.subr.mxu0 0.0
        %2176 = vmatpush1.msra.mxu0 0.0
        %2177 = vmatprep.subr.mxu0 0.0
        %2178 = vmatpush1.msra.mxu0 0.0
        %2179 = vmatprep.subr.mxu0 0.0
        %2180 = vmatpush1.msra.mxu0 0.0
        %2181 = vmatprep.subr.mxu0 0.0
        %2182 = vmatpush1.msra.mxu0 0.0
        %2183 = vmatprep.subr.mxu0 0.0
        %2184 = vmatpush1.msra.mxu0 0.0
        %2185 = vmatprep.subr.mxu0 0.0
        %2186 = vmatpush1.msra.mxu0 0.0
        %2187 = vmatprep.subr.mxu0 0.0
        %2188 = vmatpush1.msra.mxu0 0.0
        %2189 = vmatprep.subr.mxu0 0.0
        %2190 = vmatpush1.msra.mxu0 0.0
        %2191 = vmatprep.subr.mxu0 0.0
        %2192 = vmatpush1.msra.mxu0 0.0
        %2193 = vmatprep.subr.mxu0 0.0
        %2194 = vmatpush1.msra.mxu0 0.0
        %2195 = vmatprep.subr.mxu0 0.0
        %2196 = vmatpush1.msra.mxu0 0.0
        %2197 = vmatprep.subr.mxu0 0.0
        %2198 = vmatpush1.msra.mxu0 0.0
        %2199 = vmatprep.subr.mxu0 0.0
        %2200 = vmatpush1.msra.mxu0 0.0
        %2201 = vmatprep.subr.mxu0 0.0
        %2202 = vmatpush1.msra.mxu0 0.0
        %2203 = vmatprep.mubr.f32.mxu0 0.0
        %2204 = vmatmul.mubr.f32.gmra.mrb[0].mxu0 %v2134
        %v2205 = vpop.f32.mrb[0].mxu0
        %v2206 = vadd.f32 0.0, %v2205
        %v2207 = vpop.f32.mrb[0].mxu0
        %2208 = vmatprep.mubr.f32.mxu0 0.0
        %2209 = vmatmul.mubr.f32.gmra.mrb[0].mxu0 %v2137
        %v2210 = vpop.f32.mrb[0].mxu0
        %v2211 = vadd.f32 0.0, %v2210
        %v2212 = vpop.f32.mrb[0].mxu0
        %2213 = vdwg.mxu0
        %2214 = vrot.lane.b32.xlu0 %v406, 104
        %v2215 = vpop.permute.xlu0 %2214
        %2216 = vrot.lane.b32.xlu0 %v407, 104
        %v2217 = vpop.permute.xlu0 %2216
        %2218 = vrot.lane.b32.xlu0 %v378, 72
        %v2219 = vpop.permute.xlu0 %2218
        %2220 = vrot.lane.b32.xlu0 %v383, 72
        %v2221 = vpop.permute.xlu0 %2220
        %v2222 = vsel %vm418, %v2215, 0
        %v2224 = vsel %vm418, %v2217, 0
        %v2226 = vsel %vm418, %v2219, 0
        %v2228 = vsel %vm418, %v2221, 0
        %2230 = vmatprep.subr.mxu0 0.0
        %2231 = vmatpush1.xpose.msra.mxu0 %v2226
        %2232 = vmatprep.subr.mxu0 0.0
        %2233 = vmatpush1.xpose.msra.mxu0 %v2228
        %2234 = vmatprep.subr.mxu0 0.0
        %2235 = vmatpush1.xpose.msra.mxu0 0.0
        %2236 = vmatprep.subr.mxu0 0.0
        %2237 = vmatpush1.xpose.msra.mxu0 0.0
        %2238 = vmatprep.subr.mxu0 0.0
        %2239 = vmatpush1.xpose.msra.mxu0 0.0
        %2240 = vmatprep.subr.mxu0 0.0
        %2241 = vmatpush1.xpose.msra.mxu0 0.0
        %2242 = vmatprep.subr.mxu0 0.0
        %2243 = vmatpush1.xpose.msra.mxu0 0.0
        %2244 = vmatprep.subr.mxu0 0.0
        %2245 = vmatpush1.xpose.msra.mxu0 0.0
        %2246 = vmatprep.subr.mxu0 0.0
        %2247 = vmatpush1.xpose.msra.mxu0 0.0
        %2248 = vmatprep.subr.mxu0 0.0
        %2249 = vmatpush1.xpose.msra.mxu0 0.0
        %2250 = vmatprep.subr.mxu0 0.0
        %2251 = vmatpush1.xpose.msra.mxu0 0.0
        %2252 = vmatprep.subr.mxu0 0.0
        %2253 = vmatpush1.xpose.msra.mxu0 0.0
        %2254 = vmatprep.subr.mxu0 0.0
        %2255 = vmatpush1.xpose.msra.mxu0 0.0
        %2256 = vmatprep.subr.mxu0 0.0
        %2257 = vmatpush1.xpose.msra.mxu0 0.0
        %2258 = vmatprep.subr.mxu0 0.0
        %2259 = vmatpush1.xpose.msra.mxu0 0.0
        %2260 = vmatprep.subr.mxu0 0.0
        %2261 = vmatpush1.xpose.msra.mxu0 0.0
        %2262 = vmatprep.subr.mxu0 0.0
        %2263 = vmatpush1.xpose.msra.mxu0 0.0
        %2264 = vmatprep.subr.mxu0 0.0
        %2265 = vmatpush1.xpose.msra.mxu0 0.0
        %2266 = vmatprep.subr.mxu0 0.0
        %2267 = vmatpush1.xpose.msra.mxu0 0.0
        %2268 = vmatprep.subr.mxu0 0.0
        %2269 = vmatpush1.xpose.msra.mxu0 0.0
        %2270 = vmatprep.subr.mxu0 0.0
        %2271 = vmatpush1.xpose.msra.mxu0 0.0
        %2272 = vmatprep.subr.mxu0 0.0
        %2273 = vmatpush1.xpose.msra.mxu0 0.0
        %2274 = vmatprep.subr.mxu0 0.0
        %2275 = vmatpush1.xpose.msra.mxu0 0.0
        %2276 = vmatprep.subr.mxu0 0.0
        %2277 = vmatpush1.xpose.msra.mxu0 0.0
        %2278 = vmatprep.subr.mxu0 0.0
        %2279 = vmatpush1.xpose.msra.mxu0 0.0
        %2280 = vmatprep.subr.mxu0 0.0
        %2281 = vmatpush1.xpose.msra.mxu0 0.0
        %2282 = vmatprep.subr.mxu0 0.0
        %2283 = vmatpush1.xpose.msra.mxu0 0.0
        %2284 = vmatprep.subr.mxu0 0.0
        %2285 = vmatpush1.xpose.msra.mxu0 0.0
        %2286 = vmatprep.subr.mxu0 0.0
        %2287 = vmatpush1.xpose.msra.mxu0 0.0
        %2288 = vmatprep.subr.mxu0 0.0
        %2289 = vmatpush1.xpose.msra.mxu0 0.0
        %2290 = vmatprep.subr.mxu0 0.0
        %2291 = vmatpush1.xpose.msra.mxu0 0.0
        %2292 = vmatprep.subr.mxu0 0.0
        %2293 = vmatpush1.xpose.msra.mxu0 0.0
        %2294 = vmatprep.mubr.f32.mxu0 0.0
        %2295 = vmatmul.mubr.f32.gmra.mrb[0].mxu0 %v2222
        %v2296 = vpop.f32.mrb[0].mxu0
        %v2297 = vadd.f32 0.0, %v2296
        %v2298 = vpop.f32.mrb[0].mxu0
        %2299 = vmatprep.mubr.f32.mxu0 0.0
        %2300 = vmatmul.mubr.f32.gmra.mrb[0].mxu0 %v2224
        %v2301 = vpop.f32.mrb[0].mxu0
        %v2302 = vadd.f32 0.0, %v2301
        %v2303 = vpop.f32.mrb[0].mxu0
        %2304 = vdwg.mxu0
        %2305 = vrot.lane.b32.xlu0 %v408, 104
        %v2306 = vpop.permute.xlu0 %2305
        %2307 = vrot.lane.b32.xlu0 %v409, 104
        %v2308 = vpop.permute.xlu0 %2307
        %2309 = vrot.lane.b32.xlu0 %v388, 72
        %v2310 = vpop.permute.xlu0 %2309
        %2311 = vrot.lane.b32.xlu0 %v393, 72
        %v2312 = vpop.permute.xlu0 %2311
        %v2313 = vsel %vm418, %v2306, 0
        %v2315 = vsel %vm418, %v2308, 0
        %v2317 = vsel %vm418, %v2310, 0
        %v2319 = vsel %vm418, %v2312, 0
        %2321 = vmatprep.subr.mxu0 0.0
        %2322 = vmatpush1.xpose.msra.mxu0 %v2317
        %2323 = vmatprep.subr.mxu0 0.0
        %2324 = vmatpush1.xpose.msra.mxu0 %v2319
        %2325 = vmatprep.subr.mxu0 0.0
        %2326 = vmatpush1.xpose.msra.mxu0 0.0
        %2327 = vmatprep.subr.mxu0 0.0
        %2328 = vmatpush1.xpose.msra.mxu0 0.0
        %2329 = vmatprep.subr.mxu0 0.0
        %2330 = vmatpush1.xpose.msra.mxu0 0.0
        %2331 = vmatprep.subr.mxu0 0.0
        %2332 = vmatpush1.xpose.msra.mxu0 0.0
        %2333 = vmatprep.subr.mxu0 0.0
        %2334 = vmatpush1.xpose.msra.mxu0 0.0
        %2335 = vmatprep.subr.mxu0 0.0
        %2336 = vmatpush1.xpose.msra.mxu0 0.0
        %2337 = vmatprep.subr.mxu0 0.0
        %2338 = vmatpush1.xpose.msra.mxu0 0.0
        %2339 = vmatprep.subr.mxu0 0.0
        %2340 = vmatpush1.xpose.msra.mxu0 0.0
        %2341 = vmatprep.subr.mxu0 0.0
        %2342 = vmatpush1.xpose.msra.mxu0 0.0
        %2343 = vmatprep.subr.mxu0 0.0
        %2344 = vmatpush1.xpose.msra.mxu0 0.0
        %2345 = vmatprep.subr.mxu0 0.0
        %2346 = vmatpush1.xpose.msra.mxu0 0.0
        %2347 = vmatprep.subr.mxu0 0.0
        %2348 = vmatpush1.xpose.msra.mxu0 0.0
        %2349 = vmatprep.subr.mxu0 0.0
        %2350 = vmatpush1.xpose.msra.mxu0 0.0
        %2351 = vmatprep.subr.mxu0 0.0
        %2352 = vmatpush1.xpose.msra.mxu0 0.0
        %2353 = vmatprep.subr.mxu0 0.0
        %2354 = vmatpush1.xpose.msra.mxu0 0.0
        %2355 = vmatprep.subr.mxu0 0.0
        %2356 = vmatpush1.xpose.msra.mxu0 0.0
        %2357 = vmatprep.subr.mxu0 0.0
        %2358 = vmatpush1.xpose.msra.mxu0 0.0
        %2359 = vmatprep.subr.mxu0 0.0
        %2360 = vmatpush1.xpose.msra.mxu0 0.0
        %2361 = vmatprep.subr.mxu0 0.0
        %2362 = vmatpush1.xpose.msra.mxu0 0.0
        %2363 = vmatprep.subr.mxu0 0.0
        %2364 = vmatpush1.xpose.msra.mxu0 0.0
        %2365 = vmatprep.subr.mxu0 0.0
        %2366 = vmatpush1.xpose.msra.mxu0 0.0
        %2367 = vmatprep.subr.mxu0 0.0
        %2368 = vmatpush1.xpose.msra.mxu0 0.0
        %2369 = vmatprep.subr.mxu0 0.0
        %2370 = vmatpush1.xpose.msra.mxu0 0.0
        %2371 = vmatprep.subr.mxu0 0.0
        %2372 = vmatpush1.xpose.msra.mxu0 0.0
        %2373 = vmatprep.subr.mxu0 0.0
        %2374 = vmatpush1.xpose.msra.mxu0 0.0
        %2375 = vmatprep.subr.mxu0 0.0
        %2376 = vmatpush1.xpose.msra.mxu0 0.0
        %2377 = vmatprep.subr.mxu0 0.0
        %2378 = vmatpush1.xpose.msra.mxu0 0.0
        %2379 = vmatprep.subr.mxu0 0.0
        %2380 = vmatpush1.xpose.msra.mxu0 0.0
        %2381 = vmatprep.subr.mxu0 0.0
        %2382 = vmatpush1.xpose.msra.mxu0 0.0
        %2383 = vmatprep.subr.mxu0 0.0
        %2384 = vmatpush1.xpose.msra.mxu0 0.0
        %2385 = vmatprep.mubr.f32.mxu0 0.0
        %2386 = vmatmul.mubr.f32.gmra.mrb[0].mxu0 %v2313
        %v2387 = vpop.f32.mrb[0].mxu0
        %v2388 = vadd.f32 0.0, %v2387
        %v2389 = vpop.f32.mrb[0].mxu0
        %2390 = vmatprep.mubr.f32.mxu0 0.0
        %2391 = vmatmul.mubr.f32.gmra.mrb[0].mxu0 %v2315
        %v2392 = vpop.f32.mrb[0].mxu0
        %v2393 = vadd.f32 0.0, %v2392
        %v2394 = vpop.f32.mrb[0].mxu0
        %2395 = vdwg.mxu0
        %2396 = vrot.lane.b32.xlu0 %v410, 104
        %v2397 = vpop.permute.xlu0 %2396
        %2398 = vrot.lane.b32.xlu0 %v411, 104
        %v2399 = vpop.permute.xlu0 %2398
        %2400 = vrot.lane.b32.xlu0 %v398, 72
        %v2401 = vpop.permute.xlu0 %2400
        %2402 = vrot.lane.b32.xlu0 %v403, 72
        %v2403 = vpop.permute.xlu0 %2402
        %v2404 = vsel %vm418, %v2397, 0
        %v2406 = vsel %vm418, %v2399, 0
        %v2408 = vsel %vm418, %v2401, 0
        %v2410 = vsel %vm418, %v2403, 0
        %2412 = vmatprep.subr.mxu0 0.0
        %2413 = vmatpush1.xpose.msra.mxu0 %v2408
        %2414 = vmatprep.subr.mxu0 0.0
        %2415 = vmatpush1.xpose.msra.mxu0 %v2410
        %2416 = vmatprep.subr.mxu0 0.0
        %2417 = vmatpush1.xpose.msra.mxu0 0.0
        %2418 = vmatprep.subr.mxu0 0.0
        %2419 = vmatpush1.xpose.msra.mxu0 0.0
        %2420 = vmatprep.subr.mxu0 0.0
        %2421 = vmatpush1.xpose.msra.mxu0 0.0
        %2422 = vmatprep.subr.mxu0 0.0
        %2423 = vmatpush1.xpose.msra.mxu0 0.0
        %2424 = vmatprep.subr.mxu0 0.0
        %2425 = vmatpush1.xpose.msra.mxu0 0.0
        %2426 = vmatprep.subr.mxu0 0.0
        %2427 = vmatpush1.xpose.msra.mxu0 0.0
        %2428 = vmatprep.subr.mxu0 0.0
        %2429 = vmatpush1.xpose.msra.mxu0 0.0
        %2430 = vmatprep.subr.mxu0 0.0
        %2431 = vmatpush1.xpose.msra.mxu0 0.0
        %2432 = vmatprep.subr.mxu0 0.0
        %2433 = vmatpush1.xpose.msra.mxu0 0.0
        %2434 = vmatprep.subr.mxu0 0.0
        %2435 = vmatpush1.xpose.msra.mxu0 0.0
        %2436 = vmatprep.subr.mxu0 0.0
        %2437 = vmatpush1.xpose.msra.mxu0 0.0
        %2438 = vmatprep.subr.mxu0 0.0
        %2439 = vmatpush1.xpose.msra.mxu0 0.0
        %2440 = vmatprep.subr.mxu0 0.0
        %2441 = vmatpush1.xpose.msra.mxu0 0.0
        %2442 = vmatprep.subr.mxu0 0.0
        %2443 = vmatpush1.xpose.msra.mxu0 0.0
        %2444 = vmatprep.subr.mxu0 0.0
        %2445 = vmatpush1.xpose.msra.mxu0 0.0
        %2446 = vmatprep.subr.mxu0 0.0
        %2447 = vmatpush1.xpose.msra.mxu0 0.0
        %2448 = vmatprep.subr.mxu0 0.0
        %2449 = vmatpush1.xpose.msra.mxu0 0.0
        %2450 = vmatprep.subr.mxu0 0.0
        %2451 = vmatpush1.xpose.msra.mxu0 0.0
        %2452 = vmatprep.subr.mxu0 0.0
        %2453 = vmatpush1.xpose.msra.mxu0 0.0
        %2454 = vmatprep.subr.mxu0 0.0
        %2455 = vmatpush1.xpose.msra.mxu0 0.0
        %2456 = vmatprep.subr.mxu0 0.0
        %2457 = vmatpush1.xpose.msra.mxu0 0.0
        %2458 = vmatprep.subr.mxu0 0.0
        %2459 = vmatpush1.xpose.msra.mxu0 0.0
        %2460 = vmatprep.subr.mxu0 0.0
        %2461 = vmatpush1.xpose.msra.mxu0 0.0
        %2462 = vmatprep.subr.mxu0 0.0
        %2463 = vmatpush1.xpose.msra.mxu0 0.0
        %2464 = vmatprep.subr.mxu0 0.0
        %2465 = vmatpush1.xpose.msra.mxu0 0.0
        %2466 = vmatprep.subr.mxu0 0.0
        %2467 = vmatpush1.xpose.msra.mxu0 0.0
        %2468 = vmatprep.subr.mxu0 0.0
        %2469 = vmatpush1.xpose.msra.mxu0 0.0
        %2470 = vmatprep.subr.mxu0 0.0
        %2471 = vmatpush1.xpose.msra.mxu0 0.0
        %2472 = vmatprep.subr.mxu0 0.0
        %2473 = vmatpush1.xpose.msra.mxu0 0.0
        %2474 = vmatprep.subr.mxu0 0.0
        %2475 = vmatpush1.xpose.msra.mxu0 0.0
        %2476 = vmatprep.mubr.f32.mxu0 0.0
        %2477 = vmatmul.mubr.f32.gmra.mrb[0].mxu0 %v2404
        %v2478 = vpop.f32.mrb[0].mxu0
        %v2479 = vadd.f32 0.0, %v2478
        %v2480 = vpop.f32.mrb[0].mxu0
        %2481 = vmatprep.mubr.f32.mxu0 0.0
        %2482 = vmatmul.mubr.f32.gmra.mrb[0].mxu0 %v2406
        %v2483 = vpop.f32.mrb[0].mxu0
        %v2484 = vadd.f32 0.0, %v2483
        %v2485 = vpop.f32.mrb[0].mxu0
        %2486 = vdwg.mxu0
        %v2487 = vsel %vm686, %v2297, -inf
        %2488 = vmax.xlane.f32.xlu0 %v2487
        %v2489 = vpop.xlane.xlu0 %2488
        %v2490 = vsel %vm686, %v2302, -inf
        %2491 = vmax.xlane.f32.xlu0 %v2490
        %v2492 = vpop.xlane.xlu0 %2491
        %v2493 = vsel %vm686, %v2388, -inf
        %2494 = vmax.xlane.f32.xlu0 %v2493
        %v2495 = vpop.xlane.xlu0 %2494
        %v2496 = vsel %vm686, %v2393, -inf
        %2497 = vmax.xlane.f32.xlu0 %v2496
        %v2498 = vpop.xlane.xlu0 %2497
        %v2499 = vsel %vm686, %v2479, -inf
        %2500 = vmax.xlane.f32.xlu0 %v2499
        %v2501 = vpop.xlane.xlu0 %2500
        %v2502 = vsel %vm686, %v2484, -inf
        %2503 = vmax.xlane.f32.xlu0 %v2502
        %v2504 = vpop.xlane.xlu0 %2503
        %v2505 = vsub.f32 %v2297, %v2489
        %v2506 = vsub.f32 %v2302, %v2492
        %v2507 = vsub.f32 %v2388, %v2495
        %v2508 = vsub.f32 %v2393, %v2498
        %v2509 = vsub.f32 %v2479, %v2501
        %v2510 = vsub.f32 %v2484, %v2504
        %v2511 = vmul.f32 %v2505, 1.442695
        %v2512 = vpow.pop %v2511
        %v2513 = vmul.f32 %v2506, 1.442695
        %v2514 = vpow.pop %v2513
        %v2515 = vmul.f32 %v2507, 1.442695
        %v2516 = vpow.pop %v2515
        %v2517 = vmul.f32 %v2508, 1.442695
        %v2518 = vpow.pop %v2517
        %v2519 = vmul.f32 %v2509, 1.442695
        %v2520 = vpow.pop %v2519
        %v2521 = vmul.f32 %v2510, 1.442695
        %v2522 = vpow.pop %v2521
        %v2523 = vsel %vm686, %v2512, 0.0
        %2524 = vadd.xlane.f32.xlu0 %v2523
        %v2525 = vpop.xlane.xlu0 %2524
        %v2526 = vsel %vm686, %v2514, 0.0
        %2527 = vadd.xlane.f32.xlu0 %v2526
        %v2528 = vpop.xlane.xlu0 %2527
        %v2529 = vsel %vm686, %v2516, 0.0
        %2530 = vadd.xlane.f32.xlu0 %v2529
        %v2531 = vpop.xlane.xlu0 %2530
        %v2532 = vsel %vm686, %v2518, 0.0
        %2533 = vadd.xlane.f32.xlu0 %v2532
        %v2534 = vpop.xlane.xlu0 %2533
        %v2535 = vsel %vm686, %v2520, 0.0
        %2536 = vadd.xlane.f32.xlu0 %v2535
        %v2537 = vpop.xlane.xlu0 %2536
        %v2538 = vsel %vm686, %v2522, 0.0
        %2539 = vadd.xlane.f32.xlu0 %v2538
        %v2540 = vpop.xlane.xlu0 %2539
        %v2541 = vrcp.pop %v2525
        %v2542 = vrcp.pop %v2528
        %v2543 = vrcp.pop %v2531
        %v2544 = vrcp.pop %v2534
        %v2545 = vrcp.pop %v2537
        %v2546 = vrcp.pop %v2540
        %v2547 = vmul.f32 %v2512, %v2541
        %v2548 = vmul.f32 %v2514, %v2542
        %v2549 = vmul.f32 %v2516, %v2543
        %v2550 = vmul.f32 %v2518, %v2544
        %v2551 = vmul.f32 %v2520, %v2545
        %v2552 = vmul.f32 %v2522, %v2546
        %2553 = vrot.lane.b32.xlu0 %v378, 40
        %v2554 = vpop.permute.xlu0 %2553
        %2555 = vrot.lane.b32.xlu0 %v383, 40
        %v2556 = vpop.permute.xlu0 %2555
        %v2560 = vsel %vm686, %v2547, 0
        %v2563 = vsel %vm686, %v2548, 0
        %2565 = vmatprep.subr.mxu0 0.0
        %2566 = vmatpush1.msra.mxu0 %v2554
        %2567 = vmatprep.subr.mxu0 0.0
        %2568 = vmatpush1.msra.mxu0 %v2556
        %2569 = vmatprep.subr.mxu0 0.0
        %2570 = vmatpush1.msra.mxu0 0.0
        %2571 = vmatprep.subr.mxu0 0.0
        %2572 = vmatpush1.msra.mxu0 0.0
        %2573 = vmatprep.subr.mxu0 0.0
        %2574 = vmatpush1.msra.mxu0 0.0
        %2575 = vmatprep.subr.mxu0 0.0
        %2576 = vmatpush1.msra.mxu0 0.0
        %2577 = vmatprep.subr.mxu0 0.0
        %2578 = vmatpush1.msra.mxu0 0.0
        %2579 = vmatprep.subr.mxu0 0.0
        %2580 = vmatpush1.msra.mxu0 0.0
        %2581 = vmatprep.subr.mxu0 0.0
        %2582 = vmatpush1.msra.mxu0 0.0
        %2583 = vmatprep.subr.mxu0 0.0
        %2584 = vmatpush1.msra.mxu0 0.0
        %2585 = vmatprep.subr.mxu0 0.0
        %2586 = vmatpush1.msra.mxu0 0.0
        %2587 = vmatprep.subr.mxu0 0.0
        %2588 = vmatpush1.msra.mxu0 0.0
        %2589 = vmatprep.subr.mxu0 0.0
        %2590 = vmatpush1.msra.mxu0 0.0
        %2591 = vmatprep.subr.mxu0 0.0
        %2592 = vmatpush1.msra.mxu0 0.0
        %2593 = vmatprep.subr.mxu0 0.0
        %2594 = vmatpush1.msra.mxu0 0.0
        %2595 = vmatprep.subr.mxu0 0.0
        %2596 = vmatpush1.msra.mxu0 0.0
        %2597 = vmatprep.subr.mxu0 0.0
        %2598 = vmatpush1.msra.mxu0 0.0
        %2599 = vmatprep.subr.mxu0 0.0
        %2600 = vmatpush1.msra.mxu0 0.0
        %2601 = vmatprep.subr.mxu0 0.0
        %2602 = vmatpush1.msra.mxu0 0.0
        %2603 = vmatprep.subr.mxu0 0.0
        %2604 = vmatpush1.msra.mxu0 0.0
        %2605 = vmatprep.subr.mxu0 0.0
        %2606 = vmatpush1.msra.mxu0 0.0
        %2607 = vmatprep.subr.mxu0 0.0
        %2608 = vmatpush1.msra.mxu0 0.0
        %2609 = vmatprep.subr.mxu0 0.0
        %2610 = vmatpush1.msra.mxu0 0.0
        %2611 = vmatprep.subr.mxu0 0.0
        %2612 = vmatpush1.msra.mxu0 0.0
        %2613 = vmatprep.subr.mxu0 0.0
        %2614 = vmatpush1.msra.mxu0 0.0
        %2615 = vmatprep.subr.mxu0 0.0
        %2616 = vmatpush1.msra.mxu0 0.0
        %2617 = vmatprep.subr.mxu0 0.0
        %2618 = vmatpush1.msra.mxu0 0.0
        %2619 = vmatprep.subr.mxu0 0.0
        %2620 = vmatpush1.msra.mxu0 0.0
        %2621 = vmatprep.subr.mxu0 0.0
        %2622 = vmatpush1.msra.mxu0 0.0
        %2623 = vmatprep.subr.mxu0 0.0
        %2624 = vmatpush1.msra.mxu0 0.0
        %2625 = vmatprep.subr.mxu0 0.0
        %2626 = vmatpush1.msra.mxu0 0.0
        %2627 = vmatprep.subr.mxu0 0.0
        %2628 = vmatpush1.msra.mxu0 0.0
        %2629 = vmatprep.mubr.f32.mxu0 0.0
        %2630 = vmatmul.mubr.f32.gmra.mrb[0].mxu0 %v2560
        %v2631 = vpop.f32.mrb[0].mxu0
        %v2632 = vadd.f32 0.0, %v2631
        %v2633 = vpop.f32.mrb[0].mxu0
        %2634 = vmatprep.mubr.f32.mxu0 0.0
        %2635 = vmatmul.mubr.f32.gmra.mrb[0].mxu0 %v2563
        %v2636 = vpop.f32.mrb[0].mxu0
        %v2637 = vadd.f32 0.0, %v2636
        %v2638 = vpop.f32.mrb[0].mxu0
        %2639 = vdwg.mxu0
        %2640 = vrot.lane.b32.xlu0 %v388, 40
        %v2641 = vpop.permute.xlu0 %2640
        %2642 = vrot.lane.b32.xlu0 %v393, 40
        %v2643 = vpop.permute.xlu0 %2642
        %v2647 = vsel %vm686, %v2549, 0
        %v2650 = vsel %vm686, %v2550, 0
        %2652 = vmatprep.subr.mxu0 0.0
        %2653 = vmatpush1.msra.mxu0 %v2641
        %2654 = vmatprep.subr.mxu0 0.0
        %2655 = vmatpush1.msra.mxu0 %v2643
        %2656 = vmatprep.subr.mxu0 0.0
        %2657 = vmatpush1.msra.mxu0 0.0
        %2658 = vmatprep.subr.mxu0 0.0
        %2659 = vmatpush1.msra.mxu0 0.0
        %2660 = vmatprep.subr.mxu0 0.0
        %2661 = vmatpush1.msra.mxu0 0.0
        %2662 = vmatprep.subr.mxu0 0.0
        %2663 = vmatpush1.msra.mxu0 0.0
        %2664 = vmatprep.subr.mxu0 0.0
        %2665 = vmatpush1.msra.mxu0 0.0
        %2666 = vmatprep.subr.mxu0 0.0
        %2667 = vmatpush1.msra.mxu0 0.0
        %2668 = vmatprep.subr.mxu0 0.0
        %2669 = vmatpush1.msra.mxu0 0.0
        %2670 = vmatprep.subr.mxu0 0.0
        %2671 = vmatpush1.msra.mxu0 0.0
        %2672 = vmatprep.subr.mxu0 0.0
        %2673 = vmatpush1.msra.mxu0 0.0
        %2674 = vmatprep.subr.mxu0 0.0
        %2675 = vmatpush1.msra.mxu0 0.0
        %2676 = vmatprep.subr.mxu0 0.0
        %2677 = vmatpush1.msra.mxu0 0.0
        %2678 = vmatprep.subr.mxu0 0.0
        %2679 = vmatpush1.msra.mxu0 0.0
        %2680 = vmatprep.subr.mxu0 0.0
        %2681 = vmatpush1.msra.mxu0 0.0
        %2682 = vmatprep.subr.mxu0 0.0
        %2683 = vmatpush1.msra.mxu0 0.0
        %2684 = vmatprep.subr.mxu0 0.0
        %2685 = vmatpush1.msra.mxu0 0.0
        %2686 = vmatprep.subr.mxu0 0.0
        %2687 = vmatpush1.msra.mxu0 0.0
        %2688 = vmatprep.subr.mxu0 0.0
        %2689 = vmatpush1.msra.mxu0 0.0
        %2690 = vmatprep.subr.mxu0 0.0
        %2691 = vmatpush1.msra.mxu0 0.0
        %2692 = vmatprep.subr.mxu0 0.0
        %2693 = vmatpush1.msra.mxu0 0.0
        %2694 = vmatprep.subr.mxu0 0.0
        %2695 = vmatpush1.msra.mxu0 0.0
        %2696 = vmatprep.subr.mxu0 0.0
        %2697 = vmatpush1.msra.mxu0 0.0
        %2698 = vmatprep.subr.mxu0 0.0
        %2699 = vmatpush1.msra.mxu0 0.0
        %2700 = vmatprep.subr.mxu0 0.0
        %2701 = vmatpush1.msra.mxu0 0.0
        %2702 = vmatprep.subr.mxu0 0.0
        %2703 = vmatpush1.msra.mxu0 0.0
        %2704 = vmatprep.subr.mxu0 0.0
        %2705 = vmatpush1.msra.mxu0 0.0
        %2706 = vmatprep.subr.mxu0 0.0
        %2707 = vmatpush1.msra.mxu0 0.0
        %2708 = vmatprep.subr.mxu0 0.0
        %2709 = vmatpush1.msra.mxu0 0.0
        %2710 = vmatprep.subr.mxu0 0.0
        %2711 = vmatpush1.msra.mxu0 0.0
        %2712 = vmatprep.subr.mxu0 0.0
        %2713 = vmatpush1.msra.mxu0 0.0
        %2714 = vmatprep.subr.mxu0 0.0
        %2715 = vmatpush1.msra.mxu0 0.0
        %2716 = vmatprep.mubr.f32.mxu0 0.0
        %2717 = vmatmul.mubr.f32.gmra.mrb[0].mxu0 %v2647
        %v2718 = vpop.f32.mrb[0].mxu0
        %v2719 = vadd.f32 0.0, %v2718
        %v2720 = vpop.f32.mrb[0].mxu0
        %2721 = vmatprep.mubr.f32.mxu0 0.0
        %2722 = vmatmul.mubr.f32.gmra.mrb[0].mxu0 %v2650
        %v2723 = vpop.f32.mrb[0].mxu0
        %v2724 = vadd.f32 0.0, %v2723
        %v2725 = vpop.f32.mrb[0].mxu0
        %2726 = vdwg.mxu0
        %2727 = vrot.lane.b32.xlu0 %v398, 40
        %v2728 = vpop.permute.xlu0 %2727
        %2729 = vrot.lane.b32.xlu0 %v403, 40
        %v2730 = vpop.permute.xlu0 %2729
        %v2734 = vsel %vm686, %v2551, 0
        %v2737 = vsel %vm686, %v2552, 0
        %2739 = vmatprep.subr.mxu0 0.0
        %2740 = vmatpush1.msra.mxu0 %v2728
        %2741 = vmatprep.subr.mxu0 0.0
        %2742 = vmatpush1.msra.mxu0 %v2730
        %2743 = vmatprep.subr.mxu0 0.0
        %2744 = vmatpush1.msra.mxu0 0.0
        %2745 = vmatprep.subr.mxu0 0.0
        %2746 = vmatpush1.msra.mxu0 0.0
        %2747 = vmatprep.subr.mxu0 0.0
        %2748 = vmatpush1.msra.mxu0 0.0
        %2749 = vmatprep.subr.mxu0 0.0
        %2750 = vmatpush1.msra.mxu0 0.0
        %2751 = vmatprep.subr.mxu0 0.0
        %2752 = vmatpush1.msra.mxu0 0.0
        %2753 = vmatprep.subr.mxu0 0.0
        %2754 = vmatpush1.msra.mxu0 0.0
        %2755 = vmatprep.subr.mxu0 0.0
        %2756 = vmatpush1.msra.mxu0 0.0
        %2757 = vmatprep.subr.mxu0 0.0
        %2758 = vmatpush1.msra.mxu0 0.0
        %2759 = vmatprep.subr.mxu0 0.0
        %2760 = vmatpush1.msra.mxu0 0.0
        %2761 = vmatprep.subr.mxu0 0.0
        %2762 = vmatpush1.msra.mxu0 0.0
        %2763 = vmatprep.subr.mxu0 0.0
        %2764 = vmatpush1.msra.mxu0 0.0
        %2765 = vmatprep.subr.mxu0 0.0
        %2766 = vmatpush1.msra.mxu0 0.0
        %2767 = vmatprep.subr.mxu0 0.0
        %2768 = vmatpush1.msra.mxu0 0.0
        %2769 = vmatprep.subr.mxu0 0.0
        %2770 = vmatpush1.msra.mxu0 0.0
        %2771 = vmatprep.subr.mxu0 0.0
        %2772 = vmatpush1.msra.mxu0 0.0
        %2773 = vmatprep.subr.mxu0 0.0
        %2774 = vmatpush1.msra.mxu0 0.0
        %2775 = vmatprep.subr.mxu0 0.0
        %2776 = vmatpush1.msra.mxu0 0.0
        %2777 = vmatprep.subr.mxu0 0.0
        %2778 = vmatpush1.msra.mxu0 0.0
        %2779 = vmatprep.subr.mxu0 0.0
        %2780 = vmatpush1.msra.mxu0 0.0
        %2781 = vmatprep.subr.mxu0 0.0
        %2782 = vmatpush1.msra.mxu0 0.0
        %2783 = vmatprep.subr.mxu0 0.0
        %2784 = vmatpush1.msra.mxu0 0.0
        %2785 = vmatprep.subr.mxu0 0.0
        %2786 = vmatpush1.msra.mxu0 0.0
        %2787 = vmatprep.subr.mxu0 0.0
        %2788 = vmatpush1.msra.mxu0 0.0
        %2789 = vmatprep.subr.mxu0 0.0
        %2790 = vmatpush1.msra.mxu0 0.0
        %2791 = vmatprep.subr.mxu0 0.0
        %2792 = vmatpush1.msra.mxu0 0.0
        %2793 = vmatprep.subr.mxu0 0.0
        %2794 = vmatpush1.msra.mxu0 0.0
        %2795 = vmatprep.subr.mxu0 0.0
        %2796 = vmatpush1.msra.mxu0 0.0
        %2797 = vmatprep.subr.mxu0 0.0
        %2798 = vmatpush1.msra.mxu0 0.0
        %2799 = vmatprep.subr.mxu0 0.0
        %2800 = vmatpush1.msra.mxu0 0.0
        %2801 = vmatprep.subr.mxu0 0.0
        %2802 = vmatpush1.msra.mxu0 0.0
        %2803 = vmatprep.mubr.f32.mxu0 0.0
        %2804 = vmatmul.mubr.f32.gmra.mrb[0].mxu0 %v2734
        %v2805 = vpop.f32.mrb[0].mxu0
        %v2806 = vadd.f32 0.0, %v2805
        %v2807 = vpop.f32.mrb[0].mxu0
        %2808 = vmatprep.mubr.f32.mxu0 0.0
        %2809 = vmatmul.mubr.f32.gmra.mrb[0].mxu0 %v2737
        %v2810 = vpop.f32.mrb[0].mxu0
        %v2811 = vadd.f32 0.0, %v2810
        %v2812 = vpop.f32.mrb[0].mxu0
        %2813 = vdwg.mxu0
        %2820 = vrot.lane.b32.xlu0 %v1432, 8
        %v2821 = vpop.permute.xlu0 %2820
        %2822 = vrot.lane.b32.xlu0 %v1437, 8
        %v2823 = vpop.permute.xlu0 %2822
        %2824 = vrot.lane.b32.xlu0 %v1519, 8
        %v2825 = vpop.permute.xlu0 %2824
        %2826 = vrot.lane.b32.xlu0 %v1524, 8
        %v2827 = vpop.permute.xlu0 %2826
        %2828 = vrot.lane.b32.xlu0 %v1606, 8
        %v2829 = vpop.permute.xlu0 %2828
        %2830 = vrot.lane.b32.xlu0 %v1611, 8
        %v2831 = vpop.permute.xlu0 %2830
        %2844 = vrot.lane.b32.xlu0 %v2032, 16
        %v2845 = vpop.permute.xlu0 %2844
        %2846 = vrot.lane.b32.xlu0 %v2037, 16
        %v2847 = vpop.permute.xlu0 %2846
        %2848 = vrot.lane.b32.xlu0 %v2119, 16
        %v2849 = vpop.permute.xlu0 %2848
        %2850 = vrot.lane.b32.xlu0 %v2124, 16
        %v2851 = vpop.permute.xlu0 %2850
        %2852 = vrot.lane.b32.xlu0 %v2206, 16
        %v2853 = vpop.permute.xlu0 %2852
        %2854 = vrot.lane.b32.xlu0 %v2211, 16
        %v2855 = vpop.permute.xlu0 %2854
        %2868 = vrot.lane.b32.xlu0 %v2632, 24
        %v2869 = vpop.permute.xlu0 %2868
        %2870 = vrot.lane.b32.xlu0 %v2637, 24
        %v2871 = vpop.permute.xlu0 %2870
        %2872 = vrot.lane.b32.xlu0 %v2719, 24
        %v2873 = vpop.permute.xlu0 %2872
        %2874 = vrot.lane.b32.xlu0 %v2724, 24
        %v2875 = vpop.permute.xlu0 %2874
        %2876 = vrot.lane.b32.xlu0 %v2806, 24
        %v2877 = vpop.permute.xlu0 %2876
        %2878 = vrot.lane.b32.xlu0 %v2811, 24
        %v2879 = vpop.permute.xlu0 %2878
        %v2886 = vsel %vm418, %v832, %v2821
        %v2887 = vsel %vm418, %v837, %v2823
        %v2888 = vsel %vm418, %v919, %v2825
        %v2889 = vsel %vm418, %v924, %v2827
        %v2890 = vsel %vm418, %v1006, %v2829
        %v2891 = vsel %vm418, %v1011, %v2831
        %v2892 = vsel %vm686, %v2886, %v2845
        %v2893 = vsel %vm686, %v2887, %v2847
        %v2894 = vsel %vm686, %v2888, %v2849
        %v2895 = vsel %vm686, %v2889, %v2851
        %v2896 = vsel %vm686, %v2890, %v2853
        %v2897 = vsel %vm686, %v2891, %v2855
        %vm2898 = vcmask 195584
        %v2899 = vsel %vm2898, %v2892, %v2869
        %v2900 = vsel %vm2898, %v2893, %v2871
        %v2901 = vsel %vm2898, %v2894, %v2873
        %v2902 = vsel %vm2898, %v2895, %v2875
        %v2903 = vsel %vm2898, %v2896, %v2877
        %v2904 = vsel %vm2898, %v2897, %v2879
        %v2905 = vld [vmem:[#allocation7] sm:$0xff]
        %v2906 = vld [vmem:[#allocation7 + $0x8] sm:$0xff]
        %v2907 = vld [vmem:[#allocation7 + $0x10] sm:$0xff]
        %v2908 = vld [vmem:[#allocation7 + $0x18] sm:$0xff]
        %v2909 = vld [vmem:[%s4] sm:$0x1]
        %v2911 = vlaneseq
        %v2912 = vshrl.u32 %v2911, 7
        %v2913 = vsub.s32 0, %v2912
        %v2914 = vrot.slane %v2909, %v2913
        %v2917 = vsel %vm292, %v2899, 0
        %v2920 = vsel %vm292, %v2900, 0
        %v2923 = vsel %vm292, %v2901, 0
        %v2926 = vsel %vm292, %v2902, 0
        %v2929 = vsel %vm292, %v2903, 0
        %v2932 = vsel %vm292, %v2904, 0
        %2934 = vmatprep.subr.mxu0 0.0
        %2935 = vmatpush1.msra.mxu0 %v2905
        %2936 = vmatprep.subr.mxu0 0.0
        %2937 = vmatpush1.msra.mxu0 %v2906
        %2938 = vmatprep.subr.mxu0 0.0
        %2939 = vmatpush1.msra.mxu0 %v2907
        %2940 = vmatprep.subr.mxu0 0.0
        %2941 = vmatpush1.msra.mxu0 %v2908
        %2942 = vmatprep.subr.mxu0 0.0
        %2943 = vmatpush1.msra.mxu0 0.0
        %2944 = vmatprep.subr.mxu0 0.0
        %2945 = vmatpush1.msra.mxu0 0.0
        %2946 = vmatprep.subr.mxu0 0.0
        %2947 = vmatpush1.msra.mxu0 0.0
        %2948 = vmatprep.subr.mxu0 0.0
        %2949 = vmatpush1.msra.mxu0 0.0
        %2950 = vmatprep.subr.mxu0 0.0
        %2951 = vmatpush1.msra.mxu0 0.0
        %2952 = vmatprep.subr.mxu0 0.0
        %2953 = vmatpush1.msra.mxu0 0.0
        %2954 = vmatprep.subr.mxu0 0.0
        %2955 = vmatpush1.msra.mxu0 0.0
        %2956 = vmatprep.subr.mxu0 0.0
        %2957 = vmatpush1.msra.mxu0 0.0
        %2958 = vmatprep.subr.mxu0 0.0
        %2959 = vmatpush1.msra.mxu0 0.0
        %2960 = vmatprep.subr.mxu0 0.0
        %2961 = vmatpush1.msra.mxu0 0.0
        %2962 = vmatprep.subr.mxu0 0.0
        %2963 = vmatpush1.msra.mxu0 0.0
        %2964 = vmatprep.subr.mxu0 0.0
        %2965 = vmatpush1.msra.mxu0 0.0
        %2966 = vmatprep.subr.mxu0 0.0
        %2967 = vmatpush1.msra.mxu0 0.0
        %2968 = vmatprep.subr.mxu0 0.0
        %2969 = vmatpush1.msra.mxu0 0.0
        %2970 = vmatprep.subr.mxu0 0.0
        %2971 = vmatpush1.msra.mxu0 0.0
        %2972 = vmatprep.subr.mxu0 0.0
        %2973 = vmatpush1.msra.mxu0 0.0
        %2974 = vmatprep.subr.mxu0 0.0
        %2975 = vmatpush1.msra.mxu0 0.0
        %2976 = vmatprep.subr.mxu0 0.0
        %2977 = vmatpush1.msra.mxu0 0.0
        %2978 = vmatprep.subr.mxu0 0.0
        %2979 = vmatpush1.msra.mxu0 0.0
        %2980 = vmatprep.subr.mxu0 0.0
        %2981 = vmatpush1.msra.mxu0 0.0
        %2982 = vmatprep.subr.mxu0 0.0
        %2983 = vmatpush1.msra.mxu0 0.0
        %2984 = vmatprep.subr.mxu0 0.0
        %2985 = vmatpush1.msra.mxu0 0.0
        %2986 = vmatprep.subr.mxu0 0.0
        %2987 = vmatpush1.msra.mxu0 0.0
        %2988 = vmatprep.subr.mxu0 0.0
        %2989 = vmatpush1.msra.mxu0 0.0
        %2990 = vmatprep.subr.mxu0 0.0
        %2991 = vmatpush1.msra.mxu0 0.0
        %2992 = vmatprep.subr.mxu0 0.0
        %2993 = vmatpush1.msra.mxu0 0.0
        %2994 = vmatprep.subr.mxu0 0.0
        %2995 = vmatpush1.msra.mxu0 0.0
        %2996 = vmatprep.subr.mxu0 0.0
        %2997 = vmatpush1.msra.mxu0 0.0
        %2998 = vmatprep.mubr.f32.mxu0 0.0
        %2999 = vmatmul.mubr.f32.gmra.mrb[0].mxu0 %v2917
        %v3000 = vpop.f32.mrb[0].mxu0
        %v3001 = vadd.f32 %v2914, %v3000
        %v3002 = vpop.f32.mrb[0].mxu0
        %3003 = vmatprep.mubr.f32.mxu0 0.0
        %3004 = vmatmul.mubr.f32.gmra.mrb[0].mxu0 %v2920
        %v3005 = vpop.f32.mrb[0].mxu0
        %v3006 = vadd.f32 %v2914, %v3005
        %v3007 = vpop.f32.mrb[0].mxu0
        %3008 = vmatprep.mubr.f32.mxu0 0.0
        %3009 = vmatmul.mubr.f32.gmra.mrb[0].mxu0 %v2923
        %v3010 = vpop.f32.mrb[0].mxu0
        %v3011 = vadd.f32 %v2914, %v3010
        %v3012 = vpop.f32.mrb[0].mxu0
        %3013 = vmatprep.mubr.f32.mxu0 0.0
        %3014 = vmatmul.mubr.f32.gmra.mrb[0].mxu0 %v2926
        %v3015 = vpop.f32.mrb[0].mxu0
        %v3016 = vadd.f32 %v2914, %v3015
        %v3017 = vpop.f32.mrb[0].mxu0
        %3018 = vmatprep.mubr.f32.mxu0 0.0
        %3019 = vmatmul.mubr.f32.gmra.mrb[0].mxu0 %v2929
        %v3020 = vpop.f32.mrb[0].mxu0
        %v3021 = vadd.f32 %v2914, %v3020
        %v3022 = vpop.f32.mrb[0].mxu0
        %3023 = vmatprep.mubr.f32.mxu0 0.0
        %3024 = vmatmul.mubr.f32.gmra.mrb[0].mxu0 %v2932
        %v3025 = vpop.f32.mrb[0].mxu0
        %v3026 = vadd.f32 %v2914, %v3025
        %v3027 = vpop.f32.mrb[0].mxu0
        %3028 = vdwg.mxu0
        %3029 = vst.msk [vmem:[%s272] sm:$0xff] %vm292, %v3001
        %3030 = vst.msk [vmem:[%s272 + $0x8] sm:$0xff] %vm292, %v3006
        %3031 = vst.msk [vmem:[%s272 + $0x10] sm:$0xff] %vm292, %v3011
        %3032 = vst.msk [vmem:[%s272 + $0x18] sm:$0xff] %vm292, %v3016
        %3033 = vst.msk [vmem:[%s272 + $0x20] sm:$0xff] %vm292, %v3021
        %3034 = vst.msk [vmem:[%s272 + $0x28] sm:$0xff] %vm292, %v3026
        %s3035 = sand.u32 %s141, 1
        %s3036 = scalar_lea.sflag [#allocation4], %s3035
        %s3037 = sand.u32 %s141, 1
        %s3038 = smul.addr %s3037, 48
        %s3039 = scalar_lea.vmem [#allocation8], %s3038
        // Predicated region
        $region53: #{tpu_custom_call.1} parent=39 // pred_check
          %p3040 = pneg %p151
        $region54: #{tpu_custom_call.1} parent=39 // pred_check_branch
          %3042 = sbr.rel (%p3040) target = $region56
        $region55: #{tpu_custom_call.1} parent=39 // pred_region
          %s3043 = smul.u32 3, %s23
          %s3045 = ssub.s32 768, 768
          %3046 = vsyncadd %s3036, %s3045
          %s3047 = smul.addr %s3043, 2
          %s3048 = smul.addr %s3047, 128
          %s3049 = scalar_lea.hbm %s5, %s3048
          %s3050 = sshll.u32 %s3039, 4
          %s3051 = int_to_ptr.vmem [resolvable:$true] %s3050
          %3056 = dma.vmem_to_hbm [thread:$0]  %s3051, 768, %s3049, %s3036, 128, 128, 8
        $region56: #{tpu_custom_call.1} parent=39 // pred_fallthru
          _
      $region40: #{tpu_custom_call.1} parent=5 // pred_fallthru
        _
      %p3057 = scmp.le.s32.totalorder 2, %s18
      // Predicated region
      $region57: #{tpu_custom_call.1} parent=5 // pred_check
        %p3058 = pneg %p3057
      $region58: #{tpu_custom_call.1} parent=5 // pred_check_branch
        %3060 = sbr.rel (%p3058) target = $region60
      $region59: #{tpu_custom_call.1} parent=5 // pred_region
        %s3061 = ssub.s32 %s18, 2
        // Predicated region
        $region61: #{tpu_custom_call.1} parent=59 // pred_check
          %p3062 = pneg %p157
        $region62: #{tpu_custom_call.1} parent=59 // pred_check_branch
          %3064 = sbr.rel (%p3062) target = $region64
        $region63: #{tpu_custom_call.1} parent=59 // pred_region
          %s3065 = sand.u32 %s142, 1
          %s3066 = scalar_lea.sflag [#allocation4], %s3065
          %s3067 = sand.u32 %s142, 1
          %s3068 = smul.addr %s3067, 48
          %s3069 = scalar_lea.vmem [#allocation8], %s3068
          %3070 = dma.done %s3066, 768
        $region64: #{tpu_custom_call.1} parent=59 // pred_fallthru
          _
      $region60: #{tpu_custom_call.1} parent=5 // pred_fallthru
        _
    $region6: #{tpu_custom_call.1} parent=1 // loop_footer
      %s22 = sadd.s32 1, %s18
    $region7: #{tpu_custom_call.1} parent=1 // loop_footer_branch
      %17 = sbr.rel target = $region3
    $region8: #{tpu_custom_call.1} parent=1 // loop_exit
      _
    %3071 = vsyncpa [#allocation3], 1
    %s3072 = scalar_lea.sflag [#allocation3], 1
    %3073 = vsyncpa %s3072, 1
    %3074 = vsyncpa [#allocation6], 1
    %3075 = vsyncpa [#allocation4], 1
    %s3076 = scalar_lea.sflag [#allocation4], 1
    %3077 = vsyncpa %s3076, 1

</llo_original>
